<compile_context>
chip_gen: v7x
topology: tpu7x:2x2x1
jax: 0.10.0
libtpu: 0.0.40
codegen_flags: <defaults>
</compile_context>

<pallas_src>
import functools
import math

import jax
import jax.numpy as jnp
from jax import lax
from jax.experimental import pallas as pl
from jax.experimental.pallas import tpu as pltpu


# ----------------------------------------------------------------------------
# Fused 2-layer GRU kernel (interleaved layer-1 / layer-2 recurrence)
# ----------------------------------------------------------------------------
def _encoder_gru_kernel(x_ref, h0_ref,
                        wih1_ref, bgi1_ref,
                        wf_ref, bf_ref,
                        whh2_ref, bghn2_ref,
                        out_ref, hn_ref,
                        gi_ref,
                        *, seq_len, batch):
    """x_ref:   (T*B, In)  bf16      h0_ref: (2, B, H) f32
       wih1_ref:(In, 3H)   bf16      bgi1_ref: (1, 3H) f32  (b_ih1 + b_hh1[r,z])
       wf_ref:  (H, 6H)    bf16      [W_hh1 | W_ih2] fused
       bf_ref:  (1, 6H)    f32       [0,0,b_hh1_n | b_ih2_r+b_hh2_r, b_ih2_z+b_hh2_z, b_ih2_n]
       whh2_ref:(H, 3H)    bf16      bghn2_ref: (1, H) f32  (b_hh2_n)
       out_ref: (T*B, H)   f32       hn_ref: (2, B, H) f32
       gi_ref:  (T*B, 3H)  f32 scratch (hoisted layer-1 gate pre-activations)
       Dims pre-padded: B % 8 == 0, H % 128 == 0, In % 128 == 0.
       Gate order along the 3H axis is [r, z, n] (PyTorch convention)."""
    H = hn_ref.shape[-1]

    # ---- Layer 1 hoisted input projection: one big MXU matmul over all steps.
    gi_ref[...] = (jnp.dot(x_ref[...], wih1_ref[...],
                           preferred_element_type=jnp.float32) + bgi1_ref[...])

    wf = wf_ref[...]        # (H, 6H) bf16
    whh2 = whh2_ref[...]    # (H, 3H) bf16
    # Hoist bias broadcasts out of the (unrolled) loop — JAX does not CSE them.
    bias_f = jnp.broadcast_to(bf_ref[...], (batch, 6 * H))
    bghn2 = jnp.broadcast_to(bghn2_ref[...], (batch, H))

    def fused_proj(h1):
        # One matmul: first 3H = gh1 (next layer-1 step), last 3H = gi2.
        return jnp.dot(h1.astype(jnp.bfloat16), wf,
                       preferred_element_type=jnp.float32) + bias_f

    def hh2_proj(h2):
        return jnp.dot(h2.astype(jnp.bfloat16), whh2,
                       preferred_element_type=jnp.float32)

    def gru_gates(gi_r, gi_z, gi_n, gh_r, gh_z, gh_n, h_prev):
        r = jax.nn.sigmoid(gi_r + gh_r)
        z = jax.nn.sigmoid(gi_z + gh_z)
        n = jnp.tanh(gi_n + r * gh_n)
        return (1.0 - z) * n + z * h_prev

    def layer1_step(t, h1_prev, gg):
        row = t * batch
        if not isinstance(t, int):
            row = pl.multiple_of(row, batch)
        gi = gi_ref[pl.ds(row, batch), :]
        return gru_gates(gi[:, 0:H], gi[:, H:2 * H], gi[:, 2 * H:3 * H],
                         gg[:, 0:H], gg[:, H:2 * H], gg[:, 2 * H:3 * H],
                         h1_prev)

    def layer2_step(t, h2_prev, gg, gh2):
        h2_new = gru_gates(gg[:, 3 * H:4 * H], gg[:, 4 * H:5 * H], gg[:, 5 * H:6 * H],
                           gh2[:, 0:H], gh2[:, H:2 * H],
                           gh2[:, 2 * H:3 * H] + bghn2,
                           h2_prev)
        row = t * batch
        if not isinstance(t, int):
            row = pl.multiple_of(row, batch)
        out_ref[pl.ds(row, batch), :] = h2_new.astype(out_ref.dtype)
        return h2_new

    # ---- Prologue: layer-1 step 0 (no layer-2 work yet).
    h1_0 = h0_ref[0]
    gg0 = fused_proj(h1_0)
    y1 = layer1_step(0, h1_0, gg0)          # h1 output at t = 0
    y2 = h0_ref[1]                          # layer-2 hidden state (t = -1)

    # ---- Main interleaved loop: iteration i does layer-1 step i+1 AND
    #      layer-2 step i; both consume y1[i] through ONE fused matmul.
    if seq_len > 1:
        def body(i, carry):
            y1_prev, y2_prev = carry
            gg = fused_proj(y1_prev)        # gh1 for step i+1, gi2 for step i
            gh2 = hh2_proj(y2_prev)         # independent matmul -> pipelines
            y1_new = layer1_step(i + 1, y1_prev, gg)
            y2_new = layer2_step(i, y2_prev, gg, gh2)
            return (y1_new, y2_new)

        y1, y2 = lax.fori_loop(0, seq_len - 1, body, (y1, y2),
                               unroll=min(8, seq_len - 1))

    # ---- Epilogue: last layer-2 step (uses only the gi2 half of the fused mm).
    gg_last = fused_proj(y1)
    gh2_last = hh2_proj(y2)
    y2 = layer2_step(seq_len - 1, y2, gg_last, gh2_last)

    hn_ref[0] = y1.astype(hn_ref.dtype)
    hn_ref[1] = y2.astype(hn_ref.dtype)


# ----------------------------------------------------------------------------
# Wrapper: padding / layout / bias-folding prep + pallas_call
# ----------------------------------------------------------------------------
def _round_up(n, m):
    return ((n + m - 1) // m) * m


def _pad_gate_weight(w, in_dim, H, in_pad, h_pad):
    """(in, 3H) -> (in_pad, 3*h_pad), each gate lane-aligned to h_pad."""
    w_g = w.reshape(in_dim, 3, H)
    w_p = jnp.zeros((in_pad, 3, h_pad), jnp.float32).at[:in_dim, :, :H].set(w_g)
    return w_p.reshape(in_pad, 3 * h_pad)


def _pad_gate_bias(b, H, h_pad):
    return jnp.zeros((3, h_pad), jnp.float32).at[:, :H].set(b.reshape(3, H))


def _nbytes(shape, dtype):
    return math.prod(shape) * jnp.dtype(dtype).itemsize


def encoder_gru_forward(x, h_0, params):
    """x: (T, B, In), h_0: (2, B, H),
    params: [(w_ih (In,3H), w_hh (H,3H), b_ih (3H,), b_hh (3H,)) per layer].
    Returns (output (T, B, H), h_n (2, B, H))."""
    T, B, In = x.shape
    L, _, H = h_0.shape
    assert L == 2 and len(params) == 2, "kernel is specialized for a 2-layer GRU"

    Bp = _round_up(B, 8)        # sublane alignment
    Hp = _round_up(H, 128)      # lane alignment (per gate)
    Inp = _round_up(In, 128)

    x_p = jnp.zeros((T, Bp, Inp), jnp.float32).at[:, :B, :In].set(x.astype(jnp.float32))
    x2d = x_p.reshape(T * Bp, Inp).astype(jnp.bfloat16)
    h0_p = jnp.zeros((L, Bp, Hp), jnp.float32).at[:, :B, :H].set(h_0.astype(jnp.float32))

    (w_ih1, w_hh1, b_ih1, b_hh1) = params[0]
    (w_ih2, w_hh2, b_ih2, b_hh2) = params[1]

    wih1_p = _pad_gate_weight(w_ih1, In, H, Inp, Hp).astype(jnp.bfloat16)
    whh1_p = _pad_gate_weight(w_hh1, H, H, Hp, Hp)
    wih2_p = _pad_gate_weight(w_ih2, H, H, Hp, Hp)
    whh2_p = _pad_gate_weight(w_hh2, H, H, Hp, Hp).astype(jnp.bfloat16)
    # Fused recurrent weight: [W_hh1 | W_ih2]  -> (Hp, 6*Hp)
    w_fused = jnp.concatenate([whh1_p, wih2_p], axis=1).astype(jnp.bfloat16)

    bih1 = _pad_gate_bias(b_ih1, H, Hp)
    bhh1 = _pad_gate_bias(b_hh1, H, Hp)
    bih2 = _pad_gate_bias(b_ih2, H, Hp)
    bhh2 = _pad_gate_bias(b_hh2, H, Hp)

    # Layer-1 hoisted gi bias: b_ih1 + b_hh1 for r,z (n-gate b_hh1 stays on gh).
    bgi1 = bih1.at[0].add(bhh1[0]).at[1].add(bhh1[1]).reshape(1, 3 * Hp)
    # Fused-matmul bias: [0, 0, b_hh1_n | b_ih2_r+b_hh2_r, b_ih2_z+b_hh2_z, b_ih2_n]
    bgh1_part = jnp.zeros((3, Hp), jnp.float32).at[2].set(bhh1[2])
    bgi2_part = bih2.at[0].add(bhh2[0]).at[1].add(bhh2[1])
    b_fused = jnp.concatenate([bgh1_part.reshape(1, 3 * Hp),
                               bgi2_part.reshape(1, 3 * Hp)], axis=1)
    bghn2 = bhh2[2].reshape(1, Hp)          # only per-step bias (n gate, layer 2)

    # Scoped-VMEM budget: 2x (pipelined blocks) + scratch + headroom.
    vmem_need = 2 * (
        _nbytes((T * Bp, Inp), jnp.bfloat16) + _nbytes((L, Bp, Hp), jnp.float32)
        + _nbytes((Inp, 3 * Hp), jnp.bfloat16) + _nbytes((1, 3 * Hp), jnp.float32)
        + _nbytes((Hp, 6 * Hp), jnp.bfloat16) + _nbytes((1, 6 * Hp), jnp.float32)
        + _nbytes((Hp, 3 * Hp), jnp.bfloat16) + _nbytes((1, Hp), jnp.float32)
        + _nbytes((T * Bp, Hp), jnp.float32) + _nbytes((L, Bp, Hp), jnp.float32)
    ) + _nbytes((T * Bp, 3 * Hp), jnp.float32) + (16 << 20)
    vmem_limit = int(min(max(vmem_need, 32 << 20), 64 << 20))

    kernel = functools.partial(_encoder_gru_kernel, seq_len=T, batch=Bp)

    out2d, hn_p = pl.pallas_call(
        kernel,
        out_shape=(jax.ShapeDtypeStruct((T * Bp, Hp), jnp.float32),
                   jax.ShapeDtypeStruct((L, Bp, Hp), jnp.float32)),
        grid_spec=pltpu.PrefetchScalarGridSpec(
            num_scalar_prefetch=0,
            grid=(1,),                                           # fully fused kernel
            in_specs=[
                pl.BlockSpec((T * Bp, Inp), lambda i: (0, 0)),   # x (bf16, time-major flat)
                pl.BlockSpec((L, Bp, Hp), lambda i: (0, 0, 0)),  # h_0
                pl.BlockSpec((Inp, 3 * Hp), lambda i: (0, 0)),   # L1 W_ih (bf16)
                pl.BlockSpec((1, 3 * Hp), lambda i: (0, 0)),     # L1 folded gi bias
                pl.BlockSpec((Hp, 6 * Hp), lambda i: (0, 0)),    # fused [W_hh1 | W_ih2]
                pl.BlockSpec((1, 6 * Hp), lambda i: (0, 0)),     # fused bias
                pl.BlockSpec((Hp, 3 * Hp), lambda i: (0, 0)),    # L2 W_hh (bf16)
                pl.BlockSpec((1, Hp), lambda i: (0, 0)),         # L2 b_hh n-gate bias
            ],
            out_specs=[
                pl.BlockSpec((T * Bp, Hp), lambda i: (0, 0)),    # layer-2 output
                pl.BlockSpec((L, Bp, Hp), lambda i: (0, 0, 0)),  # h_n
            ],
            scratch_shapes=[
                pltpu.VMEM((T * Bp, 3 * Hp), jnp.float32),  # hoisted L1 gate pre-acts
            ],
        ),
        compiler_params=pltpu.CompilerParams(
            dimension_semantics=("arbitrary",),
            vmem_limit_bytes=vmem_limit),
    )(x2d, h0_p, wih1_p, bgi1, w_fused, b_fused, whh2_p, bghn2)

    output = out2d.reshape(T, Bp, Hp)[:, :B, :H]
    h_n = hn_p[:, :B, :H]
    return output, h_n


# ----------------------------------------------------------------------------
# Module wrapper (mirrors torch.nn.GRU(input_size, hidden_size, num_layers=2))
# ----------------------------------------------------------------------------
class EncoderRNNPallas:
    def __init__(self, input_size=256, hidden_size=128, num_layers=2, key=None):
        assert num_layers == 2, "fused kernel is specialized for 2 layers"
        self.input_size = input_size
        self.hidden_size = hidden_size
        self.num_layers = num_layers
        if key is None:
            key = jax.random.PRNGKey(0)
        k = 1.0 / jnp.sqrt(hidden_size)
        self.params = []
        for layer in range(num_layers):
            in_dim = input_size if layer == 0 else hidden_size
            key, k1, k2, k3, k4 = jax.random.split(key, 5)
            # Pre-transposed (in, 3H) layout; gate order [r, z, n].
            w_ih = jax.random.uniform(k1, (in_dim, 3 * hidden_size), jnp.float32, -k, k)
            w_hh = jax.random.uniform(k2, (hidden_size, 3 * hidden_size), jnp.float32, -k, k)
            b_ih = jax.random.uniform(k3, (3 * hidden_size,), jnp.float32, -k, k)
            b_hh = jax.random.uniform(k4, (3 * hidden_size,), jnp.float32, -k, k)
            self.params.append((w_ih, w_hh, b_ih, b_hh))

    def __call__(self, x, h_0):
        """x: (T, B, input_size), h_0: (num_layers, B, hidden) -> (output, h_n)."""
        return encoder_gru_forward(x, h_0, self.params)


# ----------------------------------------------------------------------------
# Pure-JAX reference (same math as torch.nn.GRU forward)
# ----------------------------------------------------------------------------
def _gru_reference(x, h_0, params, matmul_dtype=jnp.float32):
    layer_in = x
    h_lasts = []
    for layer, (w_ih, w_hh, b_ih, b_hh) in enumerate(params):
        H = w_hh.shape[0]
        h = h_0[layer]
        outs = []
        for t in range(x.shape[0]):
            gi = jnp.dot(layer_in[t].astype(matmul_dtype), w_ih.astype(matmul_dtype),
                         preferred_element_type=jnp.float32) + b_ih
            gh = jnp.dot(h.astype(matmul_dtype), w_hh.astype(matmul_dtype),
                         preferred_element_type=jnp.float32) + b_hh
            r = jax.nn.sigmoid(gi[:, :H] + gh[:, :H])
            z = jax.nn.sigmoid(gi[:, H:2 * H] + gh[:, H:2 * H])
            n = jnp.tanh(gi[:, 2 * H:] + r * gh[:, 2 * H:])
            h = (1.0 - z) * n + z * h
            outs.append(h)
        layer_in = jnp.stack(outs, axis=0)
        h_lasts.append(h)
    return layer_in, jnp.stack(h_lasts, axis=0)


if __name__ == "__main__":
    seq_len, batch, input_size, hidden_size, num_layers = 8, 4, 256, 128, 2

    key = jax.random.PRNGKey(0)
    kx, kh, kp = jax.random.split(key, 3)
    x = jax.random.normal(kx, (seq_len, batch, input_size), jnp.float32)
    h_0 = jax.random.normal(kh, (num_layers, batch, hidden_size), jnp.float32)

    encoder = EncoderRNNPallas(input_size, hidden_size, num_layers, key=kp)

    output, h_n = encoder(x, h_0)
    output = jax.block_until_ready(output)
    h_n = jax.block_until_ready(h_n)

    assert output.shape == (seq_len, batch, hidden_size)
    assert h_n.shape == (num_layers, batch, hidden_size)

    # Tight check vs. a reference using the same bf16-operand / f32-accumulate
    # matmul precision (verifies the interleaving / bias folding / indexing).
    ref_out_b, ref_hn_b = _gru_reference(x, h_0, encoder.params,
                                         matmul_dtype=jnp.bfloat16)
    assert jnp.allclose(output, ref_out_b, atol=2e-3, rtol=2e-3), (
        float(jnp.max(jnp.abs(output - ref_out_b))))
    assert jnp.allclose(h_n, ref_hn_b, atol=2e-3, rtol=2e-3), (
        float(jnp.max(jnp.abs(h_n - ref_hn_b))))

    # Loose check vs. the exact f32 GRU (bounds the bf16 matmul approximation).
    ref_out, ref_hn = _gru_reference(x, h_0, encoder.params)
    assert jnp.allclose(output, ref_out, atol=5e-2, rtol=5e-2), (
        float(jnp.max(jnp.abs(output - ref_out))))
    assert jnp.allclose(h_n, ref_hn, atol=5e-2, rtol=5e-2), (
        float(jnp.max(jnp.abs(h_n - ref_hn))))

    print("KERNEL_OK")
</pallas_src>

<mosaic_0001>
module attributes {stable_mosaic.version = 11 : i64} {
  func.func @_encoder_gru_kernel(%arg0: i32, %arg1: memref<64x256xbf16, #tpu.memory_space<vmem>>, %arg2: memref<2x8x128xf32, #tpu.memory_space<vmem>>, %arg3: memref<256x384xbf16, #tpu.memory_space<vmem>>, %arg4: memref<1x384xf32, #tpu.memory_space<vmem>>, %arg5: memref<128x768xbf16, #tpu.memory_space<vmem>>, %arg6: memref<1x768xf32, #tpu.memory_space<vmem>>, %arg7: memref<128x384xbf16, #tpu.memory_space<vmem>>, %arg8: memref<1x128xf32, #tpu.memory_space<vmem>>, %arg9: memref<64x128xf32, #tpu.memory_space<vmem>>, %arg10: memref<2x8x128xf32, #tpu.memory_space<vmem>>, %arg11: memref<64x384xf32, #tpu.memory_space<vmem>>) attributes {dimension_semantics = [#tpu.dimension_semantics<arbitrary>], iteration_bounds = array<i64: 1>, scalar_prefetch = 0 : i64, scratch_operands = 1 : i64, tpu.core_type = #tpu.core_type<tc>, window_params = [{pipeline_mode = #tpu.pipeline_mode<synchronous>, transform_indices = @transform_0, window_bounds = array<i64: 64, 256>}, {pipeline_mode = #tpu.pipeline_mode<synchronous>, transform_indices = @transform_1, window_bounds = array<i64: 2, 8, 128>}, {pipeline_mode = #tpu.pipeline_mode<synchronous>, transform_indices = @transform_2, window_bounds = array<i64: 256, 384>}, {pipeline_mode = #tpu.pipeline_mode<synchronous>, transform_indices = @transform_3, window_bounds = array<i64: 1, 384>}, {pipeline_mode = #tpu.pipeline_mode<synchronous>, transform_indices = @transform_4, window_bounds = array<i64: 128, 768>}, {pipeline_mode = #tpu.pipeline_mode<synchronous>, transform_indices = @transform_5, window_bounds = array<i64: 1, 768>}, {pipeline_mode = #tpu.pipeline_mode<synchronous>, transform_indices = @transform_6, window_bounds = array<i64: 128, 384>}, {pipeline_mode = #tpu.pipeline_mode<synchronous>, transform_indices = @transform_7, window_bounds = array<i64: 1, 128>}, {pipeline_mode = #tpu.pipeline_mode<synchronous>, transform_indices = @transform_8, window_bounds = array<i64: 64, 128>}, {pipeline_mode = #tpu.pipeline_mode<synchronous>, transform_indices = @transform_9, window_bounds = array<i64: 2, 8, 128>}]} {
    %c0 = arith.constant 0 : index
    %c0_0 = arith.constant 0 : index
    %0 = vector.load %arg1[%c0, %c0_0] : memref<64x256xbf16, #tpu.memory_space<vmem>>, vector<64x256xbf16>
    %c0_1 = arith.constant 0 : index
    %c0_2 = arith.constant 0 : index
    %1 = vector.load %arg3[%c0_1, %c0_2] : memref<256x384xbf16, #tpu.memory_space<vmem>>, vector<256x384xbf16>
    %cst = arith.constant dense<0.000000e+00> : vector<64x384xf32>
    %2 = tpu.matmul %0, %1, %cst {dimension_numbers = #tpu.dot_dimension_numbers<[1], [0], [0], [1], [0, 0, 1, 1], [], []>} : vector<64x256xbf16>, vector<256x384xbf16>, vector<64x384xf32> -> vector<64x384xf32>
    %c0_3 = arith.constant 0 : index
    %c0_4 = arith.constant 0 : index
    %3 = vector.load %arg4[%c0_3, %c0_4] : memref<1x384xf32, #tpu.memory_space<vmem>>, vector<1x384xf32>
    %4 = vector.broadcast %3 : vector<1x384xf32> to vector<64x384xf32>
    %5 = arith.addf %2, %4 : vector<64x384xf32>
    %c0_5 = arith.constant 0 : index
    %c0_6 = arith.constant 0 : index
    %6 = vector.load %arg11[%c0_5, %c0_6] : memref<64x384xf32, #tpu.memory_space<vmem>>, vector<64x384xf32>
    tpu.vector_store %arg11[%c0_5, %c0_6], %5 {strides = array<i32>} : memref<64x384xf32, #tpu.memory_space<vmem>>, vector<64x384xf32>,
    %c0_7 = arith.constant 0 : index
    %c0_8 = arith.constant 0 : index
    %7 = vector.load %arg5[%c0_7, %c0_8] : memref<128x768xbf16, #tpu.memory_space<vmem>>, vector<128x768xbf16>
    %c0_9 = arith.constant 0 : index
    %c0_10 = arith.constant 0 : index
    %8 = vector.load %arg7[%c0_9, %c0_10] : memref<128x384xbf16, #tpu.memory_space<vmem>>, vector<128x384xbf16>
    %c0_11 = arith.constant 0 : index
    %c0_12 = arith.constant 0 : index
    %9 = vector.load %arg6[%c0_11, %c0_12] : memref<1x768xf32, #tpu.memory_space<vmem>>, vector<1x768xf32>
    %10 = vector.shape_cast %9 : vector<1x768xf32> to vector<1x768xf32>
    %11 = vector.broadcast %10 : vector<1x768xf32> to vector<8x768xf32>
    %c0_13 = arith.constant 0 : index
    %c0_14 = arith.constant 0 : index
    %12 = vector.load %arg8[%c0_13, %c0_14] : memref<1x128xf32, #tpu.memory_space<vmem>>, vector<1x128xf32>
    %13 = vector.shape_cast %12 : vector<1x128xf32> to vector<1x128xf32>
    %14 = vector.broadcast %13 : vector<1x128xf32> to vector<8x128xf32>
    %c0_15 = arith.constant 0 : index
    %c0_16 = arith.constant 0 : index
    %c0_17 = arith.constant 0 : index
    %15 = vector.load %arg2[%c0_15, %c0_16, %c0_17] : memref<2x8x128xf32, #tpu.memory_space<vmem>>, vector<1x8x128xf32>
    %16 = vector.shape_cast %15 : vector<1x8x128xf32> to vector<8x128xf32>
    %17 = arith.truncf %16 : vector<8x128xf32> to vector<8x128xbf16>
    %cst_18 = arith.constant dense<0.000000e+00> : vector<8x768xf32>
    %18 = tpu.matmul %17, %7, %cst_18 {dimension_numbers = #tpu.dot_dimension_numbers<[1], [0], [0], [1], [0, 0, 1, 1], [], []>} : vector<8x128xbf16>, vector<128x768xbf16>, vector<8x768xf32> -> vector<8x768xf32>
    %19 = arith.addf %18, %11 : vector<8x768xf32>
    %c0_19 = arith.constant 0 : index
    %c0_20 = arith.constant 0 : index
    %20 = vector.load %arg11[%c0_19, %c0_20] : memref<64x384xf32, #tpu.memory_space<vmem>>, vector<8x384xf32>
    %21 = vector.extract_strided_slice %20 {offsets = [0, 0], sizes = [8, 128], strides = [1, 1]} : vector<8x384xf32> to vector<8x128xf32>
    %22 = vector.extract_strided_slice %20 {offsets = [0, 128], sizes = [8, 128], strides = [1, 1]} : vector<8x384xf32> to vector<8x128xf32>
    %23 = vector.extract_strided_slice %20 {offsets = [0, 256], sizes = [8, 128], strides = [1, 1]} : vector<8x384xf32> to vector<8x128xf32>
    %24 = vector.extract_strided_slice %19 {offsets = [0, 0], sizes = [8, 128], strides = [1, 1]} : vector<8x768xf32> to vector<8x128xf32>
    %25 = vector.extract_strided_slice %19 {offsets = [0, 128], sizes = [8, 128], strides = [1, 1]} : vector<8x768xf32> to vector<8x128xf32>
    %26 = vector.extract_strided_slice %19 {offsets = [0, 256], sizes = [8, 128], strides = [1, 1]} : vector<8x768xf32> to vector<8x128xf32>
    %27 = arith.addf %21, %24 : vector<8x128xf32>
    %28 = arith.negf %27 : vector<8x128xf32>
    %29 = math.exp %28 : vector<8x128xf32>
    %cst_21 = arith.constant 1.000000e+00 : f32
    %30 = vector.broadcast %cst_21 : f32 to vector<8x128xf32>
    %31 = arith.addf %30, %29 : vector<8x128xf32>
    %32 = arith.divf %30, %31 : vector<8x128xf32>
    %33 = arith.addf %22, %25 : vector<8x128xf32>
    %34 = arith.negf %33 : vector<8x128xf32>
    %35 = math.exp %34 : vector<8x128xf32>
    %cst_22 = arith.constant 1.000000e+00 : f32
    %36 = vector.broadcast %cst_22 : f32 to vector<8x128xf32>
    %37 = arith.addf %36, %35 : vector<8x128xf32>
    %38 = arith.divf %36, %37 : vector<8x128xf32>
    %39 = arith.mulf %32, %26 : vector<8x128xf32>
    %40 = arith.addf %23, %39 : vector<8x128xf32>
    %41 = math.tanh %40 : vector<8x128xf32>
    %cst_23 = arith.constant 1.000000e+00 : f32
    %42 = vector.broadcast %cst_23 : f32 to vector<8x128xf32>
    %43 = arith.subf %42, %38 : vector<8x128xf32>
    %44 = arith.mulf %43, %41 : vector<8x128xf32>
    %45 = arith.mulf %38, %16 : vector<8x128xf32>
    %46 = arith.addf %44, %45 : vector<8x128xf32>
    %c1 = arith.constant 1 : index
    %c0_24 = arith.constant 0 : index
    %c0_25 = arith.constant 0 : index
    %47 = vector.load %arg2[%c1, %c0_24, %c0_25] : memref<2x8x128xf32, #tpu.memory_space<vmem>>, vector<1x8x128xf32>
    %48 = vector.shape_cast %47 : vector<1x8x128xf32> to vector<8x128xf32>
    %c0_i32 = arith.constant 0 : i32
    %49 = arith.truncf %46 : vector<8x128xf32> to vector<8x128xbf16>
    %cst_26 = arith.constant dense<0.000000e+00> : vector<8x768xf32>
    %50 = tpu.matmul %49, %7, %cst_26 {dimension_numbers = #tpu.dot_dimension_numbers<[1], [0], [0], [1], [0, 0, 1, 1], [], []>} : vector<8x128xbf16>, vector<128x768xbf16>, vector<8x768xf32> -> vector<8x768xf32>
    %51 = arith.addf %50, %11 : vector<8x768xf32>
    %52 = arith.truncf %48 : vector<8x128xf32> to vector<8x128xbf16>
    %cst_27 = arith.constant dense<0.000000e+00> : vector<8x384xf32>
    %53 = tpu.matmul %52, %8, %cst_27 {dimension_numbers = #tpu.dot_dimension_numbers<[1], [0], [0], [1], [0, 0, 1, 1], [], []>} : vector<8x128xbf16>, vector<128x384xbf16>, vector<8x384xf32> -> vector<8x384xf32>
    %c1_i32 = arith.constant 1 : i32
    %54 = arith.addi %c0_i32, %c1_i32 : i32
    %c8_i32 = arith.constant 8 : i32
    %55 = arith.muli %54, %c8_i32 : i32
    %56 = tpu.assume_multiple %55, 8 : i32
    %57 = arith.index_cast %56 : i32 to index
    %c0_28 = arith.constant 0 : index
    %58 = vector.load %arg11[%57, %c0_28] : memref<64x384xf32, #tpu.memory_space<vmem>>, vector<8x384xf32>
    %59 = vector.extract_strided_slice %58 {offsets = [0, 0], sizes = [8, 128], strides = [1, 1]} : vector<8x384xf32> to vector<8x128xf32>
    %60 = vector.extract_strided_slice %58 {offsets = [0, 128], sizes = [8, 128], strides = [1, 1]} : vector<8x384xf32> to vector<8x128xf32>
    %61 = vector.extract_strided_slice %58 {offsets = [0, 256], sizes = [8, 128], strides = [1, 1]} : vector<8x384xf32> to vector<8x128xf32>
    %62 = vector.extract_strided_slice %51 {offsets = [0, 0], sizes = [8, 128], strides = [1, 1]} : vector<8x768xf32> to vector<8x128xf32>
    %63 = vector.extract_strided_slice %51 {offsets = [0, 128], sizes = [8, 128], strides = [1, 1]} : vector<8x768xf32> to vector<8x128xf32>
    %64 = vector.extract_strided_slice %51 {offsets = [0, 256], sizes = [8, 128], strides = [1, 1]} : vector<8x768xf32> to vector<8x128xf32>
    %65 = arith.addf %59, %62 : vector<8x128xf32>
    %66 = arith.negf %65 : vector<8x128xf32>
    %67 = math.exp %66 : vector<8x128xf32>
    %cst_29 = arith.constant 1.000000e+00 : f32
    %68 = vector.broadcast %cst_29 : f32 to vector<8x128xf32>
    %69 = arith.addf %68, %67 : vector<8x128xf32>
    %70 = arith.divf %68, %69 : vector<8x128xf32>
    %71 = arith.addf %60, %63 : vector<8x128xf32>
    %72 = arith.negf %71 : vector<8x128xf32>
    %73 = math.exp %72 : vector<8x128xf32>
    %cst_30 = arith.constant 1.000000e+00 : f32
    %74 = vector.broadcast %cst_30 : f32 to vector<8x128xf32>
    %75 = arith.addf %74, %73 : vector<8x128xf32>
    %76 = arith.divf %74, %75 : vector<8x128xf32>
    %77 = arith.mulf %70, %64 : vector<8x128xf32>
    %78 = arith.addf %61, %77 : vector<8x128xf32>
    %79 = math.tanh %78 : vector<8x128xf32>
    %cst_31 = arith.constant 1.000000e+00 : f32
    %80 = vector.broadcast %cst_31 : f32 to vector<8x128xf32>
    %81 = arith.subf %80, %76 : vector<8x128xf32>
    %82 = arith.mulf %81, %79 : vector<8x128xf32>
    %83 = arith.mulf %76, %46 : vector<8x128xf32>
    %84 = arith.addf %82, %83 : vector<8x128xf32>
    %85 = vector.extract_strided_slice %51 {offsets = [0, 384], sizes = [8, 128], strides = [1, 1]} : vector<8x768xf32> to vector<8x128xf32>
    %86 = vector.extract_strided_slice %51 {offsets = [0, 512], sizes = [8, 128], strides = [1, 1]} : vector<8x768xf32> to vector<8x128xf32>
    %87 = vector.extract_strided_slice %51 {offsets = [0, 640], sizes = [8, 128], strides = [1, 1]} : vector<8x768xf32> to vector<8x128xf32>
    %88 = vector.extract_strided_slice %53 {offsets = [0, 0], sizes = [8, 128], strides = [1, 1]} : vector<8x384xf32> to vector<8x128xf32>
    %89 = vector.extract_strided_slice %53 {offsets = [0, 128], sizes = [8, 128], strides = [1, 1]} : vector<8x384xf32> to vector<8x128xf32>
    %90 = vector.extract_strided_slice %53 {offsets = [0, 256], sizes = [8, 128], strides = [1, 1]} : vector<8x384xf32> to vector<8x128xf32>
    %91 = arith.addf %90, %14 : vector<8x128xf32>
    %92 = arith.addf %85, %88 : vector<8x128xf32>
    %93 = arith.negf %92 : vector<8x128xf32>
    %94 = math.exp %93 : vector<8x128xf32>
    %cst_32 = arith.constant 1.000000e+00 : f32
    %95 = vector.broadcast %cst_32 : f32 to vector<8x128xf32>
    %96 = arith.addf %95, %94 : vector<8x128xf32>
    %97 = arith.divf %95, %96 : vector<8x128xf32>
    %98 = arith.addf %86, %89 : vector<8x128xf32>
    %99 = arith.negf %98 : vector<8x128xf32>
    %100 = math.exp %99 : vector<8x128xf32>
    %cst_33 = arith.constant 1.000000e+00 : f32
    %101 = vector.broadcast %cst_33 : f32 to vector<8x128xf32>
    %102 = arith.addf %101, %100 : vector<8x128xf32>
    %103 = arith.divf %101, %102 : vector<8x128xf32>
    %104 = arith.mulf %97, %91 : vector<8x128xf32>
    %105 = arith.addf %87, %104 : vector<8x128xf32>
    %106 = math.tanh %105 : vector<8x128xf32>
    %cst_34 = arith.constant 1.000000e+00 : f32
    %107 = vector.broadcast %cst_34 : f32 to vector<8x128xf32>
    %108 = arith.subf %107, %103 : vector<8x128xf32>
    %109 = arith.mulf %108, %106 : vector<8x128xf32>
    %110 = arith.mulf %103, %48 : vector<8x128xf32>
    %111 = arith.addf %109, %110 : vector<8x128xf32>
    %c8_i32_35 = arith.constant 8 : i32
    %112 = arith.muli %c0_i32, %c8_i32_35 : i32
    %113 = tpu.assume_multiple %112, 8 : i32
    %114 = arith.index_cast %113 : i32 to index
    %c0_36 = arith.constant 0 : index
    %115 = vector.load %arg9[%114, %c0_36] : memref<64x128xf32, #tpu.memory_space<vmem>>, vector<8x128xf32>
    tpu.vector_store %arg9[%114, %c0_36], %111 {strides = array<i32>} : memref<64x128xf32, #tpu.memory_space<vmem>>, vector<8x128xf32>,
    %c1_i32_37 = arith.constant 1 : i32
    %116 = arith.truncf %84 : vector<8x128xf32> to vector<8x128xbf16>
    %cst_38 = arith.constant dense<0.000000e+00> : vector<8x768xf32>
    %117 = tpu.matmul %116, %7, %cst_38 {dimension_numbers = #tpu.dot_dimension_numbers<[1], [0], [0], [1], [0, 0, 1, 1], [], []>} : vector<8x128xbf16>, vector<128x768xbf16>, vector<8x768xf32> -> vector<8x768xf32>
    %118 = arith.addf %117, %11 : vector<8x768xf32>
    %119 = arith.truncf %111 : vector<8x128xf32> to vector<8x128xbf16>
    %cst_39 = arith.constant dense<0.000000e+00> : vector<8x384xf32>
    %120 = tpu.matmul %119, %8, %cst_39 {dimension_numbers = #tpu.dot_dimension_numbers<[1], [0], [0], [1], [0, 0, 1, 1], [], []>} : vector<8x128xbf16>, vector<128x384xbf16>, vector<8x384xf32> -> vector<8x384xf32>
    %c1_i32_40 = arith.constant 1 : i32
    %121 = arith.addi %c1_i32_37, %c1_i32_40 : i32
    %c8_i32_41 = arith.constant 8 : i32
    %122 = arith.muli %121, %c8_i32_41 : i32
    %123 = tpu.assume_multiple %122, 8 : i32
    %124 = arith.index_cast %123 : i32 to index
    %c0_42 = arith.constant 0 : index
    %125 = vector.load %arg11[%124, %c0_42] : memref<64x384xf32, #tpu.memory_space<vmem>>, vector<8x384xf32>
    %126 = vector.extract_strided_slice %125 {offsets = [0, 0], sizes = [8, 128], strides = [1, 1]} : vector<8x384xf32> to vector<8x128xf32>
    %127 = vector.extract_strided_slice %125 {offsets = [0, 128], sizes = [8, 128], strides = [1, 1]} : vector<8x384xf32> to vector<8x128xf32>
    %128 = vector.extract_strided_slice %125 {offsets = [0, 256], sizes = [8, 128], strides = [1, 1]} : vector<8x384xf32> to vector<8x128xf32>
    %129 = vector.extract_strided_slice %118 {offsets = [0, 0], sizes = [8, 128], strides = [1, 1]} : vector<8x768xf32> to vector<8x128xf32>
    %130 = vector.extract_strided_slice %118 {offsets = [0, 128], sizes = [8, 128], strides = [1, 1]} : vector<8x768xf32> to vector<8x128xf32>
    %131 = vector.extract_strided_slice %118 {offsets = [0, 256], sizes = [8, 128], strides = [1, 1]} : vector<8x768xf32> to vector<8x128xf32>
    %132 = arith.addf %126, %129 : vector<8x128xf32>
    %133 = arith.negf %132 : vector<8x128xf32>
    %134 = math.exp %133 : vector<8x128xf32>
    %cst_43 = arith.constant 1.000000e+00 : f32
    %135 = vector.broadcast %cst_43 : f32 to vector<8x128xf32>
    %136 = arith.addf %135, %134 : vector<8x128xf32>
    %137 = arith.divf %135, %136 : vector<8x128xf32>
    %138 = arith.addf %127, %130 : vector<8x128xf32>
    %139 = arith.negf %138 : vector<8x128xf32>
    %140 = math.exp %139 : vector<8x128xf32>
    %cst_44 = arith.constant 1.000000e+00 : f32
    %141 = vector.broadcast %cst_44 : f32 to vector<8x128xf32>
    %142 = arith.addf %141, %140 : vector<8x128xf32>
    %143 = arith.divf %141, %142 : vector<8x128xf32>
    %144 = arith.mulf %137, %131 : vector<8x128xf32>
    %145 = arith.addf %128, %144 : vector<8x128xf32>
    %146 = math.tanh %145 : vector<8x128xf32>
    %cst_45 = arith.constant 1.000000e+00 : f32
    %147 = vector.broadcast %cst_45 : f32 to vector<8x128xf32>
    %148 = arith.subf %147, %143 : vector<8x128xf32>
    %149 = arith.mulf %148, %146 : vector<8x128xf32>
    %150 = arith.mulf %143, %84 : vector<8x128xf32>
    %151 = arith.addf %149, %150 : vector<8x128xf32>
    %152 = vector.extract_strided_slice %118 {offsets = [0, 384], sizes = [8, 128], strides = [1, 1]} : vector<8x768xf32> to vector<8x128xf32>
    %153 = vector.extract_strided_slice %118 {offsets = [0, 512], sizes = [8, 128], strides = [1, 1]} : vector<8x768xf32> to vector<8x128xf32>
    %154 = vector.extract_strided_slice %118 {offsets = [0, 640], sizes = [8, 128], strides = [1, 1]} : vector<8x768xf32> to vector<8x128xf32>
    %155 = vector.extract_strided_slice %120 {offsets = [0, 0], sizes = [8, 128], strides = [1, 1]} : vector<8x384xf32> to vector<8x128xf32>
    %156 = vector.extract_strided_slice %120 {offsets = [0, 128], sizes = [8, 128], strides = [1, 1]} : vector<8x384xf32> to vector<8x128xf32>
    %157 = vector.extract_strided_slice %120 {offsets = [0, 256], sizes = [8, 128], strides = [1, 1]} : vector<8x384xf32> to vector<8x128xf32>
    %158 = arith.addf %157, %14 : vector<8x128xf32>
    %159 = arith.addf %152, %155 : vector<8x128xf32>
    %160 = arith.negf %159 : vector<8x128xf32>
    %161 = math.exp %160 : vector<8x128xf32>
    %cst_46 = arith.constant 1.000000e+00 : f32
    %162 = vector.broadcast %cst_46 : f32 to vector<8x128xf32>
    %163 = arith.addf %162, %161 : vector<8x128xf32>
    %164 = arith.divf %162, %163 : vector<8x128xf32>
    %165 = arith.addf %153, %156 : vector<8x128xf32>
    %166 = arith.negf %165 : vector<8x128xf32>
    %167 = math.exp %166 : vector<8x128xf32>
    %cst_47 = arith.constant 1.000000e+00 : f32
    %168 = vector.broadcast %cst_47 : f32 to vector<8x128xf32>
    %169 = arith.addf %168, %167 : vector<8x128xf32>
    %170 = arith.divf %168, %169 : vector<8x128xf32>
    %171 = arith.mulf %164, %158 : vector<8x128xf32>
    %172 = arith.addf %154, %171 : vector<8x128xf32>
    %173 = math.tanh %172 : vector<8x128xf32>
    %cst_48 = arith.constant 1.000000e+00 : f32
    %174 = vector.broadcast %cst_48 : f32 to vector<8x128xf32>
    %175 = arith.subf %174, %170 : vector<8x128xf32>
    %176 = arith.mulf %175, %173 : vector<8x128xf32>
    %177 = arith.mulf %170, %111 : vector<8x128xf32>
    %178 = arith.addf %176, %177 : vector<8x128xf32>
    %c8_i32_49 = arith.constant 8 : i32
    %179 = arith.muli %c1_i32_37, %c8_i32_49 : i32
    %180 = tpu.assume_multiple %179, 8 : i32
    %181 = arith.index_cast %180 : i32 to index
    %c0_50 = arith.constant 0 : index
    %182 = vector.load %arg9[%181, %c0_50] : memref<64x128xf32, #tpu.memory_space<vmem>>, vector<8x128xf32>
    tpu.vector_store %arg9[%181, %c0_50], %178 {strides = array<i32>} : memref<64x128xf32, #tpu.memory_space<vmem>>, vector<8x128xf32>,
    %c2_i32 = arith.constant 2 : i32
    %183 = arith.truncf %151 : vector<8x128xf32> to vector<8x128xbf16>
    %cst_51 = arith.constant dense<0.000000e+00> : vector<8x768xf32>
    %184 = tpu.matmul %183, %7, %cst_51 {dimension_numbers = #tpu.dot_dimension_numbers<[1], [0], [0], [1], [0, 0, 1, 1], [], []>} : vector<8x128xbf16>, vector<128x768xbf16>, vector<8x768xf32> -> vector<8x768xf32>
    %185 = arith.addf %184, %11 : vector<8x768xf32>
    %186 = arith.truncf %178 : vector<8x128xf32> to vector<8x128xbf16>
    %cst_52 = arith.constant dense<0.000000e+00> : vector<8x384xf32>
    %187 = tpu.matmul %186, %8, %cst_52 {dimension_numbers = #tpu.dot_dimension_numbers<[1], [0], [0], [1], [0, 0, 1, 1], [], []>} : vector<8x128xbf16>, vector<128x384xbf16>, vector<8x384xf32> -> vector<8x384xf32>
    %c1_i32_53 = arith.constant 1 : i32
    %188 = arith.addi %c2_i32, %c1_i32_53 : i32
    %c8_i32_54 = arith.constant 8 : i32
    %189 = arith.muli %188, %c8_i32_54 : i32
    %190 = tpu.assume_multiple %189, 8 : i32
    %191 = arith.index_cast %190 : i32 to index
    %c0_55 = arith.constant 0 : index
    %192 = vector.load %arg11[%191, %c0_55] : memref<64x384xf32, #tpu.memory_space<vmem>>, vector<8x384xf32>
    %193 = vector.extract_strided_slice %192 {offsets = [0, 0], sizes = [8, 128], strides = [1, 1]} : vector<8x384xf32> to vector<8x128xf32>
    %194 = vector.extract_strided_slice %192 {offsets = [0, 128], sizes = [8, 128], strides = [1, 1]} : vector<8x384xf32> to vector<8x128xf32>
    %195 = vector.extract_strided_slice %192 {offsets = [0, 256], sizes = [8, 128], strides = [1, 1]} : vector<8x384xf32> to vector<8x128xf32>
    %196 = vector.extract_strided_slice %185 {offsets = [0, 0], sizes = [8, 128], strides = [1, 1]} : vector<8x768xf32> to vector<8x128xf32>
    %197 = vector.extract_strided_slice %185 {offsets = [0, 128], sizes = [8, 128], strides = [1, 1]} : vector<8x768xf32> to vector<8x128xf32>
    %198 = vector.extract_strided_slice %185 {offsets = [0, 256], sizes = [8, 128], strides = [1, 1]} : vector<8x768xf32> to vector<8x128xf32>
    %199 = arith.addf %193, %196 : vector<8x128xf32>
    %200 = arith.negf %199 : vector<8x128xf32>
    %201 = math.exp %200 : vector<8x128xf32>
    %cst_56 = arith.constant 1.000000e+00 : f32
    %202 = vector.broadcast %cst_56 : f32 to vector<8x128xf32>
    %203 = arith.addf %202, %201 : vector<8x128xf32>
    %204 = arith.divf %202, %203 : vector<8x128xf32>
    %205 = arith.addf %194, %197 : vector<8x128xf32>
    %206 = arith.negf %205 : vector<8x128xf32>
    %207 = math.exp %206 : vector<8x128xf32>
    %cst_57 = arith.constant 1.000000e+00 : f32
    %208 = vector.broadcast %cst_57 : f32 to vector<8x128xf32>
    %209 = arith.addf %208, %207 : vector<8x128xf32>
    %210 = arith.divf %208, %209 : vector<8x128xf32>
    %211 = arith.mulf %204, %198 : vector<8x128xf32>
    %212 = arith.addf %195, %211 : vector<8x128xf32>
    %213 = math.tanh %212 : vector<8x128xf32>
    %cst_58 = arith.constant 1.000000e+00 : f32
    %214 = vector.broadcast %cst_58 : f32 to vector<8x128xf32>
    %215 = arith.subf %214, %210 : vector<8x128xf32>
    %216 = arith.mulf %215, %213 : vector<8x128xf32>
    %217 = arith.mulf %210, %151 : vector<8x128xf32>
    %218 = arith.addf %216, %217 : vector<8x128xf32>
    %219 = vector.extract_strided_slice %185 {offsets = [0, 384], sizes = [8, 128], strides = [1, 1]} : vector<8x768xf32> to vector<8x128xf32>
    %220 = vector.extract_strided_slice %185 {offsets = [0, 512], sizes = [8, 128], strides = [1, 1]} : vector<8x768xf32> to vector<8x128xf32>
    %221 = vector.extract_strided_slice %185 {offsets = [0, 640], sizes = [8, 128], strides = [1, 1]} : vector<8x768xf32> to vector<8x128xf32>
    %222 = vector.extract_strided_slice %187 {offsets = [0, 0], sizes = [8, 128], strides = [1, 1]} : vector<8x384xf32> to vector<8x128xf32>
    %223 = vector.extract_strided_slice %187 {offsets = [0, 128], sizes = [8, 128], strides = [1, 1]} : vector<8x384xf32> to vector<8x128xf32>
    %224 = vector.extract_strided_slice %187 {offsets = [0, 256], sizes = [8, 128], strides = [1, 1]} : vector<8x384xf32> to vector<8x128xf32>
    %225 = arith.addf %224, %14 : vector<8x128xf32>
    %226 = arith.addf %219, %222 : vector<8x128xf32>
    %227 = arith.negf %226 : vector<8x128xf32>
    %228 = math.exp %227 : vector<8x128xf32>
    %cst_59 = arith.constant 1.000000e+00 : f32
    %229 = vector.broadcast %cst_59 : f32 to vector<8x128xf32>
    %230 = arith.addf %229, %228 : vector<8x128xf32>
    %231 = arith.divf %229, %230 : vector<8x128xf32>
    %232 = arith.addf %220, %223 : vector<8x128xf32>
    %233 = arith.negf %232 : vector<8x128xf32>
    %234 = math.exp %233 : vector<8x128xf32>
    %cst_60 = arith.constant 1.000000e+00 : f32
    %235 = vector.broadcast %cst_60 : f32 to vector<8x128xf32>
    %236 = arith.addf %235, %234 : vector<8x128xf32>
    %237 = arith.divf %235, %236 : vector<8x128xf32>
    %238 = arith.mulf %231, %225 : vector<8x128xf32>
    %239 = arith.addf %221, %238 : vector<8x128xf32>
    %240 = math.tanh %239 : vector<8x128xf32>
    %cst_61 = arith.constant 1.000000e+00 : f32
    %241 = vector.broadcast %cst_61 : f32 to vector<8x128xf32>
    %242 = arith.subf %241, %237 : vector<8x128xf32>
    %243 = arith.mulf %242, %240 : vector<8x128xf32>
    %244 = arith.mulf %237, %178 : vector<8x128xf32>
    %245 = arith.addf %243, %244 : vector<8x128xf32>
    %c8_i32_62 = arith.constant 8 : i32
    %246 = arith.muli %c2_i32, %c8_i32_62 : i32
    %247 = tpu.assume_multiple %246, 8 : i32
    %248 = arith.index_cast %247 : i32 to index
    %c0_63 = arith.constant 0 : index
    %249 = vector.load %arg9[%248, %c0_63] : memref<64x128xf32, #tpu.memory_space<vmem>>, vector<8x128xf32>
    tpu.vector_store %arg9[%248, %c0_63], %245 {strides = array<i32>} : memref<64x128xf32, #tpu.memory_space<vmem>>, vector<8x128xf32>,
    %c3_i32 = arith.constant 3 : i32
    %250 = arith.truncf %218 : vector<8x128xf32> to vector<8x128xbf16>
    %cst_64 = arith.constant dense<0.000000e+00> : vector<8x768xf32>
    %251 = tpu.matmul %250, %7, %cst_64 {dimension_numbers = #tpu.dot_dimension_numbers<[1], [0], [0], [1], [0, 0, 1, 1], [], []>} : vector<8x128xbf16>, vector<128x768xbf16>, vector<8x768xf32> -> vector<8x768xf32>
    %252 = arith.addf %251, %11 : vector<8x768xf32>
    %253 = arith.truncf %245 : vector<8x128xf32> to vector<8x128xbf16>
    %cst_65 = arith.constant dense<0.000000e+00> : vector<8x384xf32>
    %254 = tpu.matmul %253, %8, %cst_65 {dimension_numbers = #tpu.dot_dimension_numbers<[1], [0], [0], [1], [0, 0, 1, 1], [], []>} : vector<8x128xbf16>, vector<128x384xbf16>, vector<8x384xf32> -> vector<8x384xf32>
    %c1_i32_66 = arith.constant 1 : i32
    %255 = arith.addi %c3_i32, %c1_i32_66 : i32
    %c8_i32_67 = arith.constant 8 : i32
    %256 = arith.muli %255, %c8_i32_67 : i32
    %257 = tpu.assume_multiple %256, 8 : i32
    %258 = arith.index_cast %257 : i32 to index
    %c0_68 = arith.constant 0 : index
    %259 = vector.load %arg11[%258, %c0_68] : memref<64x384xf32, #tpu.memory_space<vmem>>, vector<8x384xf32>
    %260 = vector.extract_strided_slice %259 {offsets = [0, 0], sizes = [8, 128], strides = [1, 1]} : vector<8x384xf32> to vector<8x128xf32>
    %261 = vector.extract_strided_slice %259 {offsets = [0, 128], sizes = [8, 128], strides = [1, 1]} : vector<8x384xf32> to vector<8x128xf32>
    %262 = vector.extract_strided_slice %259 {offsets = [0, 256], sizes = [8, 128], strides = [1, 1]} : vector<8x384xf32> to vector<8x128xf32>
    %263 = vector.extract_strided_slice %252 {offsets = [0, 0], sizes = [8, 128], strides = [1, 1]} : vector<8x768xf32> to vector<8x128xf32>
    %264 = vector.extract_strided_slice %252 {offsets = [0, 128], sizes = [8, 128], strides = [1, 1]} : vector<8x768xf32> to vector<8x128xf32>
    %265 = vector.extract_strided_slice %252 {offsets = [0, 256], sizes = [8, 128], strides = [1, 1]} : vector<8x768xf32> to vector<8x128xf32>
    %266 = arith.addf %260, %263 : vector<8x128xf32>
    %267 = arith.negf %266 : vector<8x128xf32>
    %268 = math.exp %267 : vector<8x128xf32>
    %cst_69 = arith.constant 1.000000e+00 : f32
    %269 = vector.broadcast %cst_69 : f32 to vector<8x128xf32>
    %270 = arith.addf %269, %268 : vector<8x128xf32>
    %271 = arith.divf %269, %270 : vector<8x128xf32>
    %272 = arith.addf %261, %264 : vector<8x128xf32>
    %273 = arith.negf %272 : vector<8x128xf32>
    %274 = math.exp %273 : vector<8x128xf32>
    %cst_70 = arith.constant 1.000000e+00 : f32
    %275 = vector.broadcast %cst_70 : f32 to vector<8x128xf32>
    %276 = arith.addf %275, %274 : vector<8x128xf32>
    %277 = arith.divf %275, %276 : vector<8x128xf32>
    %278 = arith.mulf %271, %265 : vector<8x128xf32>
    %279 = arith.addf %262, %278 : vector<8x128xf32>
    %280 = math.tanh %279 : vector<8x128xf32>
    %cst_71 = arith.constant 1.000000e+00 : f32
    %281 = vector.broadcast %cst_71 : f32 to vector<8x128xf32>
    %282 = arith.subf %281, %277 : vector<8x128xf32>
    %283 = arith.mulf %282, %280 : vector<8x128xf32>
    %284 = arith.mulf %277, %218 : vector<8x128xf32>
    %285 = arith.addf %283, %284 : vector<8x128xf32>
    %286 = vector.extract_strided_slice %252 {offsets = [0, 384], sizes = [8, 128], strides = [1, 1]} : vector<8x768xf32> to vector<8x128xf32>
    %287 = vector.extract_strided_slice %252 {offsets = [0, 512], sizes = [8, 128], strides = [1, 1]} : vector<8x768xf32> to vector<8x128xf32>
    %288 = vector.extract_strided_slice %252 {offsets = [0, 640], sizes = [8, 128], strides = [1, 1]} : vector<8x768xf32> to vector<8x128xf32>
    %289 = vector.extract_strided_slice %254 {offsets = [0, 0], sizes = [8, 128], strides = [1, 1]} : vector<8x384xf32> to vector<8x128xf32>
    %290 = vector.extract_strided_slice %254 {offsets = [0, 128], sizes = [8, 128], strides = [1, 1]} : vector<8x384xf32> to vector<8x128xf32>
    %291 = vector.extract_strided_slice %254 {offsets = [0, 256], sizes = [8, 128], strides = [1, 1]} : vector<8x384xf32> to vector<8x128xf32>
    %292 = arith.addf %291, %14 : vector<8x128xf32>
    %293 = arith.addf %286, %289 : vector<8x128xf32>
    %294 = arith.negf %293 : vector<8x128xf32>
    %295 = math.exp %294 : vector<8x128xf32>
    %cst_72 = arith.constant 1.000000e+00 : f32
    %296 = vector.broadcast %cst_72 : f32 to vector<8x128xf32>
    %297 = arith.addf %296, %295 : vector<8x128xf32>
    %298 = arith.divf %296, %297 : vector<8x128xf32>
    %299 = arith.addf %287, %290 : vector<8x128xf32>
    %300 = arith.negf %299 : vector<8x128xf32>
    %301 = math.exp %300 : vector<8x128xf32>
    %cst_73 = arith.constant 1.000000e+00 : f32
    %302 = vector.broadcast %cst_73 : f32 to vector<8x128xf32>
    %303 = arith.addf %302, %301 : vector<8x128xf32>
    %304 = arith.divf %302, %303 : vector<8x128xf32>
    %305 = arith.mulf %298, %292 : vector<8x128xf32>
    %306 = arith.addf %288, %305 : vector<8x128xf32>
    %307 = math.tanh %306 : vector<8x128xf32>
    %cst_74 = arith.constant 1.000000e+00 : f32
    %308 = vector.broadcast %cst_74 : f32 to vector<8x128xf32>
    %309 = arith.subf %308, %304 : vector<8x128xf32>
    %310 = arith.mulf %309, %307 : vector<8x128xf32>
    %311 = arith.mulf %304, %245 : vector<8x128xf32>
    %312 = arith.addf %310, %311 : vector<8x128xf32>
    %c8_i32_75 = arith.constant 8 : i32
    %313 = arith.muli %c3_i32, %c8_i32_75 : i32
    %314 = tpu.assume_multiple %313, 8 : i32
    %315 = arith.index_cast %314 : i32 to index
    %c0_76 = arith.constant 0 : index
    %316 = vector.load %arg9[%315, %c0_76] : memref<64x128xf32, #tpu.memory_space<vmem>>, vector<8x128xf32>
    tpu.vector_store %arg9[%315, %c0_76], %312 {strides = array<i32>} : memref<64x128xf32, #tpu.memory_space<vmem>>, vector<8x128xf32>,
    %c4_i32 = arith.constant 4 : i32
    %317 = arith.truncf %285 : vector<8x128xf32> to vector<8x128xbf16>
    %cst_77 = arith.constant dense<0.000000e+00> : vector<8x768xf32>
    %318 = tpu.matmul %317, %7, %cst_77 {dimension_numbers = #tpu.dot_dimension_numbers<[1], [0], [0], [1], [0, 0, 1, 1], [], []>} : vector<8x128xbf16>, vector<128x768xbf16>, vector<8x768xf32> -> vector<8x768xf32>
    %319 = arith.addf %318, %11 : vector<8x768xf32>
    %320 = arith.truncf %312 : vector<8x128xf32> to vector<8x128xbf16>
    %cst_78 = arith.constant dense<0.000000e+00> : vector<8x384xf32>
    %321 = tpu.matmul %320, %8, %cst_78 {dimension_numbers = #tpu.dot_dimension_numbers<[1], [0], [0], [1], [0, 0, 1, 1], [], []>} : vector<8x128xbf16>, vector<128x384xbf16>, vector<8x384xf32> -> vector<8x384xf32>
    %c1_i32_79 = arith.constant 1 : i32
    %322 = arith.addi %c4_i32, %c1_i32_79 : i32
    %c8_i32_80 = arith.constant 8 : i32
    %323 = arith.muli %322, %c8_i32_80 : i32
    %324 = tpu.assume_multiple %323, 8 : i32
    %325 = arith.index_cast %324 : i32 to index
    %c0_81 = arith.constant 0 : index
    %326 = vector.load %arg11[%325, %c0_81] : memref<64x384xf32, #tpu.memory_space<vmem>>, vector<8x384xf32>
    %327 = vector.extract_strided_slice %326 {offsets = [0, 0], sizes = [8, 128], strides = [1, 1]} : vector<8x384xf32> to vector<8x128xf32>
    %328 = vector.extract_strided_slice %326 {offsets = [0, 128], sizes = [8, 128], strides = [1, 1]} : vector<8x384xf32> to vector<8x128xf32>
    %329 = vector.extract_strided_slice %326 {offsets = [0, 256], sizes = [8, 128], strides = [1, 1]} : vector<8x384xf32> to vector<8x128xf32>
    %330 = vector.extract_strided_slice %319 {offsets = [0, 0], sizes = [8, 128], strides = [1, 1]} : vector<8x768xf32> to vector<8x128xf32>
    %331 = vector.extract_strided_slice %319 {offsets = [0, 128], sizes = [8, 128], strides = [1, 1]} : vector<8x768xf32> to vector<8x128xf32>
    %332 = vector.extract_strided_slice %319 {offsets = [0, 256], sizes = [8, 128], strides = [1, 1]} : vector<8x768xf32> to vector<8x128xf32>
    %333 = arith.addf %327, %330 : vector<8x128xf32>
    %334 = arith.negf %333 : vector<8x128xf32>
    %335 = math.exp %334 : vector<8x128xf32>
    %cst_82 = arith.constant 1.000000e+00 : f32
    %336 = vector.broadcast %cst_82 : f32 to vector<8x128xf32>
    %337 = arith.addf %336, %335 : vector<8x128xf32>
    %338 = arith.divf %336, %337 : vector<8x128xf32>
    %339 = arith.addf %328, %331 : vector<8x128xf32>
    %340 = arith.negf %339 : vector<8x128xf32>
    %341 = math.exp %340 : vector<8x128xf32>
    %cst_83 = arith.constant 1.000000e+00 : f32
    %342 = vector.broadcast %cst_83 : f32 to vector<8x128xf32>
    %343 = arith.addf %342, %341 : vector<8x128xf32>
    %344 = arith.divf %342, %343 : vector<8x128xf32>
    %345 = arith.mulf %338, %332 : vector<8x128xf32>
    %346 = arith.addf %329, %345 : vector<8x128xf32>
    %347 = math.tanh %346 : vector<8x128xf32>
    %cst_84 = arith.constant 1.000000e+00 : f32
    %348 = vector.broadcast %cst_84 : f32 to vector<8x128xf32>
    %349 = arith.subf %348, %344 : vector<8x128xf32>
    %350 = arith.mulf %349, %347 : vector<8x128xf32>
    %351 = arith.mulf %344, %285 : vector<8x128xf32>
    %352 = arith.addf %350, %351 : vector<8x128xf32>
    %353 = vector.extract_strided_slice %319 {offsets = [0, 384], sizes = [8, 128], strides = [1, 1]} : vector<8x768xf32> to vector<8x128xf32>
    %354 = vector.extract_strided_slice %319 {offsets = [0, 512], sizes = [8, 128], strides = [1, 1]} : vector<8x768xf32> to vector<8x128xf32>
    %355 = vector.extract_strided_slice %319 {offsets = [0, 640], sizes = [8, 128], strides = [1, 1]} : vector<8x768xf32> to vector<8x128xf32>
    %356 = vector.extract_strided_slice %321 {offsets = [0, 0], sizes = [8, 128], strides = [1, 1]} : vector<8x384xf32> to vector<8x128xf32>
    %357 = vector.extract_strided_slice %321 {offsets = [0, 128], sizes = [8, 128], strides = [1, 1]} : vector<8x384xf32> to vector<8x128xf32>
    %358 = vector.extract_strided_slice %321 {offsets = [0, 256], sizes = [8, 128], strides = [1, 1]} : vector<8x384xf32> to vector<8x128xf32>
    %359 = arith.addf %358, %14 : vector<8x128xf32>
    %360 = arith.addf %353, %356 : vector<8x128xf32>
    %361 = arith.negf %360 : vector<8x128xf32>
    %362 = math.exp %361 : vector<8x128xf32>
    %cst_85 = arith.constant 1.000000e+00 : f32
    %363 = vector.broadcast %cst_85 : f32 to vector<8x128xf32>
    %364 = arith.addf %363, %362 : vector<8x128xf32>
    %365 = arith.divf %363, %364 : vector<8x128xf32>
    %366 = arith.addf %354, %357 : vector<8x128xf32>
    %367 = arith.negf %366 : vector<8x128xf32>
    %368 = math.exp %367 : vector<8x128xf32>
    %cst_86 = arith.constant 1.000000e+00 : f32
    %369 = vector.broadcast %cst_86 : f32 to vector<8x128xf32>
    %370 = arith.addf %369, %368 : vector<8x128xf32>
    %371 = arith.divf %369, %370 : vector<8x128xf32>
    %372 = arith.mulf %365, %359 : vector<8x128xf32>
    %373 = arith.addf %355, %372 : vector<8x128xf32>
    %374 = math.tanh %373 : vector<8x128xf32>
    %cst_87 = arith.constant 1.000000e+00 : f32
    %375 = vector.broadcast %cst_87 : f32 to vector<8x128xf32>
    %376 = arith.subf %375, %371 : vector<8x128xf32>
    %377 = arith.mulf %376, %374 : vector<8x128xf32>
    %378 = arith.mulf %371, %312 : vector<8x128xf32>
    %379 = arith.addf %377, %378 : vector<8x128xf32>
    %c8_i32_88 = arith.constant 8 : i32
    %380 = arith.muli %c4_i32, %c8_i32_88 : i32
    %381 = tpu.assume_multiple %380, 8 : i32
    %382 = arith.index_cast %381 : i32 to index
    %c0_89 = arith.constant 0 : index
    %383 = vector.load %arg9[%382, %c0_89] : memref<64x128xf32, #tpu.memory_space<vmem>>, vector<8x128xf32>
    tpu.vector_store %arg9[%382, %c0_89], %379 {strides = array<i32>} : memref<64x128xf32, #tpu.memory_space<vmem>>, vector<8x128xf32>,
    %c5_i32 = arith.constant 5 : i32
    %384 = arith.truncf %352 : vector<8x128xf32> to vector<8x128xbf16>
    %cst_90 = arith.constant dense<0.000000e+00> : vector<8x768xf32>
    %385 = tpu.matmul %384, %7, %cst_90 {dimension_numbers = #tpu.dot_dimension_numbers<[1], [0], [0], [1], [0, 0, 1, 1], [], []>} : vector<8x128xbf16>, vector<128x768xbf16>, vector<8x768xf32> -> vector<8x768xf32>
    %386 = arith.addf %385, %11 : vector<8x768xf32>
    %387 = arith.truncf %379 : vector<8x128xf32> to vector<8x128xbf16>
    %cst_91 = arith.constant dense<0.000000e+00> : vector<8x384xf32>
    %388 = tpu.matmul %387, %8, %cst_91 {dimension_numbers = #tpu.dot_dimension_numbers<[1], [0], [0], [1], [0, 0, 1, 1], [], []>} : vector<8x128xbf16>, vector<128x384xbf16>, vector<8x384xf32> -> vector<8x384xf32>
    %c1_i32_92 = arith.constant 1 : i32
    %389 = arith.addi %c5_i32, %c1_i32_92 : i32
    %c8_i32_93 = arith.constant 8 : i32
    %390 = arith.muli %389, %c8_i32_93 : i32
    %391 = tpu.assume_multiple %390, 8 : i32
    %392 = arith.index_cast %391 : i32 to index
    %c0_94 = arith.constant 0 : index
    %393 = vector.load %arg11[%392, %c0_94] : memref<64x384xf32, #tpu.memory_space<vmem>>, vector<8x384xf32>
    %394 = vector.extract_strided_slice %393 {offsets = [0, 0], sizes = [8, 128], strides = [1, 1]} : vector<8x384xf32> to vector<8x128xf32>
    %395 = vector.extract_strided_slice %393 {offsets = [0, 128], sizes = [8, 128], strides = [1, 1]} : vector<8x384xf32> to vector<8x128xf32>
    %396 = vector.extract_strided_slice %393 {offsets = [0, 256], sizes = [8, 128], strides = [1, 1]} : vector<8x384xf32> to vector<8x128xf32>
    %397 = vector.extract_strided_slice %386 {offsets = [0, 0], sizes = [8, 128], strides = [1, 1]} : vector<8x768xf32> to vector<8x128xf32>
    %398 = vector.extract_strided_slice %386 {offsets = [0, 128], sizes = [8, 128], strides = [1, 1]} : vector<8x768xf32> to vector<8x128xf32>
    %399 = vector.extract_strided_slice %386 {offsets = [0, 256], sizes = [8, 128], strides = [1, 1]} : vector<8x768xf32> to vector<8x128xf32>
    %400 = arith.addf %394, %397 : vector<8x128xf32>
    %401 = arith.negf %400 : vector<8x128xf32>
    %402 = math.exp %401 : vector<8x128xf32>
    %cst_95 = arith.constant 1.000000e+00 : f32
    %403 = vector.broadcast %cst_95 : f32 to vector<8x128xf32>
    %404 = arith.addf %403, %402 : vector<8x128xf32>
    %405 = arith.divf %403, %404 : vector<8x128xf32>
    %406 = arith.addf %395, %398 : vector<8x128xf32>
    %407 = arith.negf %406 : vector<8x128xf32>
    %408 = math.exp %407 : vector<8x128xf32>
    %cst_96 = arith.constant 1.000000e+00 : f32
    %409 = vector.broadcast %cst_96 : f32 to vector<8x128xf32>
    %410 = arith.addf %409, %408 : vector<8x128xf32>
    %411 = arith.divf %409, %410 : vector<8x128xf32>
    %412 = arith.mulf %405, %399 : vector<8x128xf32>
    %413 = arith.addf %396, %412 : vector<8x128xf32>
    %414 = math.tanh %413 : vector<8x128xf32>
    %cst_97 = arith.constant 1.000000e+00 : f32
    %415 = vector.broadcast %cst_97 : f32 to vector<8x128xf32>
    %416 = arith.subf %415, %411 : vector<8x128xf32>
    %417 = arith.mulf %416, %414 : vector<8x128xf32>
    %418 = arith.mulf %411, %352 : vector<8x128xf32>
    %419 = arith.addf %417, %418 : vector<8x128xf32>
    %420 = vector.extract_strided_slice %386 {offsets = [0, 384], sizes = [8, 128], strides = [1, 1]} : vector<8x768xf32> to vector<8x128xf32>
    %421 = vector.extract_strided_slice %386 {offsets = [0, 512], sizes = [8, 128], strides = [1, 1]} : vector<8x768xf32> to vector<8x128xf32>
    %422 = vector.extract_strided_slice %386 {offsets = [0, 640], sizes = [8, 128], strides = [1, 1]} : vector<8x768xf32> to vector<8x128xf32>
    %423 = vector.extract_strided_slice %388 {offsets = [0, 0], sizes = [8, 128], strides = [1, 1]} : vector<8x384xf32> to vector<8x128xf32>
    %424 = vector.extract_strided_slice %388 {offsets = [0, 128], sizes = [8, 128], strides = [1, 1]} : vector<8x384xf32> to vector<8x128xf32>
    %425 = vector.extract_strided_slice %388 {offsets = [0, 256], sizes = [8, 128], strides = [1, 1]} : vector<8x384xf32> to vector<8x128xf32>
    %426 = arith.addf %425, %14 : vector<8x128xf32>
    %427 = arith.addf %420, %423 : vector<8x128xf32>
    %428 = arith.negf %427 : vector<8x128xf32>
    %429 = math.exp %428 : vector<8x128xf32>
    %cst_98 = arith.constant 1.000000e+00 : f32
    %430 = vector.broadcast %cst_98 : f32 to vector<8x128xf32>
    %431 = arith.addf %430, %429 : vector<8x128xf32>
    %432 = arith.divf %430, %431 : vector<8x128xf32>
    %433 = arith.addf %421, %424 : vector<8x128xf32>
    %434 = arith.negf %433 : vector<8x128xf32>
    %435 = math.exp %434 : vector<8x128xf32>
    %cst_99 = arith.constant 1.000000e+00 : f32
    %436 = vector.broadcast %cst_99 : f32 to vector<8x128xf32>
    %437 = arith.addf %436, %435 : vector<8x128xf32>
    %438 = arith.divf %436, %437 : vector<8x128xf32>
    %439 = arith.mulf %432, %426 : vector<8x128xf32>
    %440 = arith.addf %422, %439 : vector<8x128xf32>
    %441 = math.tanh %440 : vector<8x128xf32>
    %cst_100 = arith.constant 1.000000e+00 : f32
    %442 = vector.broadcast %cst_100 : f32 to vector<8x128xf32>
    %443 = arith.subf %442, %438 : vector<8x128xf32>
    %444 = arith.mulf %443, %441 : vector<8x128xf32>
    %445 = arith.mulf %438, %379 : vector<8x128xf32>
    %446 = arith.addf %444, %445 : vector<8x128xf32>
    %c8_i32_101 = arith.constant 8 : i32
    %447 = arith.muli %c5_i32, %c8_i32_101 : i32
    %448 = tpu.assume_multiple %447, 8 : i32
    %449 = arith.index_cast %448 : i32 to index
    %c0_102 = arith.constant 0 : index
    %450 = vector.load %arg9[%449, %c0_102] : memref<64x128xf32, #tpu.memory_space<vmem>>, vector<8x128xf32>
    tpu.vector_store %arg9[%449, %c0_102], %446 {strides = array<i32>} : memref<64x128xf32, #tpu.memory_space<vmem>>, vector<8x128xf32>,
    %c6_i32 = arith.constant 6 : i32
    %451 = arith.truncf %419 : vector<8x128xf32> to vector<8x128xbf16>
    %cst_103 = arith.constant dense<0.000000e+00> : vector<8x768xf32>
    %452 = tpu.matmul %451, %7, %cst_103 {dimension_numbers = #tpu.dot_dimension_numbers<[1], [0], [0], [1], [0, 0, 1, 1], [], []>} : vector<8x128xbf16>, vector<128x768xbf16>, vector<8x768xf32> -> vector<8x768xf32>
    %453 = arith.addf %452, %11 : vector<8x768xf32>
    %454 = arith.truncf %446 : vector<8x128xf32> to vector<8x128xbf16>
    %cst_104 = arith.constant dense<0.000000e+00> : vector<8x384xf32>
    %455 = tpu.matmul %454, %8, %cst_104 {dimension_numbers = #tpu.dot_dimension_numbers<[1], [0], [0], [1], [0, 0, 1, 1], [], []>} : vector<8x128xbf16>, vector<128x384xbf16>, vector<8x384xf32> -> vector<8x384xf32>
    %c1_i32_105 = arith.constant 1 : i32
    %456 = arith.addi %c6_i32, %c1_i32_105 : i32
    %c8_i32_106 = arith.constant 8 : i32
    %457 = arith.muli %456, %c8_i32_106 : i32
    %458 = tpu.assume_multiple %457, 8 : i32
    %459 = arith.index_cast %458 : i32 to index
    %c0_107 = arith.constant 0 : index
    %460 = vector.load %arg11[%459, %c0_107] : memref<64x384xf32, #tpu.memory_space<vmem>>, vector<8x384xf32>
    %461 = vector.extract_strided_slice %460 {offsets = [0, 0], sizes = [8, 128], strides = [1, 1]} : vector<8x384xf32> to vector<8x128xf32>
    %462 = vector.extract_strided_slice %460 {offsets = [0, 128], sizes = [8, 128], strides = [1, 1]} : vector<8x384xf32> to vector<8x128xf32>
    %463 = vector.extract_strided_slice %460 {offsets = [0, 256], sizes = [8, 128], strides = [1, 1]} : vector<8x384xf32> to vector<8x128xf32>
    %464 = vector.extract_strided_slice %453 {offsets = [0, 0], sizes = [8, 128], strides = [1, 1]} : vector<8x768xf32> to vector<8x128xf32>
    %465 = vector.extract_strided_slice %453 {offsets = [0, 128], sizes = [8, 128], strides = [1, 1]} : vector<8x768xf32> to vector<8x128xf32>
    %466 = vector.extract_strided_slice %453 {offsets = [0, 256], sizes = [8, 128], strides = [1, 1]} : vector<8x768xf32> to vector<8x128xf32>
    %467 = arith.addf %461, %464 : vector<8x128xf32>
    %468 = arith.negf %467 : vector<8x128xf32>
    %469 = math.exp %468 : vector<8x128xf32>
    %cst_108 = arith.constant 1.000000e+00 : f32
    %470 = vector.broadcast %cst_108 : f32 to vector<8x128xf32>
    %471 = arith.addf %470, %469 : vector<8x128xf32>
    %472 = arith.divf %470, %471 : vector<8x128xf32>
    %473 = arith.addf %462, %465 : vector<8x128xf32>
    %474 = arith.negf %473 : vector<8x128xf32>
    %475 = math.exp %474 : vector<8x128xf32>
    %cst_109 = arith.constant 1.000000e+00 : f32
    %476 = vector.broadcast %cst_109 : f32 to vector<8x128xf32>
    %477 = arith.addf %476, %475 : vector<8x128xf32>
    %478 = arith.divf %476, %477 : vector<8x128xf32>
    %479 = arith.mulf %472, %466 : vector<8x128xf32>
    %480 = arith.addf %463, %479 : vector<8x128xf32>
    %481 = math.tanh %480 : vector<8x128xf32>
    %cst_110 = arith.constant 1.000000e+00 : f32
    %482 = vector.broadcast %cst_110 : f32 to vector<8x128xf32>
    %483 = arith.subf %482, %478 : vector<8x128xf32>
    %484 = arith.mulf %483, %481 : vector<8x128xf32>
    %485 = arith.mulf %478, %419 : vector<8x128xf32>
    %486 = arith.addf %484, %485 : vector<8x128xf32>
    %487 = vector.extract_strided_slice %453 {offsets = [0, 384], sizes = [8, 128], strides = [1, 1]} : vector<8x768xf32> to vector<8x128xf32>
    %488 = vector.extract_strided_slice %453 {offsets = [0, 512], sizes = [8, 128], strides = [1, 1]} : vector<8x768xf32> to vector<8x128xf32>
    %489 = vector.extract_strided_slice %453 {offsets = [0, 640], sizes = [8, 128], strides = [1, 1]} : vector<8x768xf32> to vector<8x128xf32>
    %490 = vector.extract_strided_slice %455 {offsets = [0, 0], sizes = [8, 128], strides = [1, 1]} : vector<8x384xf32> to vector<8x128xf32>
    %491 = vector.extract_strided_slice %455 {offsets = [0, 128], sizes = [8, 128], strides = [1, 1]} : vector<8x384xf32> to vector<8x128xf32>
    %492 = vector.extract_strided_slice %455 {offsets = [0, 256], sizes = [8, 128], strides = [1, 1]} : vector<8x384xf32> to vector<8x128xf32>
    %493 = arith.addf %492, %14 : vector<8x128xf32>
    %494 = arith.addf %487, %490 : vector<8x128xf32>
    %495 = arith.negf %494 : vector<8x128xf32>
    %496 = math.exp %495 : vector<8x128xf32>
    %cst_111 = arith.constant 1.000000e+00 : f32
    %497 = vector.broadcast %cst_111 : f32 to vector<8x128xf32>
    %498 = arith.addf %497, %496 : vector<8x128xf32>
    %499 = arith.divf %497, %498 : vector<8x128xf32>
    %500 = arith.addf %488, %491 : vector<8x128xf32>
    %501 = arith.negf %500 : vector<8x128xf32>
    %502 = math.exp %501 : vector<8x128xf32>
    %cst_112 = arith.constant 1.000000e+00 : f32
    %503 = vector.broadcast %cst_112 : f32 to vector<8x128xf32>
    %504 = arith.addf %503, %502 : vector<8x128xf32>
    %505 = arith.divf %503, %504 : vector<8x128xf32>
    %506 = arith.mulf %499, %493 : vector<8x128xf32>
    %507 = arith.addf %489, %506 : vector<8x128xf32>
    %508 = math.tanh %507 : vector<8x128xf32>
    %cst_113 = arith.constant 1.000000e+00 : f32
    %509 = vector.broadcast %cst_113 : f32 to vector<8x128xf32>
    %510 = arith.subf %509, %505 : vector<8x128xf32>
    %511 = arith.mulf %510, %508 : vector<8x128xf32>
    %512 = arith.mulf %505, %446 : vector<8x128xf32>
    %513 = arith.addf %511, %512 : vector<8x128xf32>
    %c8_i32_114 = arith.constant 8 : i32
    %514 = arith.muli %c6_i32, %c8_i32_114 : i32
    %515 = tpu.assume_multiple %514, 8 : i32
    %516 = arith.index_cast %515 : i32 to index
    %c0_115 = arith.constant 0 : index
    %517 = vector.load %arg9[%516, %c0_115] : memref<64x128xf32, #tpu.memory_space<vmem>>, vector<8x128xf32>
    tpu.vector_store %arg9[%516, %c0_115], %513 {strides = array<i32>} : memref<64x128xf32, #tpu.memory_space<vmem>>, vector<8x128xf32>,
    %c7_i32 = arith.constant 7 : i32
    %518 = arith.truncf %486 : vector<8x128xf32> to vector<8x128xbf16>
    %cst_116 = arith.constant dense<0.000000e+00> : vector<8x768xf32>
    %519 = tpu.matmul %518, %7, %cst_116 {dimension_numbers = #tpu.dot_dimension_numbers<[1], [0], [0], [1], [0, 0, 1, 1], [], []>} : vector<8x128xbf16>, vector<128x768xbf16>, vector<8x768xf32> -> vector<8x768xf32>
    %520 = arith.addf %519, %11 : vector<8x768xf32>
    %521 = arith.truncf %513 : vector<8x128xf32> to vector<8x128xbf16>
    %cst_117 = arith.constant dense<0.000000e+00> : vector<8x384xf32>
    %522 = tpu.matmul %521, %8, %cst_117 {dimension_numbers = #tpu.dot_dimension_numbers<[1], [0], [0], [1], [0, 0, 1, 1], [], []>} : vector<8x128xbf16>, vector<128x384xbf16>, vector<8x384xf32> -> vector<8x384xf32>
    %523 = vector.extract_strided_slice %520 {offsets = [0, 384], sizes = [8, 128], strides = [1, 1]} : vector<8x768xf32> to vector<8x128xf32>
    %524 = vector.extract_strided_slice %520 {offsets = [0, 512], sizes = [8, 128], strides = [1, 1]} : vector<8x768xf32> to vector<8x128xf32>
    %525 = vector.extract_strided_slice %520 {offsets = [0, 640], sizes = [8, 128], strides = [1, 1]} : vector<8x768xf32> to vector<8x128xf32>
    %526 = vector.extract_strided_slice %522 {offsets = [0, 0], sizes = [8, 128], strides = [1, 1]} : vector<8x384xf32> to vector<8x128xf32>
    %527 = vector.extract_strided_slice %522 {offsets = [0, 128], sizes = [8, 128], strides = [1, 1]} : vector<8x384xf32> to vector<8x128xf32>
    %528 = vector.extract_strided_slice %522 {offsets = [0, 256], sizes = [8, 128], strides = [1, 1]} : vector<8x384xf32> to vector<8x128xf32>
    %529 = arith.addf %528, %14 : vector<8x128xf32>
    %530 = arith.addf %523, %526 : vector<8x128xf32>
    %531 = arith.negf %530 : vector<8x128xf32>
    %532 = math.exp %531 : vector<8x128xf32>
    %cst_118 = arith.constant 1.000000e+00 : f32
    %533 = vector.broadcast %cst_118 : f32 to vector<8x128xf32>
    %534 = arith.addf %533, %532 : vector<8x128xf32>
    %535 = arith.divf %533, %534 : vector<8x128xf32>
    %536 = arith.addf %524, %527 : vector<8x128xf32>
    %537 = arith.negf %536 : vector<8x128xf32>
    %538 = math.exp %537 : vector<8x128xf32>
    %cst_119 = arith.constant 1.000000e+00 : f32
    %539 = vector.broadcast %cst_119 : f32 to vector<8x128xf32>
    %540 = arith.addf %539, %538 : vector<8x128xf32>
    %541 = arith.divf %539, %540 : vector<8x128xf32>
    %542 = arith.mulf %535, %529 : vector<8x128xf32>
    %543 = arith.addf %525, %542 : vector<8x128xf32>
    %544 = math.tanh %543 : vector<8x128xf32>
    %cst_120 = arith.constant 1.000000e+00 : f32
    %545 = vector.broadcast %cst_120 : f32 to vector<8x128xf32>
    %546 = arith.subf %545, %541 : vector<8x128xf32>
    %547 = arith.mulf %546, %544 : vector<8x128xf32>
    %548 = arith.mulf %541, %513 : vector<8x128xf32>
    %549 = arith.addf %547, %548 : vector<8x128xf32>
    %c56 = arith.constant 56 : index
    %c0_121 = arith.constant 0 : index
    %550 = vector.load %arg9[%c56, %c0_121] : memref<64x128xf32, #tpu.memory_space<vmem>>, vector<8x128xf32>
    tpu.vector_store %arg9[%c56, %c0_121], %549 {strides = array<i32>} : memref<64x128xf32, #tpu.memory_space<vmem>>, vector<8x128xf32>,
    %c0_122 = arith.constant 0 : index
    %c0_123 = arith.constant 0 : index
    %c0_124 = arith.constant 0 : index
    %551 = vector.load %arg10[%c0_122, %c0_123, %c0_124] : memref<2x8x128xf32, #tpu.memory_space<vmem>>, vector<1x8x128xf32>
    %552 = vector.shape_cast %551 : vector<1x8x128xf32> to vector<8x128xf32>
    %553 = vector.shape_cast %486 : vector<8x128xf32> to vector<1x8x128xf32>
    tpu.vector_store %arg10[%c0_122, %c0_123, %c0_124], %553 {strides = array<i32>} : memref<2x8x128xf32, #tpu.memory_space<vmem>>, vector<1x8x128xf32>,
    %c1_125 = arith.constant 1 : index
    %c0_126 = arith.constant 0 : index
    %c0_127 = arith.constant 0 : index
    %554 = vector.load %arg10[%c1_125, %c0_126, %c0_127] : memref<2x8x128xf32, #tpu.memory_space<vmem>>, vector<1x8x128xf32>
    %555 = vector.shape_cast %554 : vector<1x8x128xf32> to vector<8x128xf32>
    %556 = vector.shape_cast %549 : vector<8x128xf32> to vector<1x8x128xf32>
    tpu.vector_store %arg10[%c1_125, %c0_126, %c0_127], %556 {strides = array<i32>} : memref<2x8x128xf32, #tpu.memory_space<vmem>>, vector<1x8x128xf32>,
    return
  }
  func.func @transform_0(%arg0: i32) -> (i32, i32) {
    %c0_i32 = arith.constant 0 : i32
    %c0_i32_0 = arith.constant 0 : i32
    %c0_i32_1 = arith.constant 0 : i32
    return %c0_i32, %c0_i32_0 : i32, i32
  }
  func.func @transform_1(%arg0: i32) -> (i32, i32, i32) {
    %c0_i32 = arith.constant 0 : i32
    %c0_i32_0 = arith.constant 0 : i32
    %c0_i32_1 = arith.constant 0 : i32
    %c0_i32_2 = arith.constant 0 : i32
    return %c0_i32, %c0_i32_0, %c0_i32_1 : i32, i32, i32
  }
  func.func @transform_2(%arg0: i32) -> (i32, i32) {
    %c0_i32 = arith.constant 0 : i32
    %c0_i32_0 = arith.constant 0 : i32
    %c0_i32_1 = arith.constant 0 : i32
    return %c0_i32, %c0_i32_0 : i32, i32
  }
  func.func @transform_3(%arg0: i32) -> (i32, i32) {
    %c0_i32 = arith.constant 0 : i32
    %c0_i32_0 = arith.constant 0 : i32
    %c0_i32_1 = arith.constant 0 : i32
    return %c0_i32, %c0_i32_0 : i32, i32
  }
  func.func @transform_4(%arg0: i32) -> (i32, i32) {
    %c0_i32 = arith.constant 0 : i32
    %c0_i32_0 = arith.constant 0 : i32
    %c0_i32_1 = arith.constant 0 : i32
    return %c0_i32, %c0_i32_0 : i32, i32
  }
  func.func @transform_5(%arg0: i32) -> (i32, i32) {
    %c0_i32 = arith.constant 0 : i32
    %c0_i32_0 = arith.constant 0 : i32
    %c0_i32_1 = arith.constant 0 : i32
    return %c0_i32, %c0_i32_0 : i32, i32
  }
  func.func @transform_6(%arg0: i32) -> (i32, i32) {
    %c0_i32 = arith.constant 0 : i32
    %c0_i32_0 = arith.constant 0 : i32
    %c0_i32_1 = arith.constant 0 : i32
    return %c0_i32, %c0_i32_0 : i32, i32
  }
  func.func @transform_7(%arg0: i32) -> (i32, i32) {
    %c0_i32 = arith.constant 0 : i32
    %c0_i32_0 = arith.constant 0 : i32
    %c0_i32_1 = arith.constant 0 : i32
    return %c0_i32, %c0_i32_0 : i32, i32
  }
  func.func @transform_8(%arg0: i32) -> (i32, i32) {
    %c0_i32 = arith.constant 0 : i32
    %c0_i32_0 = arith.constant 0 : i32
    %c0_i32_1 = arith.constant 0 : i32
    return %c0_i32, %c0_i32_0 : i32, i32
  }
  func.func @transform_9(%arg0: i32) -> (i32, i32, i32) {
    %c0_i32 = arith.constant 0 : i32
    %c0_i32_0 = arith.constant 0 : i32
    %c0_i32_1 = arith.constant 0 : i32
    %c0_i32_2 = arith.constant 0 : i32
    return %c0_i32, %c0_i32_0, %c0_i32_1 : i32, i32, i32
  }
}

</mosaic_0001>

<llo_original>
// kernel: tpu_custom_call.1
$region0: #{tpu_custom_call.1}
  #allocation0 [shape = 'u32[]', space=smem, size = 0x4, offset = 0x4, fixed_abs, tag = 'smem constant byte address 0x4 - core index']
  #allocation1 [shape = 'u32[144,128]{1,0:T(1,128)}', space=vmem, size = 0x12000, scoped, tag = 'internal scratch']
  #allocation2 [shape = 'f32[64,384]{1,0:T(8,128)}', space=vmem, size = 0x18000, scoped, tag = 'scratch operand']
  %s0 = inlined_call_operand.hbm [shape: bf16[64,256], index: 0, kind: input, shape index: {}]
  %s1 = inlined_call_operand.hbm [shape: f32[2,8,128], index: 1, kind: input, shape index: {}]
  %s2 = inlined_call_operand.hbm [shape: bf16[256,384], index: 2, kind: input, shape index: {}]
  %s3 = inlined_call_operand.vmem [shape: f32[1,384], index: 3, kind: input, shape index: {}]
  %s4 = inlined_call_operand.hbm [shape: bf16[128,768], index: 4, kind: input, shape index: {}]
  %s5 = inlined_call_operand.vmem [shape: f32[1,768], index: 5, kind: input, shape index: {}]
  %s6 = inlined_call_operand.hbm [shape: bf16[128,384], index: 6, kind: input, shape index: {}]
  %s7 = inlined_call_operand.vmem [shape: f32[1,128], index: 7, kind: input, shape index: {}]
  %s8 = inlined_call_operand.hbm [shape: f32[64,128], index: 8, kind: output, shape index: {0}]
  %s9 = inlined_call_operand.hbm [shape: f32[2,8,128], index: 9, kind: output, shape index: {1}]
  %10 = xla_tuple %s8, %s9
  %s11 = sld [smem:[#allocation0]]
  $region70: #{tpu_custom_call.1} parent=0
    _
  %s13 = ssub.s32 1, %s11
  %s14 = scalar_select 0, %s13, %s11
  $region1: #{tpu_custom_call.1} parent=0
    #allocation3 [shape = 'u8[32768]{0}', space=vmem, size = 0x8000, scoped, tag = 'input window, operand 0, single buffered']
    #allocation4 [shape = 's32[1]{0}', space=sflag, size = 0x4, scoped, tag = 'scoped memory for tpu_custom_call.1']
    #allocation5 [shape = 's32[1]{0}', space=sflag, size = 0x4, scoped, tag = 'scoped memory for tpu_custom_call.1']
    #allocation6 [shape = 'u8[8192]{0}', space=vmem, size = 0x2000, scoped, tag = 'input window, operand 1, single buffered']
    #allocation7 [shape = 's32[1]{0}', space=sflag, size = 0x4, scoped, tag = 'scoped memory for tpu_custom_call.1']
    #allocation8 [shape = 'u8[196608]{0}', space=vmem, size = 0x30000, scoped, tag = 'input window, operand 2, single buffered']
    #allocation9 [shape = 'u8[196608]{0}', space=vmem, size = 0x30000, scoped, tag = 'input window, operand 4, single buffered']
    #allocation10 [shape = 's32[1]{0}', space=sflag, size = 0x4, scoped, tag = 'scoped memory for tpu_custom_call.1']
    #allocation11 [shape = 'u8[98304]{0}', space=vmem, size = 0x18000, scoped, tag = 'input window, operand 6, single buffered']
    #allocation12 [shape = 'u8[32768]{0}', space=vmem, size = 0x8000, scoped, tag = 'output window, operand 0, single buffered']
    #allocation13 [shape = 'u8[8192]{0}', space=vmem, size = 0x2000, scoped, tag = 'output window, operand 1, single buffered']
    #allocation14 [shape = 's32[1]{0}', space=sflag, size = 0x4, scoped, tag = 'scoped memory for tpu_custom_call.1']
    %15 = vsyncpa [#allocation4], 0
    %16 = vsyncpa [#allocation7], 0
    %17 = vsyncpa [#allocation10], 0
    %18 = vsyncpa [#allocation5], 0
    %19 = vsyncpa [#allocation14], 0
    // Predicated region
    $region2: #{tpu_custom_call.1} parent=1 // pred_check
      _
    $region3: #{tpu_custom_call.1} parent=1 // pred_check_branch
      %21 = sbr.rel (0) target = $region5
    $region4: #{tpu_custom_call.1} parent=1 // pred_region
      %s23 = ssub.s32 1024, 1024
      %24 = vsyncadd [#allocation4], %s23
      %s25 = sshll.u32 [#allocation3], 4
      %s26 = int_to_ptr.vmem [resolvable:$true] %s25
      %31 = dma.hbm_to_vmem [thread:$0]  %s0, 1024, %s26, [#allocation4], 128, 128, 8
    $region5: #{tpu_custom_call.1} parent=1 // pred_fallthru
      _
    // Predicated region
    $region6: #{tpu_custom_call.1} parent=1 // pred_check
      _
    $region7: #{tpu_custom_call.1} parent=1 // pred_check_branch
      %33 = sbr.rel (0) target = $region9
    $region8: #{tpu_custom_call.1} parent=1 // pred_region
      %s35 = ssub.s32 256, 256
      %36 = vsyncadd [#allocation7], %s35
      %s37 = sshll.u32 [#allocation6], 4
      %s38 = int_to_ptr.vmem [resolvable:$true] %s37
      %43 = dma.hbm_to_vmem [thread:$0]  %s1, 256, %s38, [#allocation7], 128, 128, 8
    $region9: #{tpu_custom_call.1} parent=1 // pred_fallthru
      _
    // Predicated region
    $region10: #{tpu_custom_call.1} parent=1 // pred_check
      _
    $region11: #{tpu_custom_call.1} parent=1 // pred_check_branch
      %45 = sbr.rel (0) target = $region13
    $region12: #{tpu_custom_call.1} parent=1 // pred_region
      %s47 = ssub.s32 6144, 6144
      %48 = vsyncadd [#allocation7], %s47
      %s49 = sshll.u32 [#allocation8], 4
      %s50 = int_to_ptr.vmem [resolvable:$true] %s49
      %55 = dma.hbm_to_vmem [thread:$0]  %s2, 6144, %s50, [#allocation7], 192, 192, 12
    $region13: #{tpu_custom_call.1} parent=1 // pred_fallthru
      _
    // Predicated region
    $region14: #{tpu_custom_call.1} parent=1 // pred_check
      _
    $region15: #{tpu_custom_call.1} parent=1 // pred_check_branch
      %57 = sbr.rel (0) target = $region17
    $region16: #{tpu_custom_call.1} parent=1 // pred_region
      _
    $region17: #{tpu_custom_call.1} parent=1 // pred_fallthru
      _
    // Predicated region
    $region18: #{tpu_custom_call.1} parent=1 // pred_check
      _
    $region19: #{tpu_custom_call.1} parent=1 // pred_check_branch
      %59 = sbr.rel (0) target = $region21
    $region20: #{tpu_custom_call.1} parent=1 // pred_region
      %s61 = ssub.s32 6144, 6144
      %62 = vsyncadd [#allocation10], %s61
      %s63 = sshll.u32 [#allocation9], 4
      %s64 = int_to_ptr.vmem [resolvable:$true] %s63
      %69 = dma.hbm_to_vmem [thread:$0]  %s4, 6144, %s64, [#allocation10], 384, 384, 24
    $region21: #{tpu_custom_call.1} parent=1 // pred_fallthru
      _
    // Predicated region
    $region22: #{tpu_custom_call.1} parent=1 // pred_check
      _
    $region23: #{tpu_custom_call.1} parent=1 // pred_check_branch
      %71 = sbr.rel (0) target = $region25
    $region24: #{tpu_custom_call.1} parent=1 // pred_region
      _
    $region25: #{tpu_custom_call.1} parent=1 // pred_fallthru
      _
    // Predicated region
    $region26: #{tpu_custom_call.1} parent=1 // pred_check
      _
    $region27: #{tpu_custom_call.1} parent=1 // pred_check_branch
      %73 = sbr.rel (0) target = $region29
    $region28: #{tpu_custom_call.1} parent=1 // pred_region
      %s75 = ssub.s32 3072, 3072
      %76 = vsyncadd [#allocation10], %s75
      %s77 = sshll.u32 [#allocation11], 4
      %s78 = int_to_ptr.vmem [resolvable:$true] %s77
      %83 = dma.hbm_to_vmem [thread:$0]  %s6, 3072, %s78, [#allocation10], 192, 192, 12
    $region29: #{tpu_custom_call.1} parent=1 // pred_fallthru
      _
    // Predicated region
    $region30: #{tpu_custom_call.1} parent=1 // pred_check
      _
    $region31: #{tpu_custom_call.1} parent=1 // pred_check_branch
      %85 = sbr.rel (0) target = $region33
    $region32: #{tpu_custom_call.1} parent=1 // pred_region
      _
    $region33: #{tpu_custom_call.1} parent=1 // pred_fallthru
      _
    // Predicated region
    $region34: #{tpu_custom_call.1} parent=1 // pred_check
      _
    $region35: #{tpu_custom_call.1} parent=1 // pred_check_branch
      %87 = sbr.rel (0) target = $region37
    $region36: #{tpu_custom_call.1} parent=1 // pred_region
      %88 = dma.done [#allocation4], 1024
    $region37: #{tpu_custom_call.1} parent=1 // pred_fallthru
      _
    // Predicated region
    $region38: #{tpu_custom_call.1} parent=1 // pred_check
      _
    $region39: #{tpu_custom_call.1} parent=1 // pred_check_branch
      %90 = sbr.rel (0) target = $region41
    $region40: #{tpu_custom_call.1} parent=1 // pred_region
      %91 = dma.done [#allocation7], 256
    $region41: #{tpu_custom_call.1} parent=1 // pred_fallthru
      _
    // Predicated region
    $region42: #{tpu_custom_call.1} parent=1 // pred_check
      _
    $region43: #{tpu_custom_call.1} parent=1 // pred_check_branch
      %93 = sbr.rel (0) target = $region45
    $region44: #{tpu_custom_call.1} parent=1 // pred_region
      %94 = dma.done [#allocation7], 6144
    $region45: #{tpu_custom_call.1} parent=1 // pred_fallthru
      _
    // Predicated region
    $region46: #{tpu_custom_call.1} parent=1 // pred_check
      _
    $region47: #{tpu_custom_call.1} parent=1 // pred_check_branch
      %96 = sbr.rel (0) target = $region49
    $region48: #{tpu_custom_call.1} parent=1 // pred_region
      %97 = dma.done [#allocation10], 6144
    $region49: #{tpu_custom_call.1} parent=1 // pred_fallthru
      _
    // Predicated region
    $region50: #{tpu_custom_call.1} parent=1 // pred_check
      _
    $region51: #{tpu_custom_call.1} parent=1 // pred_check_branch
      %99 = sbr.rel (0) target = $region53
    $region52: #{tpu_custom_call.1} parent=1 // pred_region
      %100 = dma.done [#allocation10], 3072
    $region53: #{tpu_custom_call.1} parent=1 // pred_fallthru
      _
    %v102 = vld [vmem:[#allocation3] sm:$0xff]
    %v103 = vld [vmem:[#allocation3 + $0x8] sm:$0xff]
    %v104 = vld [vmem:[#allocation3 + $0x10] sm:$0xff]
    %v105 = vld [vmem:[#allocation3 + $0x18] sm:$0xff]
    %v106 = vld [vmem:[#allocation3 + $0x20] sm:$0xff]
    %v107 = vld [vmem:[#allocation3 + $0x28] sm:$0xff]
    %v108 = vld [vmem:[#allocation3 + $0x30] sm:$0xff]
    %v109 = vld [vmem:[#allocation3 + $0x38] sm:$0xff]
    %v110 = vld [vmem:[#allocation8] sm:$0xff]
    %v111 = vld [vmem:[#allocation8 + $0x8] sm:$0xf]
    %v112 = vld [vmem:[#allocation8 + $0xc] sm:$0xff]
    %v113 = vld [vmem:[#allocation8 + $0x14] sm:$0xf]
    %v114 = vld [vmem:[#allocation8 + $0x18] sm:$0xff]
    %v115 = vld [vmem:[#allocation8 + $0x20] sm:$0xf]
    %v116 = vld [vmem:[#allocation8 + $0x24] sm:$0xff]
    %v117 = vld [vmem:[#allocation8 + $0x2c] sm:$0xf]
    %v118 = vld [vmem:[#allocation8 + $0x30] sm:$0xff]
    %v119 = vld [vmem:[#allocation8 + $0x38] sm:$0xf]
    %v120 = vld [vmem:[#allocation8 + $0x3c] sm:$0xff]
    %v121 = vld [vmem:[#allocation8 + $0x44] sm:$0xf]
    %v122 = vld [vmem:[#allocation8 + $0x48] sm:$0xff]
    %v123 = vld [vmem:[#allocation8 + $0x50] sm:$0xf]
    %v124 = vld [vmem:[#allocation8 + $0x54] sm:$0xff]
    %v125 = vld [vmem:[#allocation8 + $0x5c] sm:$0xf]
    %v126 = vld [vmem:[#allocation8 + $0x60] sm:$0xff]
    %v127 = vld [vmem:[#allocation8 + $0x68] sm:$0xf]
    %v128 = vld [vmem:[#allocation8 + $0x6c] sm:$0xff]
    %v129 = vld [vmem:[#allocation8 + $0x74] sm:$0xf]
    %v130 = vld [vmem:[#allocation8 + $0x78] sm:$0xff]
    %v131 = vld [vmem:[#allocation8 + $0x80] sm:$0xf]
    %v132 = vld [vmem:[#allocation8 + $0x84] sm:$0xff]
    %v133 = vld [vmem:[#allocation8 + $0x8c] sm:$0xf]
    %v134 = vld [vmem:[#allocation8 + $0x90] sm:$0xff]
    %v135 = vld [vmem:[#allocation8 + $0x98] sm:$0xf]
    %v136 = vld [vmem:[#allocation8 + $0x9c] sm:$0xff]
    %v137 = vld [vmem:[#allocation8 + $0xa4] sm:$0xf]
    %v138 = vld [vmem:[#allocation8 + $0xa8] sm:$0xff]
    %v139 = vld [vmem:[#allocation8 + $0xb0] sm:$0xf]
    %v140 = vld [vmem:[#allocation8 + $0xb4] sm:$0xff]
    %v141 = vld [vmem:[#allocation8 + $0xbc] sm:$0xf]
    %v142 = vld [vmem:[#allocation8 + $0xc0] sm:$0xff]
    %v143 = vld [vmem:[#allocation8 + $0xc8] sm:$0xf]
    %v144 = vld [vmem:[#allocation8 + $0xcc] sm:$0xff]
    %v145 = vld [vmem:[#allocation8 + $0xd4] sm:$0xf]
    %v146 = vld [vmem:[#allocation8 + $0xd8] sm:$0xff]
    %v147 = vld [vmem:[#allocation8 + $0xe0] sm:$0xf]
    %v148 = vld [vmem:[#allocation8 + $0xe4] sm:$0xff]
    %v149 = vld [vmem:[#allocation8 + $0xec] sm:$0xf]
    %v150 = vld [vmem:[#allocation8 + $0xf0] sm:$0xff]
    %v151 = vld [vmem:[#allocation8 + $0xf8] sm:$0xf]
    %v152 = vld [vmem:[#allocation8 + $0xfc] sm:$0xff]
    %v153 = vld [vmem:[#allocation8 + $0x104] sm:$0xf]
    %v154 = vld [vmem:[#allocation8 + $0x108] sm:$0xff]
    %v155 = vld [vmem:[#allocation8 + $0x110] sm:$0xf]
    %v156 = vld [vmem:[#allocation8 + $0x114] sm:$0xff]
    %v157 = vld [vmem:[#allocation8 + $0x11c] sm:$0xf]
    %v158 = vld [vmem:[#allocation8 + $0x120] sm:$0xff]
    %v159 = vld [vmem:[#allocation8 + $0x128] sm:$0xf]
    %v160 = vld [vmem:[#allocation8 + $0x12c] sm:$0xff]
    %v161 = vld [vmem:[#allocation8 + $0x134] sm:$0xf]
    %v162 = vld [vmem:[#allocation8 + $0x138] sm:$0xff]
    %v163 = vld [vmem:[#allocation8 + $0x140] sm:$0xf]
    %v164 = vld [vmem:[#allocation8 + $0x144] sm:$0xff]
    %v165 = vld [vmem:[#allocation8 + $0x14c] sm:$0xf]
    %v166 = vld [vmem:[#allocation8 + $0x150] sm:$0xff]
    %v167 = vld [vmem:[#allocation8 + $0x158] sm:$0xf]
    %v168 = vld [vmem:[#allocation8 + $0x15c] sm:$0xff]
    %v169 = vld [vmem:[#allocation8 + $0x164] sm:$0xf]
    %v170 = vld [vmem:[#allocation8 + $0x168] sm:$0xff]
    %v171 = vld [vmem:[#allocation8 + $0x170] sm:$0xf]
    %v172 = vld [vmem:[#allocation8 + $0x174] sm:$0xff]
    %v173 = vld [vmem:[#allocation8 + $0x17c] sm:$0xf]
    %v174 = vld [vmem:[%s3] sm:$0x7]
    %v176 = vlaneseq
    %v177 = vshrl.u32 %v176, 7
    %v178 = vsub.s32 0, %v177
    %v179 = vrot.slane %v174, %v178
    %v180 = vlaneseq
    %v181 = vshrl.u32 %v180, 7
    %v182 = vsub.s32 1, %v181
    %v183 = vrot.slane %v174, %v182
    %v184 = vlaneseq
    %v185 = vshrl.u32 %v184, 7
    %v186 = vsub.s32 2, %v185
    %v187 = vrot.slane %v174, %v186
    %v199 = vunpack.c.l.b16 %v102
    %v200 = vunpack.c.h.b16 %v102
    %v201 = vunpack.c.l.b16 %v103
    %v202 = vunpack.c.h.b16 %v103
    %v203 = vunpack.c.l.b16 %v104
    %v204 = vunpack.c.h.b16 %v104
    %v205 = vunpack.c.l.b16 %v105
    %v206 = vunpack.c.h.b16 %v105
    %v207 = vunpack.c.l.b16 %v106
    %v208 = vunpack.c.h.b16 %v106
    %v209 = vunpack.c.l.b16 %v107
    %v210 = vunpack.c.h.b16 %v107
    %v211 = vunpack.c.l.b16 %v108
    %v212 = vunpack.c.h.b16 %v108
    %v213 = vunpack.c.l.b16 %v109
    %v214 = vunpack.c.h.b16 %v109
    %v215 = vpack.c.b16 %v201, %v199
    %v216 = vpack.c.b16 %v202, %v200
    %v217 = vpack.c.b16 %v205, %v203
    %v218 = vpack.c.b16 %v206, %v204
    %v219 = vpack.c.b16 %v209, %v207
    %v220 = vpack.c.b16 %v210, %v208
    %v221 = vpack.c.b16 %v213, %v211
    %v222 = vpack.c.b16 %v214, %v212
    %v295 = vunpack.c.l.b16 %v110
    %v296 = vunpack.c.h.b16 %v110
    %v297 = vunpack.c.l.b16 %v111
    %v298 = vunpack.c.l.b16 %v112
    %v299 = vunpack.c.h.b16 %v112
    %v300 = vunpack.c.l.b16 %v113
    %v301 = vunpack.c.l.b16 %v114
    %v302 = vunpack.c.h.b16 %v114
    %v303 = vunpack.c.l.b16 %v115
    %v304 = vunpack.c.l.b16 %v116
    %v305 = vunpack.c.h.b16 %v116
    %v306 = vunpack.c.l.b16 %v117
    %v307 = vunpack.c.l.b16 %v118
    %v308 = vunpack.c.h.b16 %v118
    %v309 = vunpack.c.l.b16 %v119
    %v310 = vunpack.c.l.b16 %v120
    %v311 = vunpack.c.h.b16 %v120
    %v312 = vunpack.c.l.b16 %v121
    %v313 = vunpack.c.l.b16 %v122
    %v314 = vunpack.c.h.b16 %v122
    %v315 = vunpack.c.l.b16 %v123
    %v316 = vunpack.c.l.b16 %v124
    %v317 = vunpack.c.h.b16 %v124
    %v318 = vunpack.c.l.b16 %v125
    %v319 = vunpack.c.l.b16 %v126
    %v320 = vunpack.c.h.b16 %v126
    %v321 = vunpack.c.l.b16 %v127
    %v322 = vunpack.c.l.b16 %v128
    %v323 = vunpack.c.h.b16 %v128
    %v324 = vunpack.c.l.b16 %v129
    %v325 = vunpack.c.l.b16 %v130
    %v326 = vunpack.c.h.b16 %v130
    %v327 = vunpack.c.l.b16 %v131
    %v328 = vunpack.c.l.b16 %v132
    %v329 = vunpack.c.h.b16 %v132
    %v330 = vunpack.c.l.b16 %v133
    %v331 = vunpack.c.l.b16 %v134
    %v332 = vunpack.c.h.b16 %v134
    %v333 = vunpack.c.l.b16 %v135
    %v334 = vunpack.c.l.b16 %v136
    %v335 = vunpack.c.h.b16 %v136
    %v336 = vunpack.c.l.b16 %v137
    %v337 = vunpack.c.l.b16 %v138
    %v338 = vunpack.c.h.b16 %v138
    %v339 = vunpack.c.l.b16 %v139
    %v340 = vunpack.c.l.b16 %v140
    %v341 = vunpack.c.h.b16 %v140
    %v342 = vunpack.c.l.b16 %v141
    %v343 = vunpack.c.l.b16 %v142
    %v344 = vunpack.c.h.b16 %v142
    %v345 = vunpack.c.l.b16 %v143
    %v346 = vunpack.c.l.b16 %v144
    %v347 = vunpack.c.h.b16 %v144
    %v348 = vunpack.c.l.b16 %v145
    %v349 = vunpack.c.l.b16 %v146
    %v350 = vunpack.c.h.b16 %v146
    %v351 = vunpack.c.l.b16 %v147
    %v352 = vunpack.c.l.b16 %v148
    %v353 = vunpack.c.h.b16 %v148
    %v354 = vunpack.c.l.b16 %v149
    %v355 = vunpack.c.l.b16 %v150
    %v356 = vunpack.c.h.b16 %v150
    %v357 = vunpack.c.l.b16 %v151
    %v358 = vunpack.c.l.b16 %v152
    %v359 = vunpack.c.h.b16 %v152
    %v360 = vunpack.c.l.b16 %v153
    %v361 = vunpack.c.l.b16 %v154
    %v362 = vunpack.c.h.b16 %v154
    %v363 = vunpack.c.l.b16 %v155
    %v364 = vunpack.c.l.b16 %v156
    %v365 = vunpack.c.h.b16 %v156
    %v366 = vunpack.c.l.b16 %v157
    %v367 = vunpack.c.l.b16 %v158
    %v368 = vunpack.c.h.b16 %v158
    %v369 = vunpack.c.l.b16 %v159
    %v370 = vunpack.c.l.b16 %v160
    %v371 = vunpack.c.h.b16 %v160
    %v372 = vunpack.c.l.b16 %v161
    %v373 = vunpack.c.l.b16 %v162
    %v374 = vunpack.c.h.b16 %v162
    %v375 = vunpack.c.l.b16 %v163
    %v376 = vunpack.c.l.b16 %v164
    %v377 = vunpack.c.h.b16 %v164
    %v378 = vunpack.c.l.b16 %v165
    %v379 = vunpack.c.l.b16 %v166
    %v380 = vunpack.c.h.b16 %v166
    %v381 = vunpack.c.l.b16 %v167
    %v382 = vunpack.c.l.b16 %v168
    %v383 = vunpack.c.h.b16 %v168
    %v384 = vunpack.c.l.b16 %v169
    %v385 = vunpack.c.l.b16 %v170
    %v386 = vunpack.c.h.b16 %v170
    %v387 = vunpack.c.l.b16 %v171
    %v388 = vunpack.c.l.b16 %v172
    %v389 = vunpack.c.h.b16 %v172
    %v390 = vunpack.c.l.b16 %v173
    %v391 = vpack.c.b16 %v298, %v295
    %v392 = vpack.c.b16 %v299, %v296
    %v393 = vpack.c.b16 %v300, %v297
    %v394 = vpack.c.b16 %v304, %v301
    %v395 = vpack.c.b16 %v305, %v302
    %v396 = vpack.c.b16 %v306, %v303
    %v397 = vpack.c.b16 %v310, %v307
    %v398 = vpack.c.b16 %v311, %v308
    %v399 = vpack.c.b16 %v312, %v309
    %v400 = vpack.c.b16 %v316, %v313
    %v401 = vpack.c.b16 %v317, %v314
    %v402 = vpack.c.b16 %v318, %v315
    %v403 = vpack.c.b16 %v322, %v319
    %v404 = vpack.c.b16 %v323, %v320
    %v405 = vpack.c.b16 %v324, %v321
    %v406 = vpack.c.b16 %v328, %v325
    %v407 = vpack.c.b16 %v329, %v326
    %v408 = vpack.c.b16 %v330, %v327
    %v409 = vpack.c.b16 %v334, %v331
    %v410 = vpack.c.b16 %v335, %v332
    %v411 = vpack.c.b16 %v336, %v333
    %v412 = vpack.c.b16 %v340, %v337
    %v413 = vpack.c.b16 %v341, %v338
    %v414 = vpack.c.b16 %v342, %v339
    %v415 = vpack.c.b16 %v346, %v343
    %v416 = vpack.c.b16 %v347, %v344
    %v417 = vpack.c.b16 %v348, %v345
    %v418 = vpack.c.b16 %v352, %v349
    %v419 = vpack.c.b16 %v353, %v350
    %v420 = vpack.c.b16 %v354, %v351
    %v421 = vpack.c.b16 %v358, %v355
    %v422 = vpack.c.b16 %v359, %v356
    %v423 = vpack.c.b16 %v360, %v357
    %v424 = vpack.c.b16 %v364, %v361
    %v425 = vpack.c.b16 %v365, %v362
    %v426 = vpack.c.b16 %v366, %v363
    %v427 = vpack.c.b16 %v370, %v367
    %v428 = vpack.c.b16 %v371, %v368
    %v429 = vpack.c.b16 %v372, %v369
    %v430 = vpack.c.b16 %v376, %v373
    %v431 = vpack.c.b16 %v377, %v374
    %v432 = vpack.c.b16 %v378, %v375
    %v433 = vpack.c.b16 %v382, %v379
    %v434 = vpack.c.b16 %v383, %v380
    %v435 = vpack.c.b16 %v384, %v381
    %v436 = vpack.c.b16 %v388, %v385
    %v437 = vpack.c.b16 %v389, %v386
    %v438 = vpack.c.b16 %v390, %v387
    %487 = vmatprep.subr.bf16.mxu0 %v392
    %488 = vmatpush1.bf16.msra.mxu0 %v391
    %489 = vmatprep.subr.bf16.mxu0 %v395
    %490 = vmatpush1.bf16.msra.mxu0 %v394
    %491 = vmatprep.subr.bf16.mxu0 %v398
    %492 = vmatpush1.bf16.msra.mxu0 %v397
    %493 = vmatprep.subr.bf16.mxu0 %v401
    %494 = vmatpush1.bf16.msra.mxu0 %v400
    %495 = vmatprep.subr.bf16.mxu0 %v404
    %496 = vmatpush1.bf16.msra.mxu0 %v403
    %497 = vmatprep.subr.bf16.mxu0 %v407
    %498 = vmatpush1.bf16.msra.mxu0 %v406
    %499 = vmatprep.subr.bf16.mxu0 %v410
    %500 = vmatpush1.bf16.msra.mxu0 %v409
    %501 = vmatprep.subr.bf16.mxu0 %v413
    %502 = vmatpush1.bf16.msra.mxu0 %v412
    %503 = vmatprep.subr.bf16.mxu0 %v416
    %504 = vmatpush1.bf16.msra.mxu0 %v415
    %505 = vmatprep.subr.bf16.mxu0 %v419
    %506 = vmatpush1.bf16.msra.mxu0 %v418
    %507 = vmatprep.subr.bf16.mxu0 %v422
    %508 = vmatpush1.bf16.msra.mxu0 %v421
    %509 = vmatprep.subr.bf16.mxu0 %v425
    %510 = vmatpush1.bf16.msra.mxu0 %v424
    %511 = vmatprep.subr.bf16.mxu0 %v428
    %512 = vmatpush1.bf16.msra.mxu0 %v427
    %513 = vmatprep.subr.bf16.mxu0 %v431
    %514 = vmatpush1.bf16.msra.mxu0 %v430
    %515 = vmatprep.subr.bf16.mxu0 %v434
    %516 = vmatpush1.bf16.msra.mxu0 %v433
    %517 = vmatprep.subr.bf16.mxu0 %v437
    %518 = vmatpush1.bf16.msra.mxu0 %v436
    %519 = vmatprep.mubr.bf16.mxu0 %v216
    %520 = vmatmul.mubr.bf16.gmra.mrb[0].mxu0 %v215
    %v521 = vpop.f32.mrb[0].mxu0
    %v522 = vadd.f32 %v179, %v521
    %v523 = vpop.f32.mrb[0].mxu0
    %v524 = vadd.f32 %v183, %v523
    %v525 = vpop.f32.mrb[0].mxu0
    %v526 = vadd.f32 %v179, %v525
    %v527 = vpop.f32.mrb[0].mxu0
    %v528 = vadd.f32 %v183, %v527
    %529 = vmatprep.mubr.bf16.mxu0 %v218
    %530 = vmatmul.mubr.bf16.gmra.mrb[0].mxu0 %v217
    %v531 = vpop.f32.mrb[0].mxu0
    %v532 = vadd.f32 %v179, %v531
    %v533 = vpop.f32.mrb[0].mxu0
    %v534 = vadd.f32 %v183, %v533
    %v535 = vpop.f32.mrb[0].mxu0
    %v536 = vadd.f32 %v179, %v535
    %v537 = vpop.f32.mrb[0].mxu0
    %v538 = vadd.f32 %v183, %v537
    %539 = vmatprep.mubr.bf16.mxu0 %v220
    %540 = vmatmul.mubr.bf16.gmra.mrb[0].mxu0 %v219
    %v541 = vpop.f32.mrb[0].mxu0
    %v542 = vadd.f32 %v179, %v541
    %v543 = vpop.f32.mrb[0].mxu0
    %v544 = vadd.f32 %v183, %v543
    %v545 = vpop.f32.mrb[0].mxu0
    %v546 = vadd.f32 %v179, %v545
    %v547 = vpop.f32.mrb[0].mxu0
    %v548 = vadd.f32 %v183, %v547
    %549 = vmatprep.mubr.bf16.mxu0 %v222
    %550 = vmatmul.mubr.bf16.gmra.mrb[0].mxu0 %v221
    %v551 = vpop.f32.mrb[0].mxu0
    %v552 = vadd.f32 %v179, %v551
    %v553 = vpop.f32.mrb[0].mxu0
    %v554 = vadd.f32 %v183, %v553
    %v555 = vpop.f32.mrb[0].mxu0
    %v556 = vadd.f32 %v179, %v555
    %v557 = vpop.f32.mrb[0].mxu0
    %v558 = vadd.f32 %v183, %v557
    %559 = vdwg.mxu0
    %560 = vmatprep.subr.bf16.mxu0 0
    %561 = vmatpush1.bf16.msra.mxu0 %v393
    %562 = vmatprep.subr.bf16.mxu0 0
    %563 = vmatpush1.bf16.msra.mxu0 %v396
    %564 = vmatprep.subr.bf16.mxu0 0
    %565 = vmatpush1.bf16.msra.mxu0 %v399
    %566 = vmatprep.subr.bf16.mxu0 0
    %567 = vmatpush1.bf16.msra.mxu0 %v402
    %568 = vmatprep.subr.bf16.mxu0 0
    %569 = vmatpush1.bf16.msra.mxu0 %v405
    %570 = vmatprep.subr.bf16.mxu0 0
    %571 = vmatpush1.bf16.msra.mxu0 %v408
    %572 = vmatprep.subr.bf16.mxu0 0
    %573 = vmatpush1.bf16.msra.mxu0 %v411
    %574 = vmatprep.subr.bf16.mxu0 0
    %575 = vmatpush1.bf16.msra.mxu0 %v414
    %576 = vmatprep.subr.bf16.mxu0 0
    %577 = vmatpush1.bf16.msra.mxu0 %v417
    %578 = vmatprep.subr.bf16.mxu0 0
    %579 = vmatpush1.bf16.msra.mxu0 %v420
    %580 = vmatprep.subr.bf16.mxu0 0
    %581 = vmatpush1.bf16.msra.mxu0 %v423
    %582 = vmatprep.subr.bf16.mxu0 0
    %583 = vmatpush1.bf16.msra.mxu0 %v426
    %584 = vmatprep.subr.bf16.mxu0 0
    %585 = vmatpush1.bf16.msra.mxu0 %v429
    %586 = vmatprep.subr.bf16.mxu0 0
    %587 = vmatpush1.bf16.msra.mxu0 %v432
    %588 = vmatprep.subr.bf16.mxu0 0
    %589 = vmatpush1.bf16.msra.mxu0 %v435
    %590 = vmatprep.subr.bf16.mxu0 0
    %591 = vmatpush1.bf16.msra.mxu0 %v438
    %592 = vmatprep.mubr.bf16.mxu0 %v216
    %593 = vmatmul.mubr.bf16.gmra.mrb[0].mxu0 %v215
    %v594 = vpop.f32.mrb[0].mxu0
    %v595 = vadd.f32 %v187, %v594
    %v596 = vpop.f32.mrb[0].mxu0
    %v597 = vpop.f32.mrb[0].mxu0
    %v598 = vadd.f32 %v187, %v597
    %v599 = vpop.f32.mrb[0].mxu0
    %600 = vmatprep.mubr.bf16.mxu0 %v218
    %601 = vmatmul.mubr.bf16.gmra.mrb[0].mxu0 %v217
    %v602 = vpop.f32.mrb[0].mxu0
    %v603 = vadd.f32 %v187, %v602
    %v604 = vpop.f32.mrb[0].mxu0
    %v605 = vpop.f32.mrb[0].mxu0
    %v606 = vadd.f32 %v187, %v605
    %v607 = vpop.f32.mrb[0].mxu0
    %608 = vmatprep.mubr.bf16.mxu0 %v220
    %609 = vmatmul.mubr.bf16.gmra.mrb[0].mxu0 %v219
    %v610 = vpop.f32.mrb[0].mxu0
    %v611 = vadd.f32 %v187, %v610
    %v612 = vpop.f32.mrb[0].mxu0
    %v613 = vpop.f32.mrb[0].mxu0
    %v614 = vadd.f32 %v187, %v613
    %v615 = vpop.f32.mrb[0].mxu0
    %616 = vmatprep.mubr.bf16.mxu0 %v222
    %617 = vmatmul.mubr.bf16.gmra.mrb[0].mxu0 %v221
    %v618 = vpop.f32.mrb[0].mxu0
    %v619 = vadd.f32 %v187, %v618
    %v620 = vpop.f32.mrb[0].mxu0
    %v621 = vpop.f32.mrb[0].mxu0
    %v622 = vadd.f32 %v187, %v621
    %v623 = vpop.f32.mrb[0].mxu0
    %624 = vdwg.mxu0
    %625 = vst [vmem:[#allocation2] sm:$0xff] %v522
    %626 = vst [vmem:[#allocation2 + $0x8] sm:$0xff] %v524
    %627 = vst [vmem:[#allocation2 + $0x10] sm:$0xff] %v595
    %628 = vst [vmem:[#allocation2 + $0x18] sm:$0xff] %v526
    %629 = vst [vmem:[#allocation2 + $0x20] sm:$0xff] %v528
    %630 = vst [vmem:[#allocation2 + $0x28] sm:$0xff] %v598
    %631 = vst [vmem:[#allocation2 + $0x30] sm:$0xff] %v532
    %632 = vst [vmem:[#allocation2 + $0x38] sm:$0xff] %v534
    %633 = vst [vmem:[#allocation2 + $0x40] sm:$0xff] %v603
    %634 = vst [vmem:[#allocation2 + $0x48] sm:$0xff] %v536
    %635 = vst [vmem:[#allocation2 + $0x50] sm:$0xff] %v538
    %636 = vst [vmem:[#allocation2 + $0x58] sm:$0xff] %v606
    %637 = vst [vmem:[#allocation2 + $0x60] sm:$0xff] %v542
    %638 = vst [vmem:[#allocation2 + $0x68] sm:$0xff] %v544
    %639 = vst [vmem:[#allocation2 + $0x70] sm:$0xff] %v611
    %640 = vst [vmem:[#allocation2 + $0x78] sm:$0xff] %v546
    %641 = vst [vmem:[#allocation2 + $0x80] sm:$0xff] %v548
    %642 = vst [vmem:[#allocation2 + $0x88] sm:$0xff] %v614
    %643 = vst [vmem:[#allocation2 + $0x90] sm:$0xff] %v552
    %644 = vst [vmem:[#allocation2 + $0x98] sm:$0xff] %v554
    %645 = vst [vmem:[#allocation2 + $0xa0] sm:$0xff] %v619
    %646 = vst [vmem:[#allocation2 + $0xa8] sm:$0xff] %v556
    %647 = vst [vmem:[#allocation2 + $0xb0] sm:$0xff] %v558
    %648 = vst [vmem:[#allocation2 + $0xb8] sm:$0xff] %v622
    %v649 = vld [vmem:[#allocation9] sm:$0xff]
    %v650 = vld [vmem:[#allocation9 + $0x8] sm:$0xff]
    %v651 = vld [vmem:[#allocation9 + $0x10] sm:$0xff]
    %v652 = vld [vmem:[#allocation9 + $0x18] sm:$0xff]
    %v653 = vld [vmem:[#allocation9 + $0x20] sm:$0xff]
    %v654 = vld [vmem:[#allocation9 + $0x28] sm:$0xff]
    %v655 = vld [vmem:[#allocation9 + $0x30] sm:$0xff]
    %v656 = vld [vmem:[#allocation9 + $0x38] sm:$0xff]
    %v657 = vld [vmem:[#allocation9 + $0x40] sm:$0xff]
    %v658 = vld [vmem:[#allocation9 + $0x48] sm:$0xff]
    %v659 = vld [vmem:[#allocation9 + $0x50] sm:$0xff]
    %v660 = vld [vmem:[#allocation9 + $0x58] sm:$0xff]
    %v661 = vld [vmem:[#allocation9 + $0x60] sm:$0xff]
    %v662 = vld [vmem:[#allocation9 + $0x68] sm:$0xff]
    %v663 = vld [vmem:[#allocation9 + $0x70] sm:$0xff]
    %v664 = vld [vmem:[#allocation9 + $0x78] sm:$0xff]
    %v665 = vld [vmem:[#allocation9 + $0x80] sm:$0xff]
    %v666 = vld [vmem:[#allocation9 + $0x88] sm:$0xff]
    %v667 = vld [vmem:[#allocation9 + $0x90] sm:$0xff]
    %v668 = vld [vmem:[#allocation9 + $0x98] sm:$0xff]
    %v669 = vld [vmem:[#allocation9 + $0xa0] sm:$0xff]
    %v670 = vld [vmem:[#allocation9 + $0xa8] sm:$0xff]
    %v671 = vld [vmem:[#allocation9 + $0xb0] sm:$0xff]
    %v672 = vld [vmem:[#allocation9 + $0xb8] sm:$0xff]
    %v673 = vld [vmem:[#allocation9 + $0xc0] sm:$0xff]
    %v674 = vld [vmem:[#allocation9 + $0xc8] sm:$0xff]
    %v675 = vld [vmem:[#allocation9 + $0xd0] sm:$0xff]
    %v676 = vld [vmem:[#allocation9 + $0xd8] sm:$0xff]
    %v677 = vld [vmem:[#allocation9 + $0xe0] sm:$0xff]
    %v678 = vld [vmem:[#allocation9 + $0xe8] sm:$0xff]
    %v679 = vld [vmem:[#allocation9 + $0xf0] sm:$0xff]
    %v680 = vld [vmem:[#allocation9 + $0xf8] sm:$0xff]
    %v681 = vld [vmem:[#allocation9 + $0x100] sm:$0xff]
    %v682 = vld [vmem:[#allocation9 + $0x108] sm:$0xff]
    %v683 = vld [vmem:[#allocation9 + $0x110] sm:$0xff]
    %v684 = vld [vmem:[#allocation9 + $0x118] sm:$0xff]
    %v685 = vld [vmem:[#allocation9 + $0x120] sm:$0xff]
    %v686 = vld [vmem:[#allocation9 + $0x128] sm:$0xff]
    %v687 = vld [vmem:[#allocation9 + $0x130] sm:$0xff]
    %v688 = vld [vmem:[#allocation9 + $0x138] sm:$0xff]
    %v689 = vld [vmem:[#allocation9 + $0x140] sm:$0xff]
    %v690 = vld [vmem:[#allocation9 + $0x148] sm:$0xff]
    %v691 = vld [vmem:[#allocation9 + $0x150] sm:$0xff]
    %v692 = vld [vmem:[#allocation9 + $0x158] sm:$0xff]
    %v693 = vld [vmem:[#allocation9 + $0x160] sm:$0xff]
    %v694 = vld [vmem:[#allocation9 + $0x168] sm:$0xff]
    %v695 = vld [vmem:[#allocation9 + $0x170] sm:$0xff]
    %v696 = vld [vmem:[#allocation9 + $0x178] sm:$0xff]
    %v697 = vld [vmem:[#allocation11] sm:$0xff]
    %v698 = vld [vmem:[#allocation11 + $0x8] sm:$0xf]
    %v699 = vld [vmem:[#allocation11 + $0xc] sm:$0xff]
    %v700 = vld [vmem:[#allocation11 + $0x14] sm:$0xf]
    %v701 = vld [vmem:[#allocation11 + $0x18] sm:$0xff]
    %v702 = vld [vmem:[#allocation11 + $0x20] sm:$0xf]
    %v703 = vld [vmem:[#allocation11 + $0x24] sm:$0xff]
    %v704 = vld [vmem:[#allocation11 + $0x2c] sm:$0xf]
    %v705 = vld [vmem:[#allocation11 + $0x30] sm:$0xff]
    %v706 = vld [vmem:[#allocation11 + $0x38] sm:$0xf]
    %v707 = vld [vmem:[#allocation11 + $0x3c] sm:$0xff]
    %v708 = vld [vmem:[#allocation11 + $0x44] sm:$0xf]
    %v709 = vld [vmem:[#allocation11 + $0x48] sm:$0xff]
    %v710 = vld [vmem:[#allocation11 + $0x50] sm:$0xf]
    %v711 = vld [vmem:[#allocation11 + $0x54] sm:$0xff]
    %v712 = vld [vmem:[#allocation11 + $0x5c] sm:$0xf]
    %v713 = vld [vmem:[#allocation11 + $0x60] sm:$0xff]
    %v714 = vld [vmem:[#allocation11 + $0x68] sm:$0xf]
    %v715 = vld [vmem:[#allocation11 + $0x6c] sm:$0xff]
    %v716 = vld [vmem:[#allocation11 + $0x74] sm:$0xf]
    %v717 = vld [vmem:[#allocation11 + $0x78] sm:$0xff]
    %v718 = vld [vmem:[#allocation11 + $0x80] sm:$0xf]
    %v719 = vld [vmem:[#allocation11 + $0x84] sm:$0xff]
    %v720 = vld [vmem:[#allocation11 + $0x8c] sm:$0xf]
    %v721 = vld [vmem:[#allocation11 + $0x90] sm:$0xff]
    %v722 = vld [vmem:[#allocation11 + $0x98] sm:$0xf]
    %v723 = vld [vmem:[#allocation11 + $0x9c] sm:$0xff]
    %v724 = vld [vmem:[#allocation11 + $0xa4] sm:$0xf]
    %v725 = vld [vmem:[#allocation11 + $0xa8] sm:$0xff]
    %v726 = vld [vmem:[#allocation11 + $0xb0] sm:$0xf]
    %v727 = vld [vmem:[#allocation11 + $0xb4] sm:$0xff]
    %v728 = vld [vmem:[#allocation11 + $0xbc] sm:$0xf]
    %v729 = vld [vmem:[%s5] sm:$0x3f]
    %v731 = vlaneseq
    %v732 = vshrl.u32 %v731, 7
    %v733 = vsub.s32 0, %v732
    %v734 = vrot.slane %v729, %v733
    %v735 = vlaneseq
    %v736 = vshrl.u32 %v735, 7
    %v737 = vsub.s32 1, %v736
    %v738 = vrot.slane %v729, %v737
    %v739 = vlaneseq
    %v740 = vshrl.u32 %v739, 7
    %v741 = vsub.s32 2, %v740
    %v742 = vrot.slane %v729, %v741
    %v743 = vlaneseq
    %v744 = vshrl.u32 %v743, 7
    %v745 = vsub.s32 3, %v744
    %v746 = vrot.slane %v729, %v745
    %v747 = vlaneseq
    %v748 = vshrl.u32 %v747, 7
    %v749 = vsub.s32 4, %v748
    %v750 = vrot.slane %v729, %v749
    %v751 = vlaneseq
    %v752 = vshrl.u32 %v751, 7
    %v753 = vsub.s32 5, %v752
    %v754 = vrot.slane %v729, %v753
    %v761 = vld [vmem:[%s7] sm:$0x1]
    %v763 = vlaneseq
    %v764 = vshrl.u32 %v763, 7
    %v765 = vsub.s32 0, %v764
    %v766 = vrot.slane %v761, %v765
    %v768 = vld [vmem:[#allocation6] sm:$0xff]
    %v769 = vpack.c.bf16 %v768, %v768
    %v802 = vunpack.c.l.b16 %v649
    %v803 = vunpack.c.h.b16 %v649
    %v804 = vunpack.c.l.b16 %v650
    %v805 = vunpack.c.h.b16 %v650
    %v806 = vunpack.c.l.b16 %v652
    %v807 = vunpack.c.h.b16 %v652
    %v808 = vunpack.c.l.b16 %v653
    %v809 = vunpack.c.h.b16 %v653
    %v810 = vunpack.c.l.b16 %v655
    %v811 = vunpack.c.h.b16 %v655
    %v812 = vunpack.c.l.b16 %v656
    %v813 = vunpack.c.h.b16 %v656
    %v814 = vunpack.c.l.b16 %v658
    %v815 = vunpack.c.h.b16 %v658
    %v816 = vunpack.c.l.b16 %v659
    %v817 = vunpack.c.h.b16 %v659
    %v818 = vunpack.c.l.b16 %v661
    %v819 = vunpack.c.h.b16 %v661
    %v820 = vunpack.c.l.b16 %v662
    %v821 = vunpack.c.h.b16 %v662
    %v822 = vunpack.c.l.b16 %v664
    %v823 = vunpack.c.h.b16 %v664
    %v824 = vunpack.c.l.b16 %v665
    %v825 = vunpack.c.h.b16 %v665
    %v826 = vunpack.c.l.b16 %v667
    %v827 = vunpack.c.h.b16 %v667
    %v828 = vunpack.c.l.b16 %v668
    %v829 = vunpack.c.h.b16 %v668
    %v830 = vunpack.c.l.b16 %v670
    %v831 = vunpack.c.h.b16 %v670
    %v832 = vunpack.c.l.b16 %v671
    %v833 = vunpack.c.h.b16 %v671
    %v834 = vunpack.c.l.b16 %v673
    %v835 = vunpack.c.h.b16 %v673
    %v836 = vunpack.c.l.b16 %v674
    %v837 = vunpack.c.h.b16 %v674
    %v838 = vunpack.c.l.b16 %v676
    %v839 = vunpack.c.h.b16 %v676
    %v840 = vunpack.c.l.b16 %v677
    %v841 = vunpack.c.h.b16 %v677
    %v842 = vunpack.c.l.b16 %v679
    %v843 = vunpack.c.h.b16 %v679
    %v844 = vunpack.c.l.b16 %v680
    %v845 = vunpack.c.h.b16 %v680
    %v846 = vunpack.c.l.b16 %v682
    %v847 = vunpack.c.h.b16 %v682
    %v848 = vunpack.c.l.b16 %v683
    %v849 = vunpack.c.h.b16 %v683
    %v850 = vunpack.c.l.b16 %v685
    %v851 = vunpack.c.h.b16 %v685
    %v852 = vunpack.c.l.b16 %v686
    %v853 = vunpack.c.h.b16 %v686
    %v854 = vunpack.c.l.b16 %v688
    %v855 = vunpack.c.h.b16 %v688
    %v856 = vunpack.c.l.b16 %v689
    %v857 = vunpack.c.h.b16 %v689
    %v858 = vunpack.c.l.b16 %v691
    %v859 = vunpack.c.h.b16 %v691
    %v860 = vunpack.c.l.b16 %v692
    %v861 = vunpack.c.h.b16 %v692
    %v862 = vunpack.c.l.b16 %v694
    %v863 = vunpack.c.h.b16 %v694
    %v864 = vunpack.c.l.b16 %v695
    %v865 = vunpack.c.h.b16 %v695
    %v866 = vpack.c.b16 %v806, %v802
    %v867 = vpack.c.b16 %v807, %v803
    %v868 = vpack.c.b16 %v808, %v804
    %v869 = vpack.c.b16 %v809, %v805
    %v870 = vpack.c.b16 %v814, %v810
    %v871 = vpack.c.b16 %v815, %v811
    %v872 = vpack.c.b16 %v816, %v812
    %v873 = vpack.c.b16 %v817, %v813
    %v874 = vpack.c.b16 %v822, %v818
    %v875 = vpack.c.b16 %v823, %v819
    %v876 = vpack.c.b16 %v824, %v820
    %v877 = vpack.c.b16 %v825, %v821
    %v878 = vpack.c.b16 %v830, %v826
    %v879 = vpack.c.b16 %v831, %v827
    %v880 = vpack.c.b16 %v832, %v828
    %v881 = vpack.c.b16 %v833, %v829
    %v882 = vpack.c.b16 %v838, %v834
    %v883 = vpack.c.b16 %v839, %v835
    %v884 = vpack.c.b16 %v840, %v836
    %v885 = vpack.c.b16 %v841, %v837
    %v886 = vpack.c.b16 %v846, %v842
    %v887 = vpack.c.b16 %v847, %v843
    %v888 = vpack.c.b16 %v848, %v844
    %v889 = vpack.c.b16 %v849, %v845
    %v890 = vpack.c.b16 %v854, %v850
    %v891 = vpack.c.b16 %v855, %v851
    %v892 = vpack.c.b16 %v856, %v852
    %v893 = vpack.c.b16 %v857, %v853
    %v894 = vpack.c.b16 %v862, %v858
    %v895 = vpack.c.b16 %v863, %v859
    %v896 = vpack.c.b16 %v864, %v860
    %v897 = vpack.c.b16 %v865, %v861
    %930 = vmatprep.subr.bf16.mxu0 %v867
    %931 = vmatpush1.bf16.msra.mxu0 %v866
    %932 = vmatprep.subr.bf16.mxu0 %v871
    %933 = vmatpush1.bf16.msra.mxu0 %v870
    %934 = vmatprep.subr.bf16.mxu0 %v875
    %935 = vmatpush1.bf16.msra.mxu0 %v874
    %936 = vmatprep.subr.bf16.mxu0 %v879
    %937 = vmatpush1.bf16.msra.mxu0 %v878
    %938 = vmatprep.subr.bf16.mxu0 %v883
    %939 = vmatpush1.bf16.msra.mxu0 %v882
    %940 = vmatprep.subr.bf16.mxu0 %v887
    %941 = vmatpush1.bf16.msra.mxu0 %v886
    %942 = vmatprep.subr.bf16.mxu0 %v891
    %943 = vmatpush1.bf16.msra.mxu0 %v890
    %944 = vmatprep.subr.bf16.mxu0 %v895
    %945 = vmatpush1.bf16.msra.mxu0 %v894
    %946 = vmatprep.subr.bf16.mxu0 0
    %947 = vmatpush1.bf16.msra.mxu0 0
    %948 = vmatprep.subr.bf16.mxu0 0
    %949 = vmatpush1.bf16.msra.mxu0 0
    %950 = vmatprep.subr.bf16.mxu0 0
    %951 = vmatpush1.bf16.msra.mxu0 0
    %952 = vmatprep.subr.bf16.mxu0 0
    %953 = vmatpush1.bf16.msra.mxu0 0
    %954 = vmatprep.subr.bf16.mxu0 0
    %955 = vmatpush1.bf16.msra.mxu0 0
    %956 = vmatprep.subr.bf16.mxu0 0
    %957 = vmatpush1.bf16.msra.mxu0 0
    %958 = vmatprep.subr.bf16.mxu0 0
    %959 = vmatpush1.bf16.msra.mxu0 0
    %960 = vmatprep.subr.bf16.mxu0 0
    %961 = vmatpush1.bf16.msra.mxu0 0
    %962 = vmatprep.mubr.bf16.mxu0 0
    %963 = vmatmul.mubr.bf16.gmra.mrb[0].mxu0 %v769
    %v964 = vpop.f32.mrb[0].mxu0
    %v965 = vadd.f32 %v734, %v964
    %v966 = vpop.f32.mrb[0].mxu0
    %v967 = vadd.f32 %v738, %v966
    %v968 = vpop.f32.mrb[0].mxu0
    %v969 = vpop.f32.mrb[0].mxu0
    %970 = vdwg.mxu0
    %971 = vmatprep.subr.bf16.mxu0 %v869
    %972 = vmatpush1.bf16.msra.mxu0 %v868
    %973 = vmatprep.subr.bf16.mxu0 %v873
    %974 = vmatpush1.bf16.msra.mxu0 %v872
    %975 = vmatprep.subr.bf16.mxu0 %v877
    %976 = vmatpush1.bf16.msra.mxu0 %v876
    %977 = vmatprep.subr.bf16.mxu0 %v881
    %978 = vmatpush1.bf16.msra.mxu0 %v880
    %979 = vmatprep.subr.bf16.mxu0 %v885
    %980 = vmatpush1.bf16.msra.mxu0 %v884
    %981 = vmatprep.subr.bf16.mxu0 %v889
    %982 = vmatpush1.bf16.msra.mxu0 %v888
    %983 = vmatprep.subr.bf16.mxu0 %v893
    %984 = vmatpush1.bf16.msra.mxu0 %v892
    %985 = vmatprep.subr.bf16.mxu0 %v897
    %986 = vmatpush1.bf16.msra.mxu0 %v896
    %987 = vmatprep.subr.bf16.mxu0 0
    %988 = vmatpush1.bf16.msra.mxu0 0
    %989 = vmatprep.subr.bf16.mxu0 0
    %990 = vmatpush1.bf16.msra.mxu0 0
    %991 = vmatprep.subr.bf16.mxu0 0
    %992 = vmatpush1.bf16.msra.mxu0 0
    %993 = vmatprep.subr.bf16.mxu0 0
    %994 = vmatpush1.bf16.msra.mxu0 0
    %995 = vmatprep.subr.bf16.mxu0 0
    %996 = vmatpush1.bf16.msra.mxu0 0
    %997 = vmatprep.subr.bf16.mxu0 0
    %998 = vmatpush1.bf16.msra.mxu0 0
    %999 = vmatprep.subr.bf16.mxu0 0
    %1000 = vmatpush1.bf16.msra.mxu0 0
    %1001 = vmatprep.subr.bf16.mxu0 0
    %1002 = vmatpush1.bf16.msra.mxu0 0
    %1003 = vmatprep.mubr.bf16.mxu0 0
    %1004 = vmatmul.mubr.bf16.gmra.mrb[0].mxu0 %v769
    %v1005 = vpop.f32.mrb[0].mxu0
    %v1006 = vadd.f32 %v742, %v1005
    %v1007 = vpop.f32.mrb[0].mxu0
    %v1008 = vpop.f32.mrb[0].mxu0
    %v1009 = vpop.f32.mrb[0].mxu0
    %1010 = vdwg.mxu0
    %v1011 = vld [vmem:[#allocation2] sm:$0xff]
    %v1012 = vld [vmem:[#allocation2 + $0x8] sm:$0xff]
    %v1013 = vld [vmem:[#allocation2 + $0x10] sm:$0xff]
    %v1014 = vadd.f32 %v1011, %v965
    %v1015 = vxor.u32 %v1014, 2147483648
    %v1016 = vmul.f32 %v1015, 1.442695
    %v1017 = vpow.pop %v1016
    %v1018 = vadd.f32 %v1017, 1.0
    %v1019 = vrcp.pop %v1018
    %v1020 = vmul.f32 1.0, %v1019
    %v1021 = vadd.f32 %v1012, %v967
    %v1022 = vxor.u32 %v1021, 2147483648
    %v1023 = vmul.f32 %v1022, 1.442695
    %v1024 = vpow.pop %v1023
    %v1025 = vadd.f32 %v1024, 1.0
    %v1026 = vrcp.pop %v1025
    %v1027 = vmul.f32 1.0, %v1026
    %v1028 = vmul.f32 %v1020, %v1006
    %v1029 = vadd.f32 %v1013, %v1028
    %v1030 = vtanh.pop %v1029
    %v1031 = vsub.f32 1.0, %v1027
    %v1032 = vmul.f32 %v1031, %v1030
    %v1033 = vmul.f32 %v1027, %v768
    %v1034 = vadd.f32 %v1032, %v1033
    %s1035 = scalar_lea.vmem [#allocation6], 8
    %v1036 = vld [vmem:[%s1035] sm:$0xff]
    %v1037 = vpack.c.bf16 %v1034, %v1034
    %v1054 = vunpack.c.l.b16 %v651
    %v1055 = vunpack.c.h.b16 %v651
    %v1056 = vunpack.c.l.b16 %v654
    %v1057 = vunpack.c.h.b16 %v654
    %v1058 = vunpack.c.l.b16 %v657
    %v1059 = vunpack.c.h.b16 %v657
    %v1060 = vunpack.c.l.b16 %v660
    %v1061 = vunpack.c.h.b16 %v660
    %v1062 = vunpack.c.l.b16 %v663
    %v1063 = vunpack.c.h.b16 %v663
    %v1064 = vunpack.c.l.b16 %v666
    %v1065 = vunpack.c.h.b16 %v666
    %v1066 = vunpack.c.l.b16 %v669
    %v1067 = vunpack.c.h.b16 %v669
    %v1068 = vunpack.c.l.b16 %v672
    %v1069 = vunpack.c.h.b16 %v672
    %v1070 = vunpack.c.l.b16 %v675
    %v1071 = vunpack.c.h.b16 %v675
    %v1072 = vunpack.c.l.b16 %v678
    %v1073 = vunpack.c.h.b16 %v678
    %v1074 = vunpack.c.l.b16 %v681
    %v1075 = vunpack.c.h.b16 %v681
    %v1076 = vunpack.c.l.b16 %v684
    %v1077 = vunpack.c.h.b16 %v684
    %v1078 = vunpack.c.l.b16 %v687
    %v1079 = vunpack.c.h.b16 %v687
    %v1080 = vunpack.c.l.b16 %v690
    %v1081 = vunpack.c.h.b16 %v690
    %v1082 = vunpack.c.l.b16 %v693
    %v1083 = vunpack.c.h.b16 %v693
    %v1084 = vunpack.c.l.b16 %v696
    %v1085 = vunpack.c.h.b16 %v696
    %v1086 = vpack.c.b16 %v1056, %v1054
    %v1087 = vpack.c.b16 %v1057, %v1055
    %v1088 = vpack.c.b16 %v1060, %v1058
    %v1089 = vpack.c.b16 %v1061, %v1059
    %v1090 = vpack.c.b16 %v1064, %v1062
    %v1091 = vpack.c.b16 %v1065, %v1063
    %v1092 = vpack.c.b16 %v1068, %v1066
    %v1093 = vpack.c.b16 %v1069, %v1067
    %v1094 = vpack.c.b16 %v1072, %v1070
    %v1095 = vpack.c.b16 %v1073, %v1071
    %v1096 = vpack.c.b16 %v1076, %v1074
    %v1097 = vpack.c.b16 %v1077, %v1075
    %v1098 = vpack.c.b16 %v1080, %v1078
    %v1099 = vpack.c.b16 %v1081, %v1079
    %v1100 = vpack.c.b16 %v1084, %v1082
    %v1101 = vpack.c.b16 %v1085, %v1083
    %1118 = vmatprep.subr.bf16.mxu0 %v867
    %1119 = vmatpush1.bf16.msra.mxu0 %v866
    %1120 = vmatprep.subr.bf16.mxu0 %v871
    %1121 = vmatpush1.bf16.msra.mxu0 %v870
    %1122 = vmatprep.subr.bf16.mxu0 %v875
    %1123 = vmatpush1.bf16.msra.mxu0 %v874
    %1124 = vmatprep.subr.bf16.mxu0 %v879
    %1125 = vmatpush1.bf16.msra.mxu0 %v878
    %1126 = vmatprep.subr.bf16.mxu0 %v883
    %1127 = vmatpush1.bf16.msra.mxu0 %v882
    %1128 = vmatprep.subr.bf16.mxu0 %v887
    %1129 = vmatpush1.bf16.msra.mxu0 %v886
    %1130 = vmatprep.subr.bf16.mxu0 %v891
    %1131 = vmatpush1.bf16.msra.mxu0 %v890
    %1132 = vmatprep.subr.bf16.mxu0 %v895
    %1133 = vmatpush1.bf16.msra.mxu0 %v894
    %1134 = vmatprep.subr.bf16.mxu0 0
    %1135 = vmatpush1.bf16.msra.mxu0 0
    %1136 = vmatprep.subr.bf16.mxu0 0
    %1137 = vmatpush1.bf16.msra.mxu0 0
    %1138 = vmatprep.subr.bf16.mxu0 0
    %1139 = vmatpush1.bf16.msra.mxu0 0
    %1140 = vmatprep.subr.bf16.mxu0 0
    %1141 = vmatpush1.bf16.msra.mxu0 0
    %1142 = vmatprep.subr.bf16.mxu0 0
    %1143 = vmatpush1.bf16.msra.mxu0 0
    %1144 = vmatprep.subr.bf16.mxu0 0
    %1145 = vmatpush1.bf16.msra.mxu0 0
    %1146 = vmatprep.subr.bf16.mxu0 0
    %1147 = vmatpush1.bf16.msra.mxu0 0
    %1148 = vmatprep.subr.bf16.mxu0 0
    %1149 = vmatpush1.bf16.msra.mxu0 0
    %1150 = vmatprep.mubr.bf16.mxu0 0
    %1151 = vmatmul.mubr.bf16.gmra.mrb[0].mxu0 %v1037
    %v1152 = vpop.f32.mrb[0].mxu0
    %v1153 = vadd.f32 %v734, %v1152
    %v1154 = vpop.f32.mrb[0].mxu0
    %v1155 = vadd.f32 %v738, %v1154
    %v1156 = vpop.f32.mrb[0].mxu0
    %v1157 = vpop.f32.mrb[0].mxu0
    %1158 = vdwg.mxu0
    %1159 = vmatprep.subr.bf16.mxu0 %v869
    %1160 = vmatpush1.bf16.msra.mxu0 %v868
    %1161 = vmatprep.subr.bf16.mxu0 %v873
    %1162 = vmatpush1.bf16.msra.mxu0 %v872
    %1163 = vmatprep.subr.bf16.mxu0 %v877
    %1164 = vmatpush1.bf16.msra.mxu0 %v876
    %1165 = vmatprep.subr.bf16.mxu0 %v881
    %1166 = vmatpush1.bf16.msra.mxu0 %v880
    %1167 = vmatprep.subr.bf16.mxu0 %v885
    %1168 = vmatpush1.bf16.msra.mxu0 %v884
    %1169 = vmatprep.subr.bf16.mxu0 %v889
    %1170 = vmatpush1.bf16.msra.mxu0 %v888
    %1171 = vmatprep.subr.bf16.mxu0 %v893
    %1172 = vmatpush1.bf16.msra.mxu0 %v892
    %1173 = vmatprep.subr.bf16.mxu0 %v897
    %1174 = vmatpush1.bf16.msra.mxu0 %v896
    %1175 = vmatprep.subr.bf16.mxu0 0
    %1176 = vmatpush1.bf16.msra.mxu0 0
    %1177 = vmatprep.subr.bf16.mxu0 0
    %1178 = vmatpush1.bf16.msra.mxu0 0
    %1179 = vmatprep.subr.bf16.mxu0 0
    %1180 = vmatpush1.bf16.msra.mxu0 0
    %1181 = vmatprep.subr.bf16.mxu0 0
    %1182 = vmatpush1.bf16.msra.mxu0 0
    %1183 = vmatprep.subr.bf16.mxu0 0
    %1184 = vmatpush1.bf16.msra.mxu0 0
    %1185 = vmatprep.subr.bf16.mxu0 0
    %1186 = vmatpush1.bf16.msra.mxu0 0
    %1187 = vmatprep.subr.bf16.mxu0 0
    %1188 = vmatpush1.bf16.msra.mxu0 0
    %1189 = vmatprep.subr.bf16.mxu0 0
    %1190 = vmatpush1.bf16.msra.mxu0 0
    %1191 = vmatprep.mubr.bf16.mxu0 0
    %1192 = vmatmul.mubr.bf16.gmra.mrb[0].mxu0 %v1037
    %v1193 = vpop.f32.mrb[0].mxu0
    %v1194 = vadd.f32 %v742, %v1193
    %v1195 = vpop.f32.mrb[0].mxu0
    %v1196 = vadd.f32 %v746, %v1195
    %v1197 = vpop.f32.mrb[0].mxu0
    %v1198 = vpop.f32.mrb[0].mxu0
    %1199 = vdwg.mxu0
    %1200 = vmatprep.subr.bf16.mxu0 %v1087
    %1201 = vmatpush1.bf16.msra.mxu0 %v1086
    %1202 = vmatprep.subr.bf16.mxu0 %v1089
    %1203 = vmatpush1.bf16.msra.mxu0 %v1088
    %1204 = vmatprep.subr.bf16.mxu0 %v1091
    %1205 = vmatpush1.bf16.msra.mxu0 %v1090
    %1206 = vmatprep.subr.bf16.mxu0 %v1093
    %1207 = vmatpush1.bf16.msra.mxu0 %v1092
    %1208 = vmatprep.subr.bf16.mxu0 %v1095
    %1209 = vmatpush1.bf16.msra.mxu0 %v1094
    %1210 = vmatprep.subr.bf16.mxu0 %v1097
    %1211 = vmatpush1.bf16.msra.mxu0 %v1096
    %1212 = vmatprep.subr.bf16.mxu0 %v1099
    %1213 = vmatpush1.bf16.msra.mxu0 %v1098
    %1214 = vmatprep.subr.bf16.mxu0 %v1101
    %1215 = vmatpush1.bf16.msra.mxu0 %v1100
    %1216 = vmatprep.subr.bf16.mxu0 0
    %1217 = vmatpush1.bf16.msra.mxu0 0
    %1218 = vmatprep.subr.bf16.mxu0 0
    %1219 = vmatpush1.bf16.msra.mxu0 0
    %1220 = vmatprep.subr.bf16.mxu0 0
    %1221 = vmatpush1.bf16.msra.mxu0 0
    %1222 = vmatprep.subr.bf16.mxu0 0
    %1223 = vmatpush1.bf16.msra.mxu0 0
    %1224 = vmatprep.subr.bf16.mxu0 0
    %1225 = vmatpush1.bf16.msra.mxu0 0
    %1226 = vmatprep.subr.bf16.mxu0 0
    %1227 = vmatpush1.bf16.msra.mxu0 0
    %1228 = vmatprep.subr.bf16.mxu0 0
    %1229 = vmatpush1.bf16.msra.mxu0 0
    %1230 = vmatprep.subr.bf16.mxu0 0
    %1231 = vmatpush1.bf16.msra.mxu0 0
    %1232 = vmatprep.mubr.bf16.mxu0 0
    %1233 = vmatmul.mubr.bf16.gmra.mrb[0].mxu0 %v1037
    %v1234 = vpop.f32.mrb[0].mxu0
    %v1235 = vadd.f32 %v750, %v1234
    %v1236 = vpop.f32.mrb[0].mxu0
    %v1237 = vadd.f32 %v754, %v1236
    %v1238 = vpop.f32.mrb[0].mxu0
    %v1239 = vpop.f32.mrb[0].mxu0
    %1240 = vdwg.mxu0
    %v1241 = vpack.c.bf16 %v1036, %v1036
    %v1274 = vunpack.c.l.b16 %v697
    %v1275 = vunpack.c.h.b16 %v697
    %v1276 = vunpack.c.l.b16 %v698
    %v1277 = vunpack.c.l.b16 %v699
    %v1278 = vunpack.c.h.b16 %v699
    %v1279 = vunpack.c.l.b16 %v700
    %v1280 = vunpack.c.l.b16 %v701
    %v1281 = vunpack.c.h.b16 %v701
    %v1282 = vunpack.c.l.b16 %v702
    %v1283 = vunpack.c.l.b16 %v703
    %v1284 = vunpack.c.h.b16 %v703
    %v1285 = vunpack.c.l.b16 %v704
    %v1286 = vunpack.c.l.b16 %v705
    %v1287 = vunpack.c.h.b16 %v705
    %v1288 = vunpack.c.l.b16 %v706
    %v1289 = vunpack.c.l.b16 %v707
    %v1290 = vunpack.c.h.b16 %v707
    %v1291 = vunpack.c.l.b16 %v708
    %v1292 = vunpack.c.l.b16 %v709
    %v1293 = vunpack.c.h.b16 %v709
    %v1294 = vunpack.c.l.b16 %v710
    %v1295 = vunpack.c.l.b16 %v711
    %v1296 = vunpack.c.h.b16 %v711
    %v1297 = vunpack.c.l.b16 %v712
    %v1298 = vunpack.c.l.b16 %v713
    %v1299 = vunpack.c.h.b16 %v713
    %v1300 = vunpack.c.l.b16 %v714
    %v1301 = vunpack.c.l.b16 %v715
    %v1302 = vunpack.c.h.b16 %v715
    %v1303 = vunpack.c.l.b16 %v716
    %v1304 = vunpack.c.l.b16 %v717
    %v1305 = vunpack.c.h.b16 %v717
    %v1306 = vunpack.c.l.b16 %v718
    %v1307 = vunpack.c.l.b16 %v719
    %v1308 = vunpack.c.h.b16 %v719
    %v1309 = vunpack.c.l.b16 %v720
    %v1310 = vunpack.c.l.b16 %v721
    %v1311 = vunpack.c.h.b16 %v721
    %v1312 = vunpack.c.l.b16 %v722
    %v1313 = vunpack.c.l.b16 %v723
    %v1314 = vunpack.c.h.b16 %v723
    %v1315 = vunpack.c.l.b16 %v724
    %v1316 = vunpack.c.l.b16 %v725
    %v1317 = vunpack.c.h.b16 %v725
    %v1318 = vunpack.c.l.b16 %v726
    %v1319 = vunpack.c.l.b16 %v727
    %v1320 = vunpack.c.h.b16 %v727
    %v1321 = vunpack.c.l.b16 %v728
    %v1322 = vpack.c.b16 %v1277, %v1274
    %v1323 = vpack.c.b16 %v1278, %v1275
    %v1324 = vpack.c.b16 %v1279, %v1276
    %v1325 = vpack.c.b16 %v1283, %v1280
    %v1326 = vpack.c.b16 %v1284, %v1281
    %v1327 = vpack.c.b16 %v1285, %v1282
    %v1328 = vpack.c.b16 %v1289, %v1286
    %v1329 = vpack.c.b16 %v1290, %v1287
    %v1330 = vpack.c.b16 %v1291, %v1288
    %v1331 = vpack.c.b16 %v1295, %v1292
    %v1332 = vpack.c.b16 %v1296, %v1293
    %v1333 = vpack.c.b16 %v1297, %v1294
    %v1334 = vpack.c.b16 %v1301, %v1298
    %v1335 = vpack.c.b16 %v1302, %v1299
    %v1336 = vpack.c.b16 %v1303, %v1300
    %v1337 = vpack.c.b16 %v1307, %v1304
    %v1338 = vpack.c.b16 %v1308, %v1305
    %v1339 = vpack.c.b16 %v1309, %v1306
    %v1340 = vpack.c.b16 %v1313, %v1310
    %v1341 = vpack.c.b16 %v1314, %v1311
    %v1342 = vpack.c.b16 %v1315, %v1312
    %v1343 = vpack.c.b16 %v1319, %v1316
    %v1344 = vpack.c.b16 %v1320, %v1317
    %v1345 = vpack.c.b16 %v1321, %v1318
    %1370 = vmatprep.subr.bf16.mxu0 %v1323
    %1371 = vmatpush1.bf16.msra.mxu0 %v1322
    %1372 = vmatprep.subr.bf16.mxu0 %v1326
    %1373 = vmatpush1.bf16.msra.mxu0 %v1325
    %1374 = vmatprep.subr.bf16.mxu0 %v1329
    %1375 = vmatpush1.bf16.msra.mxu0 %v1328
    %1376 = vmatprep.subr.bf16.mxu0 %v1332
    %1377 = vmatpush1.bf16.msra.mxu0 %v1331
    %1378 = vmatprep.subr.bf16.mxu0 %v1335
    %1379 = vmatpush1.bf16.msra.mxu0 %v1334
    %1380 = vmatprep.subr.bf16.mxu0 %v1338
    %1381 = vmatpush1.bf16.msra.mxu0 %v1337
    %1382 = vmatprep.subr.bf16.mxu0 %v1341
    %1383 = vmatpush1.bf16.msra.mxu0 %v1340
    %1384 = vmatprep.subr.bf16.mxu0 %v1344
    %1385 = vmatpush1.bf16.msra.mxu0 %v1343
    %1386 = vmatprep.subr.bf16.mxu0 0
    %1387 = vmatpush1.bf16.msra.mxu0 0
    %1388 = vmatprep.subr.bf16.mxu0 0
    %1389 = vmatpush1.bf16.msra.mxu0 0
    %1390 = vmatprep.subr.bf16.mxu0 0
    %1391 = vmatpush1.bf16.msra.mxu0 0
    %1392 = vmatprep.subr.bf16.mxu0 0
    %1393 = vmatpush1.bf16.msra.mxu0 0
    %1394 = vmatprep.subr.bf16.mxu0 0
    %1395 = vmatpush1.bf16.msra.mxu0 0
    %1396 = vmatprep.subr.bf16.mxu0 0
    %1397 = vmatpush1.bf16.msra.mxu0 0
    %1398 = vmatprep.subr.bf16.mxu0 0
    %1399 = vmatpush1.bf16.msra.mxu0 0
    %1400 = vmatprep.subr.bf16.mxu0 0
    %1401 = vmatpush1.bf16.msra.mxu0 0
    %1402 = vmatprep.mubr.bf16.mxu0 0
    %1403 = vmatmul.mubr.bf16.gmra.mrb[0].mxu0 %v1241
    %v1404 = vpop.f32.mrb[0].mxu0
    %v1405 = vadd.f32 0.0, %v1404
    %v1406 = vpop.f32.mrb[0].mxu0
    %v1407 = vadd.f32 0.0, %v1406
    %v1408 = vpop.f32.mrb[0].mxu0
    %v1409 = vpop.f32.mrb[0].mxu0
    %1410 = vdwg.mxu0
    %1411 = vmatprep.subr.bf16.mxu0 0
    %1412 = vmatpush1.bf16.msra.mxu0 %v1324
    %1413 = vmatprep.subr.bf16.mxu0 0
    %1414 = vmatpush1.bf16.msra.mxu0 %v1327
    %1415 = vmatprep.subr.bf16.mxu0 0
    %1416 = vmatpush1.bf16.msra.mxu0 %v1330
    %1417 = vmatprep.subr.bf16.mxu0 0
    %1418 = vmatpush1.bf16.msra.mxu0 %v1333
    %1419 = vmatprep.subr.bf16.mxu0 0
    %1420 = vmatpush1.bf16.msra.mxu0 %v1336
    %1421 = vmatprep.subr.bf16.mxu0 0
    %1422 = vmatpush1.bf16.msra.mxu0 %v1339
    %1423 = vmatprep.subr.bf16.mxu0 0
    %1424 = vmatpush1.bf16.msra.mxu0 %v1342
    %1425 = vmatprep.subr.bf16.mxu0 0
    %1426 = vmatpush1.bf16.msra.mxu0 %v1345
    %1427 = vmatprep.subr.bf16.mxu0 0
    %1428 = vmatpush1.bf16.msra.mxu0 0
    %1429 = vmatprep.subr.bf16.mxu0 0
    %1430 = vmatpush1.bf16.msra.mxu0 0
    %1431 = vmatprep.subr.bf16.mxu0 0
    %1432 = vmatpush1.bf16.msra.mxu0 0
    %1433 = vmatprep.subr.bf16.mxu0 0
    %1434 = vmatpush1.bf16.msra.mxu0 0
    %1435 = vmatprep.subr.bf16.mxu0 0
    %1436 = vmatpush1.bf16.msra.mxu0 0
    %1437 = vmatprep.subr.bf16.mxu0 0
    %1438 = vmatpush1.bf16.msra.mxu0 0
    %1439 = vmatprep.subr.bf16.mxu0 0
    %1440 = vmatpush1.bf16.msra.mxu0 0
    %1441 = vmatprep.subr.bf16.mxu0 0
    %1442 = vmatpush1.bf16.msra.mxu0 0
    %1443 = vmatprep.mubr.bf16.mxu0 0
    %1444 = vmatmul.mubr.bf16.gmra.mrb[0].mxu0 %v1241
    %v1445 = vpop.f32.mrb[0].mxu0
    %v1446 = vadd.f32 0.0, %v1445
    %v1447 = vpop.f32.mrb[0].mxu0
    %v1448 = vpop.f32.mrb[0].mxu0
    %v1449 = vpop.f32.mrb[0].mxu0
    %1450 = vdwg.mxu0
    %s1451 = smul.u32 1, 3
    %s1452 = smul.addr %s1451, 8
    %s1453 = scalar_lea.vmem [#allocation2], %s1452
    %v1454 = vld [vmem:[%s1453] sm:$0xff]
    %v1455 = vld [vmem:[%s1453 + $0x8] sm:$0xff]
    %v1456 = vld [vmem:[%s1453 + $0x10] sm:$0xff]
    %v1457 = vadd.f32 %v1454, %v1153
    %v1458 = vxor.u32 %v1457, 2147483648
    %v1459 = vmul.f32 %v1458, 1.442695
    %v1460 = vpow.pop %v1459
    %v1461 = vadd.f32 %v1460, 1.0
    %v1462 = vrcp.pop %v1461
    %v1463 = vmul.f32 1.0, %v1462
    %v1464 = vadd.f32 %v1455, %v1155
    %v1465 = vxor.u32 %v1464, 2147483648
    %v1466 = vmul.f32 %v1465, 1.442695
    %v1467 = vpow.pop %v1466
    %v1468 = vadd.f32 %v1467, 1.0
    %v1469 = vrcp.pop %v1468
    %v1470 = vmul.f32 1.0, %v1469
    %v1471 = vmul.f32 %v1463, %v1194
    %v1472 = vadd.f32 %v1456, %v1471
    %v1473 = vtanh.pop %v1472
    %v1474 = vsub.f32 1.0, %v1470
    %v1475 = vmul.f32 %v1474, %v1473
    %v1476 = vmul.f32 %v1470, %v1034
    %v1477 = vadd.f32 %v1475, %v1476
    %v1478 = vadd.f32 %v1446, %v766
    %v1479 = vadd.f32 %v1196, %v1405
    %v1480 = vxor.u32 %v1479, 2147483648
    %v1481 = vmul.f32 %v1480, 1.442695
    %v1482 = vpow.pop %v1481
    %v1483 = vadd.f32 %v1482, 1.0
    %v1484 = vrcp.pop %v1483
    %v1485 = vmul.f32 1.0, %v1484
    %v1486 = vadd.f32 %v1235, %v1407
    %v1487 = vxor.u32 %v1486, 2147483648
    %v1488 = vmul.f32 %v1487, 1.442695
    %v1489 = vpow.pop %v1488
    %v1490 = vadd.f32 %v1489, 1.0
    %v1491 = vrcp.pop %v1490
    %v1492 = vmul.f32 1.0, %v1491
    %v1493 = vmul.f32 %v1485, %v1478
    %v1494 = vadd.f32 %v1237, %v1493
    %v1495 = vtanh.pop %v1494
    %v1496 = vsub.f32 1.0, %v1492
    %v1497 = vmul.f32 %v1496, %v1495
    %v1498 = vmul.f32 %v1492, %v1036
    %v1499 = vadd.f32 %v1497, %v1498
    %1500 = vst [vmem:[#allocation12] sm:$0xff] %v1499
    %v1501 = vpack.c.bf16 %v1477, %v1477
    %1502 = vmatprep.subr.bf16.mxu0 %v867
    %1503 = vmatpush1.bf16.msra.mxu0 %v866
    %1504 = vmatprep.subr.bf16.mxu0 %v871
    %1505 = vmatpush1.bf16.msra.mxu0 %v870
    %1506 = vmatprep.subr.bf16.mxu0 %v875
    %1507 = vmatpush1.bf16.msra.mxu0 %v874
    %1508 = vmatprep.subr.bf16.mxu0 %v879
    %1509 = vmatpush1.bf16.msra.mxu0 %v878
    %1510 = vmatprep.subr.bf16.mxu0 %v883
    %1511 = vmatpush1.bf16.msra.mxu0 %v882
    %1512 = vmatprep.subr.bf16.mxu0 %v887
    %1513 = vmatpush1.bf16.msra.mxu0 %v886
    %1514 = vmatprep.subr.bf16.mxu0 %v891
    %1515 = vmatpush1.bf16.msra.mxu0 %v890
    %1516 = vmatprep.subr.bf16.mxu0 %v895
    %1517 = vmatpush1.bf16.msra.mxu0 %v894
    %1518 = vmatprep.subr.bf16.mxu0 0
    %1519 = vmatpush1.bf16.msra.mxu0 0
    %1520 = vmatprep.subr.bf16.mxu0 0
    %1521 = vmatpush1.bf16.msra.mxu0 0
    %1522 = vmatprep.subr.bf16.mxu0 0
    %1523 = vmatpush1.bf16.msra.mxu0 0
    %1524 = vmatprep.subr.bf16.mxu0 0
    %1525 = vmatpush1.bf16.msra.mxu0 0
    %1526 = vmatprep.subr.bf16.mxu0 0
    %1527 = vmatpush1.bf16.msra.mxu0 0
    %1528 = vmatprep.subr.bf16.mxu0 0
    %1529 = vmatpush1.bf16.msra.mxu0 0
    %1530 = vmatprep.subr.bf16.mxu0 0
    %1531 = vmatpush1.bf16.msra.mxu0 0
    %1532 = vmatprep.subr.bf16.mxu0 0
    %1533 = vmatpush1.bf16.msra.mxu0 0
    %1534 = vmatprep.mubr.bf16.mxu0 0
    %1535 = vmatmul.mubr.bf16.gmra.mrb[0].mxu0 %v1501
    %v1536 = vpop.f32.mrb[0].mxu0
    %v1537 = vadd.f32 %v734, %v1536
    %v1538 = vpop.f32.mrb[0].mxu0
    %v1539 = vadd.f32 %v738, %v1538
    %v1540 = vpop.f32.mrb[0].mxu0
    %v1541 = vpop.f32.mrb[0].mxu0
    %1542 = vdwg.mxu0
    %1543 = vmatprep.subr.bf16.mxu0 %v869
    %1544 = vmatpush1.bf16.msra.mxu0 %v868
    %1545 = vmatprep.subr.bf16.mxu0 %v873
    %1546 = vmatpush1.bf16.msra.mxu0 %v872
    %1547 = vmatprep.subr.bf16.mxu0 %v877
    %1548 = vmatpush1.bf16.msra.mxu0 %v876
    %1549 = vmatprep.subr.bf16.mxu0 %v881
    %1550 = vmatpush1.bf16.msra.mxu0 %v880
    %1551 = vmatprep.subr.bf16.mxu0 %v885
    %1552 = vmatpush1.bf16.msra.mxu0 %v884
    %1553 = vmatprep.subr.bf16.mxu0 %v889
    %1554 = vmatpush1.bf16.msra.mxu0 %v888
    %1555 = vmatprep.subr.bf16.mxu0 %v893
    %1556 = vmatpush1.bf16.msra.mxu0 %v892
    %1557 = vmatprep.subr.bf16.mxu0 %v897
    %1558 = vmatpush1.bf16.msra.mxu0 %v896
    %1559 = vmatprep.subr.bf16.mxu0 0
    %1560 = vmatpush1.bf16.msra.mxu0 0
    %1561 = vmatprep.subr.bf16.mxu0 0
    %1562 = vmatpush1.bf16.msra.mxu0 0
    %1563 = vmatprep.subr.bf16.mxu0 0
    %1564 = vmatpush1.bf16.msra.mxu0 0
    %1565 = vmatprep.subr.bf16.mxu0 0
    %1566 = vmatpush1.bf16.msra.mxu0 0
    %1567 = vmatprep.subr.bf16.mxu0 0
    %1568 = vmatpush1.bf16.msra.mxu0 0
    %1569 = vmatprep.subr.bf16.mxu0 0
    %1570 = vmatpush1.bf16.msra.mxu0 0
    %1571 = vmatprep.subr.bf16.mxu0 0
    %1572 = vmatpush1.bf16.msra.mxu0 0
    %1573 = vmatprep.subr.bf16.mxu0 0
    %1574 = vmatpush1.bf16.msra.mxu0 0
    %1575 = vmatprep.mubr.bf16.mxu0 0
    %1576 = vmatmul.mubr.bf16.gmra.mrb[0].mxu0 %v1501
    %v1577 = vpop.f32.mrb[0].mxu0
    %v1578 = vadd.f32 %v742, %v1577
    %v1579 = vpop.f32.mrb[0].mxu0
    %v1580 = vadd.f32 %v746, %v1579
    %v1581 = vpop.f32.mrb[0].mxu0
    %v1582 = vpop.f32.mrb[0].mxu0
    %1583 = vdwg.mxu0
    %1584 = vmatprep.subr.bf16.mxu0 %v1087
    %1585 = vmatpush1.bf16.msra.mxu0 %v1086
    %1586 = vmatprep.subr.bf16.mxu0 %v1089
    %1587 = vmatpush1.bf16.msra.mxu0 %v1088
    %1588 = vmatprep.subr.bf16.mxu0 %v1091
    %1589 = vmatpush1.bf16.msra.mxu0 %v1090
    %1590 = vmatprep.subr.bf16.mxu0 %v1093
    %1591 = vmatpush1.bf16.msra.mxu0 %v1092
    %1592 = vmatprep.subr.bf16.mxu0 %v1095
    %1593 = vmatpush1.bf16.msra.mxu0 %v1094
    %1594 = vmatprep.subr.bf16.mxu0 %v1097
    %1595 = vmatpush1.bf16.msra.mxu0 %v1096
    %1596 = vmatprep.subr.bf16.mxu0 %v1099
    %1597 = vmatpush1.bf16.msra.mxu0 %v1098
    %1598 = vmatprep.subr.bf16.mxu0 %v1101
    %1599 = vmatpush1.bf16.msra.mxu0 %v1100
    %1600 = vmatprep.subr.bf16.mxu0 0
    %1601 = vmatpush1.bf16.msra.mxu0 0
    %1602 = vmatprep.subr.bf16.mxu0 0
    %1603 = vmatpush1.bf16.msra.mxu0 0
    %1604 = vmatprep.subr.bf16.mxu0 0
    %1605 = vmatpush1.bf16.msra.mxu0 0
    %1606 = vmatprep.subr.bf16.mxu0 0
    %1607 = vmatpush1.bf16.msra.mxu0 0
    %1608 = vmatprep.subr.bf16.mxu0 0
    %1609 = vmatpush1.bf16.msra.mxu0 0
    %1610 = vmatprep.subr.bf16.mxu0 0
    %1611 = vmatpush1.bf16.msra.mxu0 0
    %1612 = vmatprep.subr.bf16.mxu0 0
    %1613 = vmatpush1.bf16.msra.mxu0 0
    %1614 = vmatprep.subr.bf16.mxu0 0
    %1615 = vmatpush1.bf16.msra.mxu0 0
    %1616 = vmatprep.mubr.bf16.mxu0 0
    %1617 = vmatmul.mubr.bf16.gmra.mrb[0].mxu0 %v1501
    %v1618 = vpop.f32.mrb[0].mxu0
    %v1619 = vadd.f32 %v750, %v1618
    %v1620 = vpop.f32.mrb[0].mxu0
    %v1621 = vadd.f32 %v754, %v1620
    %v1622 = vpop.f32.mrb[0].mxu0
    %v1623 = vpop.f32.mrb[0].mxu0
    %1624 = vdwg.mxu0
    %v1625 = vpack.c.bf16 %v1499, %v1499
    %1626 = vmatprep.subr.bf16.mxu0 %v1323
    %1627 = vmatpush1.bf16.msra.mxu0 %v1322
    %1628 = vmatprep.subr.bf16.mxu0 %v1326
    %1629 = vmatpush1.bf16.msra.mxu0 %v1325
    %1630 = vmatprep.subr.bf16.mxu0 %v1329
    %1631 = vmatpush1.bf16.msra.mxu0 %v1328
    %1632 = vmatprep.subr.bf16.mxu0 %v1332
    %1633 = vmatpush1.bf16.msra.mxu0 %v1331
    %1634 = vmatprep.subr.bf16.mxu0 %v1335
    %1635 = vmatpush1.bf16.msra.mxu0 %v1334
    %1636 = vmatprep.subr.bf16.mxu0 %v1338
    %1637 = vmatpush1.bf16.msra.mxu0 %v1337
    %1638 = vmatprep.subr.bf16.mxu0 %v1341
    %1639 = vmatpush1.bf16.msra.mxu0 %v1340
    %1640 = vmatprep.subr.bf16.mxu0 %v1344
    %1641 = vmatpush1.bf16.msra.mxu0 %v1343
    %1642 = vmatprep.subr.bf16.mxu0 0
    %1643 = vmatpush1.bf16.msra.mxu0 0
    %1644 = vmatprep.subr.bf16.mxu0 0
    %1645 = vmatpush1.bf16.msra.mxu0 0
    %1646 = vmatprep.subr.bf16.mxu0 0
    %1647 = vmatpush1.bf16.msra.mxu0 0
    %1648 = vmatprep.subr.bf16.mxu0 0
    %1649 = vmatpush1.bf16.msra.mxu0 0
    %1650 = vmatprep.subr.bf16.mxu0 0
    %1651 = vmatpush1.bf16.msra.mxu0 0
    %1652 = vmatprep.subr.bf16.mxu0 0
    %1653 = vmatpush1.bf16.msra.mxu0 0
    %1654 = vmatprep.subr.bf16.mxu0 0
    %1655 = vmatpush1.bf16.msra.mxu0 0
    %1656 = vmatprep.subr.bf16.mxu0 0
    %1657 = vmatpush1.bf16.msra.mxu0 0
    %1658 = vmatprep.mubr.bf16.mxu0 0
    %1659 = vmatmul.mubr.bf16.gmra.mrb[0].mxu0 %v1625
    %v1660 = vpop.f32.mrb[0].mxu0
    %v1661 = vadd.f32 0.0, %v1660
    %v1662 = vpop.f32.mrb[0].mxu0
    %v1663 = vadd.f32 0.0, %v1662
    %v1664 = vpop.f32.mrb[0].mxu0
    %v1665 = vpop.f32.mrb[0].mxu0
    %1666 = vdwg.mxu0
    %1667 = vmatprep.subr.bf16.mxu0 0
    %1668 = vmatpush1.bf16.msra.mxu0 %v1324
    %1669 = vmatprep.subr.bf16.mxu0 0
    %1670 = vmatpush1.bf16.msra.mxu0 %v1327
    %1671 = vmatprep.subr.bf16.mxu0 0
    %1672 = vmatpush1.bf16.msra.mxu0 %v1330
    %1673 = vmatprep.subr.bf16.mxu0 0
    %1674 = vmatpush1.bf16.msra.mxu0 %v1333
    %1675 = vmatprep.subr.bf16.mxu0 0
    %1676 = vmatpush1.bf16.msra.mxu0 %v1336
    %1677 = vmatprep.subr.bf16.mxu0 0
    %1678 = vmatpush1.bf16.msra.mxu0 %v1339
    %1679 = vmatprep.subr.bf16.mxu0 0
    %1680 = vmatpush1.bf16.msra.mxu0 %v1342
    %1681 = vmatprep.subr.bf16.mxu0 0
    %1682 = vmatpush1.bf16.msra.mxu0 %v1345
    %1683 = vmatprep.subr.bf16.mxu0 0
    %1684 = vmatpush1.bf16.msra.mxu0 0
    %1685 = vmatprep.subr.bf16.mxu0 0
    %1686 = vmatpush1.bf16.msra.mxu0 0
    %1687 = vmatprep.subr.bf16.mxu0 0
    %1688 = vmatpush1.bf16.msra.mxu0 0
    %1689 = vmatprep.subr.bf16.mxu0 0
    %1690 = vmatpush1.bf16.msra.mxu0 0
    %1691 = vmatprep.subr.bf16.mxu0 0
    %1692 = vmatpush1.bf16.msra.mxu0 0
    %1693 = vmatprep.subr.bf16.mxu0 0
    %1694 = vmatpush1.bf16.msra.mxu0 0
    %1695 = vmatprep.subr.bf16.mxu0 0
    %1696 = vmatpush1.bf16.msra.mxu0 0
    %1697 = vmatprep.subr.bf16.mxu0 0
    %1698 = vmatpush1.bf16.msra.mxu0 0
    %1699 = vmatprep.mubr.bf16.mxu0 0
    %1700 = vmatmul.mubr.bf16.gmra.mrb[0].mxu0 %v1625
    %v1701 = vpop.f32.mrb[0].mxu0
    %v1702 = vadd.f32 0.0, %v1701
    %v1703 = vpop.f32.mrb[0].mxu0
    %v1704 = vpop.f32.mrb[0].mxu0
    %v1705 = vpop.f32.mrb[0].mxu0
    %1706 = vdwg.mxu0
    %s1707 = smul.u32 2, 3
    %s1708 = smul.addr %s1707, 8
    %s1709 = scalar_lea.vmem [#allocation2], %s1708
    %v1710 = vld [vmem:[%s1709] sm:$0xff]
    %v1711 = vld [vmem:[%s1709 + $0x8] sm:$0xff]
    %v1712 = vld [vmem:[%s1709 + $0x10] sm:$0xff]
    %v1713 = vadd.f32 %v1710, %v1537
    %v1714 = vxor.u32 %v1713, 2147483648
    %v1715 = vmul.f32 %v1714, 1.442695
    %v1716 = vpow.pop %v1715
    %v1717 = vadd.f32 %v1716, 1.0
    %v1718 = vrcp.pop %v1717
    %v1719 = vmul.f32 1.0, %v1718
    %v1720 = vadd.f32 %v1711, %v1539
    %v1721 = vxor.u32 %v1720, 2147483648
    %v1722 = vmul.f32 %v1721, 1.442695
    %v1723 = vpow.pop %v1722
    %v1724 = vadd.f32 %v1723, 1.0
    %v1725 = vrcp.pop %v1724
    %v1726 = vmul.f32 1.0, %v1725
    %v1727 = vmul.f32 %v1719, %v1578
    %v1728 = vadd.f32 %v1712, %v1727
    %v1729 = vtanh.pop %v1728
    %v1730 = vsub.f32 1.0, %v1726
    %v1731 = vmul.f32 %v1730, %v1729
    %v1732 = vmul.f32 %v1726, %v1477
    %v1733 = vadd.f32 %v1731, %v1732
    %v1734 = vadd.f32 %v1702, %v766
    %v1735 = vadd.f32 %v1580, %v1661
    %v1736 = vxor.u32 %v1735, 2147483648
    %v1737 = vmul.f32 %v1736, 1.442695
    %v1738 = vpow.pop %v1737
    %v1739 = vadd.f32 %v1738, 1.0
    %v1740 = vrcp.pop %v1739
    %v1741 = vmul.f32 1.0, %v1740
    %v1742 = vadd.f32 %v1619, %v1663
    %v1743 = vxor.u32 %v1742, 2147483648
    %v1744 = vmul.f32 %v1743, 1.442695
    %v1745 = vpow.pop %v1744
    %v1746 = vadd.f32 %v1745, 1.0
    %v1747 = vrcp.pop %v1746
    %v1748 = vmul.f32 1.0, %v1747
    %v1749 = vmul.f32 %v1741, %v1734
    %v1750 = vadd.f32 %v1621, %v1749
    %v1751 = vtanh.pop %v1750
    %v1752 = vsub.f32 1.0, %v1748
    %v1753 = vmul.f32 %v1752, %v1751
    %v1754 = vmul.f32 %v1748, %v1499
    %v1755 = vadd.f32 %v1753, %v1754
    %s1756 = scalar_lea.vmem [#allocation12], 8
    %1757 = vst [vmem:[%s1756] sm:$0xff] %v1755
    %v1758 = vpack.c.bf16 %v1733, %v1733
    %1759 = vmatprep.subr.bf16.mxu0 %v867
    %1760 = vmatpush1.bf16.msra.mxu0 %v866
    %1761 = vmatprep.subr.bf16.mxu0 %v871
    %1762 = vmatpush1.bf16.msra.mxu0 %v870
    %1763 = vmatprep.subr.bf16.mxu0 %v875
    %1764 = vmatpush1.bf16.msra.mxu0 %v874
    %1765 = vmatprep.subr.bf16.mxu0 %v879
    %1766 = vmatpush1.bf16.msra.mxu0 %v878
    %1767 = vmatprep.subr.bf16.mxu0 %v883
    %1768 = vmatpush1.bf16.msra.mxu0 %v882
    %1769 = vmatprep.subr.bf16.mxu0 %v887
    %1770 = vmatpush1.bf16.msra.mxu0 %v886
    %1771 = vmatprep.subr.bf16.mxu0 %v891
    %1772 = vmatpush1.bf16.msra.mxu0 %v890
    %1773 = vmatprep.subr.bf16.mxu0 %v895
    %1774 = vmatpush1.bf16.msra.mxu0 %v894
    %1775 = vmatprep.subr.bf16.mxu0 0
    %1776 = vmatpush1.bf16.msra.mxu0 0
    %1777 = vmatprep.subr.bf16.mxu0 0
    %1778 = vmatpush1.bf16.msra.mxu0 0
    %1779 = vmatprep.subr.bf16.mxu0 0
    %1780 = vmatpush1.bf16.msra.mxu0 0
    %1781 = vmatprep.subr.bf16.mxu0 0
    %1782 = vmatpush1.bf16.msra.mxu0 0
    %1783 = vmatprep.subr.bf16.mxu0 0
    %1784 = vmatpush1.bf16.msra.mxu0 0
    %1785 = vmatprep.subr.bf16.mxu0 0
    %1786 = vmatpush1.bf16.msra.mxu0 0
    %1787 = vmatprep.subr.bf16.mxu0 0
    %1788 = vmatpush1.bf16.msra.mxu0 0
    %1789 = vmatprep.subr.bf16.mxu0 0
    %1790 = vmatpush1.bf16.msra.mxu0 0
    %1791 = vmatprep.mubr.bf16.mxu0 0
    %1792 = vmatmul.mubr.bf16.gmra.mrb[0].mxu0 %v1758
    %v1793 = vpop.f32.mrb[0].mxu0
    %v1794 = vadd.f32 %v734, %v1793
    %v1795 = vpop.f32.mrb[0].mxu0
    %v1796 = vadd.f32 %v738, %v1795
    %v1797 = vpop.f32.mrb[0].mxu0
    %v1798 = vpop.f32.mrb[0].mxu0
    %1799 = vdwg.mxu0
    %1800 = vmatprep.subr.bf16.mxu0 %v869
    %1801 = vmatpush1.bf16.msra.mxu0 %v868
    %1802 = vmatprep.subr.bf16.mxu0 %v873
    %1803 = vmatpush1.bf16.msra.mxu0 %v872
    %1804 = vmatprep.subr.bf16.mxu0 %v877
    %1805 = vmatpush1.bf16.msra.mxu0 %v876
    %1806 = vmatprep.subr.bf16.mxu0 %v881
    %1807 = vmatpush1.bf16.msra.mxu0 %v880
    %1808 = vmatprep.subr.bf16.mxu0 %v885
    %1809 = vmatpush1.bf16.msra.mxu0 %v884
    %1810 = vmatprep.subr.bf16.mxu0 %v889
    %1811 = vmatpush1.bf16.msra.mxu0 %v888
    %1812 = vmatprep.subr.bf16.mxu0 %v893
    %1813 = vmatpush1.bf16.msra.mxu0 %v892
    %1814 = vmatprep.subr.bf16.mxu0 %v897
    %1815 = vmatpush1.bf16.msra.mxu0 %v896
    %1816 = vmatprep.subr.bf16.mxu0 0
    %1817 = vmatpush1.bf16.msra.mxu0 0
    %1818 = vmatprep.subr.bf16.mxu0 0
    %1819 = vmatpush1.bf16.msra.mxu0 0
    %1820 = vmatprep.subr.bf16.mxu0 0
    %1821 = vmatpush1.bf16.msra.mxu0 0
    %1822 = vmatprep.subr.bf16.mxu0 0
    %1823 = vmatpush1.bf16.msra.mxu0 0
    %1824 = vmatprep.subr.bf16.mxu0 0
    %1825 = vmatpush1.bf16.msra.mxu0 0
    %1826 = vmatprep.subr.bf16.mxu0 0
    %1827 = vmatpush1.bf16.msra.mxu0 0
    %1828 = vmatprep.subr.bf16.mxu0 0
    %1829 = vmatpush1.bf16.msra.mxu0 0
    %1830 = vmatprep.subr.bf16.mxu0 0
    %1831 = vmatpush1.bf16.msra.mxu0 0
    %1832 = vmatprep.mubr.bf16.mxu0 0
    %1833 = vmatmul.mubr.bf16.gmra.mrb[0].mxu0 %v1758
    %v1834 = vpop.f32.mrb[0].mxu0
    %v1835 = vadd.f32 %v742, %v1834
    %v1836 = vpop.f32.mrb[0].mxu0
    %v1837 = vadd.f32 %v746, %v1836
    %v1838 = vpop.f32.mrb[0].mxu0
    %v1839 = vpop.f32.mrb[0].mxu0
    %1840 = vdwg.mxu0
    %1841 = vmatprep.subr.bf16.mxu0 %v1087
    %1842 = vmatpush1.bf16.msra.mxu0 %v1086
    %1843 = vmatprep.subr.bf16.mxu0 %v1089
    %1844 = vmatpush1.bf16.msra.mxu0 %v1088
    %1845 = vmatprep.subr.bf16.mxu0 %v1091
    %1846 = vmatpush1.bf16.msra.mxu0 %v1090
    %1847 = vmatprep.subr.bf16.mxu0 %v1093
    %1848 = vmatpush1.bf16.msra.mxu0 %v1092
    %1849 = vmatprep.subr.bf16.mxu0 %v1095
    %1850 = vmatpush1.bf16.msra.mxu0 %v1094
    %1851 = vmatprep.subr.bf16.mxu0 %v1097
    %1852 = vmatpush1.bf16.msra.mxu0 %v1096
    %1853 = vmatprep.subr.bf16.mxu0 %v1099
    %1854 = vmatpush1.bf16.msra.mxu0 %v1098
    %1855 = vmatprep.subr.bf16.mxu0 %v1101
    %1856 = vmatpush1.bf16.msra.mxu0 %v1100
    %1857 = vmatprep.subr.bf16.mxu0 0
    %1858 = vmatpush1.bf16.msra.mxu0 0
    %1859 = vmatprep.subr.bf16.mxu0 0
    %1860 = vmatpush1.bf16.msra.mxu0 0
    %1861 = vmatprep.subr.bf16.mxu0 0
    %1862 = vmatpush1.bf16.msra.mxu0 0
    %1863 = vmatprep.subr.bf16.mxu0 0
    %1864 = vmatpush1.bf16.msra.mxu0 0
    %1865 = vmatprep.subr.bf16.mxu0 0
    %1866 = vmatpush1.bf16.msra.mxu0 0
    %1867 = vmatprep.subr.bf16.mxu0 0
    %1868 = vmatpush1.bf16.msra.mxu0 0
    %1869 = vmatprep.subr.bf16.mxu0 0
    %1870 = vmatpush1.bf16.msra.mxu0 0
    %1871 = vmatprep.subr.bf16.mxu0 0
    %1872 = vmatpush1.bf16.msra.mxu0 0
    %1873 = vmatprep.mubr.bf16.mxu0 0
    %1874 = vmatmul.mubr.bf16.gmra.mrb[0].mxu0 %v1758
    %v1875 = vpop.f32.mrb[0].mxu0
    %v1876 = vadd.f32 %v750, %v1875
    %v1877 = vpop.f32.mrb[0].mxu0
    %v1878 = vadd.f32 %v754, %v1877
    %v1879 = vpop.f32.mrb[0].mxu0
    %v1880 = vpop.f32.mrb[0].mxu0
    %1881 = vdwg.mxu0
    %v1882 = vpack.c.bf16 %v1755, %v1755
    %1883 = vmatprep.subr.bf16.mxu0 %v1323
    %1884 = vmatpush1.bf16.msra.mxu0 %v1322
    %1885 = vmatprep.subr.bf16.mxu0 %v1326
    %1886 = vmatpush1.bf16.msra.mxu0 %v1325
    %1887 = vmatprep.subr.bf16.mxu0 %v1329
    %1888 = vmatpush1.bf16.msra.mxu0 %v1328
    %1889 = vmatprep.subr.bf16.mxu0 %v1332
    %1890 = vmatpush1.bf16.msra.mxu0 %v1331
    %1891 = vmatprep.subr.bf16.mxu0 %v1335
    %1892 = vmatpush1.bf16.msra.mxu0 %v1334
    %1893 = vmatprep.subr.bf16.mxu0 %v1338
    %1894 = vmatpush1.bf16.msra.mxu0 %v1337
    %1895 = vmatprep.subr.bf16.mxu0 %v1341
    %1896 = vmatpush1.bf16.msra.mxu0 %v1340
    %1897 = vmatprep.subr.bf16.mxu0 %v1344
    %1898 = vmatpush1.bf16.msra.mxu0 %v1343
    %1899 = vmatprep.subr.bf16.mxu0 0
    %1900 = vmatpush1.bf16.msra.mxu0 0
    %1901 = vmatprep.subr.bf16.mxu0 0
    %1902 = vmatpush1.bf16.msra.mxu0 0
    %1903 = vmatprep.subr.bf16.mxu0 0
    %1904 = vmatpush1.bf16.msra.mxu0 0
    %1905 = vmatprep.subr.bf16.mxu0 0
    %1906 = vmatpush1.bf16.msra.mxu0 0
    %1907 = vmatprep.subr.bf16.mxu0 0
    %1908 = vmatpush1.bf16.msra.mxu0 0
    %1909 = vmatprep.subr.bf16.mxu0 0
    %1910 = vmatpush1.bf16.msra.mxu0 0
    %1911 = vmatprep.subr.bf16.mxu0 0
    %1912 = vmatpush1.bf16.msra.mxu0 0
    %1913 = vmatprep.subr.bf16.mxu0 0
    %1914 = vmatpush1.bf16.msra.mxu0 0
    %1915 = vmatprep.mubr.bf16.mxu0 0
    %1916 = vmatmul.mubr.bf16.gmra.mrb[0].mxu0 %v1882
    %v1917 = vpop.f32.mrb[0].mxu0
    %v1918 = vadd.f32 0.0, %v1917
    %v1919 = vpop.f32.mrb[0].mxu0
    %v1920 = vadd.f32 0.0, %v1919
    %v1921 = vpop.f32.mrb[0].mxu0
    %v1922 = vpop.f32.mrb[0].mxu0
    %1923 = vdwg.mxu0
    %1924 = vmatprep.subr.bf16.mxu0 0
    %1925 = vmatpush1.bf16.msra.mxu0 %v1324
    %1926 = vmatprep.subr.bf16.mxu0 0
    %1927 = vmatpush1.bf16.msra.mxu0 %v1327
    %1928 = vmatprep.subr.bf16.mxu0 0
    %1929 = vmatpush1.bf16.msra.mxu0 %v1330
    %1930 = vmatprep.subr.bf16.mxu0 0
    %1931 = vmatpush1.bf16.msra.mxu0 %v1333
    %1932 = vmatprep.subr.bf16.mxu0 0
    %1933 = vmatpush1.bf16.msra.mxu0 %v1336
    %1934 = vmatprep.subr.bf16.mxu0 0
    %1935 = vmatpush1.bf16.msra.mxu0 %v1339
    %1936 = vmatprep.subr.bf16.mxu0 0
    %1937 = vmatpush1.bf16.msra.mxu0 %v1342
    %1938 = vmatprep.subr.bf16.mxu0 0
    %1939 = vmatpush1.bf16.msra.mxu0 %v1345
    %1940 = vmatprep.subr.bf16.mxu0 0
    %1941 = vmatpush1.bf16.msra.mxu0 0
    %1942 = vmatprep.subr.bf16.mxu0 0
    %1943 = vmatpush1.bf16.msra.mxu0 0
    %1944 = vmatprep.subr.bf16.mxu0 0
    %1945 = vmatpush1.bf16.msra.mxu0 0
    %1946 = vmatprep.subr.bf16.mxu0 0
    %1947 = vmatpush1.bf16.msra.mxu0 0
    %1948 = vmatprep.subr.bf16.mxu0 0
    %1949 = vmatpush1.bf16.msra.mxu0 0
    %1950 = vmatprep.subr.bf16.mxu0 0
    %1951 = vmatpush1.bf16.msra.mxu0 0
    %1952 = vmatprep.subr.bf16.mxu0 0
    %1953 = vmatpush1.bf16.msra.mxu0 0
    %1954 = vmatprep.subr.bf16.mxu0 0
    %1955 = vmatpush1.bf16.msra.mxu0 0
    %1956 = vmatprep.mubr.bf16.mxu0 0
    %1957 = vmatmul.mubr.bf16.gmra.mrb[0].mxu0 %v1882
    %v1958 = vpop.f32.mrb[0].mxu0
    %v1959 = vadd.f32 0.0, %v1958
    %v1960 = vpop.f32.mrb[0].mxu0
    %v1961 = vpop.f32.mrb[0].mxu0
    %v1962 = vpop.f32.mrb[0].mxu0
    %1963 = vdwg.mxu0
    %s1964 = smul.u32 3, 3
    %s1965 = smul.addr %s1964, 8
    %s1966 = scalar_lea.vmem [#allocation2], %s1965
    %v1967 = vld [vmem:[%s1966] sm:$0xff]
    %v1968 = vld [vmem:[%s1966 + $0x8] sm:$0xff]
    %v1969 = vld [vmem:[%s1966 + $0x10] sm:$0xff]
    %v1970 = vadd.f32 %v1967, %v1794
    %v1971 = vxor.u32 %v1970, 2147483648
    %v1972 = vmul.f32 %v1971, 1.442695
    %v1973 = vpow.pop %v1972
    %v1974 = vadd.f32 %v1973, 1.0
    %v1975 = vrcp.pop %v1974
    %v1976 = vmul.f32 1.0, %v1975
    %v1977 = vadd.f32 %v1968, %v1796
    %v1978 = vxor.u32 %v1977, 2147483648
    %v1979 = vmul.f32 %v1978, 1.442695
    %v1980 = vpow.pop %v1979
    %v1981 = vadd.f32 %v1980, 1.0
    %v1982 = vrcp.pop %v1981
    %v1983 = vmul.f32 1.0, %v1982
    %v1984 = vmul.f32 %v1976, %v1835
    %v1985 = vadd.f32 %v1969, %v1984
    %v1986 = vtanh.pop %v1985
    %v1987 = vsub.f32 1.0, %v1983
    %v1988 = vmul.f32 %v1987, %v1986
    %v1989 = vmul.f32 %v1983, %v1733
    %v1990 = vadd.f32 %v1988, %v1989
    %v1991 = vadd.f32 %v1959, %v766
    %v1992 = vadd.f32 %v1837, %v1918
    %v1993 = vxor.u32 %v1992, 2147483648
    %v1994 = vmul.f32 %v1993, 1.442695
    %v1995 = vpow.pop %v1994
    %v1996 = vadd.f32 %v1995, 1.0
    %v1997 = vrcp.pop %v1996
    %v1998 = vmul.f32 1.0, %v1997
    %v1999 = vadd.f32 %v1876, %v1920
    %v2000 = vxor.u32 %v1999, 2147483648
    %v2001 = vmul.f32 %v2000, 1.442695
    %v2002 = vpow.pop %v2001
    %v2003 = vadd.f32 %v2002, 1.0
    %v2004 = vrcp.pop %v2003
    %v2005 = vmul.f32 1.0, %v2004
    %v2006 = vmul.f32 %v1998, %v1991
    %v2007 = vadd.f32 %v1878, %v2006
    %v2008 = vtanh.pop %v2007
    %v2009 = vsub.f32 1.0, %v2005
    %v2010 = vmul.f32 %v2009, %v2008
    %v2011 = vmul.f32 %v2005, %v1755
    %v2012 = vadd.f32 %v2010, %v2011
    %s2013 = scalar_lea.vmem [#allocation12], 16
    %2014 = vst [vmem:[%s2013] sm:$0xff] %v2012
    %v2015 = vpack.c.bf16 %v1990, %v1990
    %2016 = vmatprep.subr.bf16.mxu0 %v867
    %2017 = vmatpush1.bf16.msra.mxu0 %v866
    %2018 = vmatprep.subr.bf16.mxu0 %v871
    %2019 = vmatpush1.bf16.msra.mxu0 %v870
    %2020 = vmatprep.subr.bf16.mxu0 %v875
    %2021 = vmatpush1.bf16.msra.mxu0 %v874
    %2022 = vmatprep.subr.bf16.mxu0 %v879
    %2023 = vmatpush1.bf16.msra.mxu0 %v878
    %2024 = vmatprep.subr.bf16.mxu0 %v883
    %2025 = vmatpush1.bf16.msra.mxu0 %v882
    %2026 = vmatprep.subr.bf16.mxu0 %v887
    %2027 = vmatpush1.bf16.msra.mxu0 %v886
    %2028 = vmatprep.subr.bf16.mxu0 %v891
    %2029 = vmatpush1.bf16.msra.mxu0 %v890
    %2030 = vmatprep.subr.bf16.mxu0 %v895
    %2031 = vmatpush1.bf16.msra.mxu0 %v894
    %2032 = vmatprep.subr.bf16.mxu0 0
    %2033 = vmatpush1.bf16.msra.mxu0 0
    %2034 = vmatprep.subr.bf16.mxu0 0
    %2035 = vmatpush1.bf16.msra.mxu0 0
    %2036 = vmatprep.subr.bf16.mxu0 0
    %2037 = vmatpush1.bf16.msra.mxu0 0
    %2038 = vmatprep.subr.bf16.mxu0 0
    %2039 = vmatpush1.bf16.msra.mxu0 0
    %2040 = vmatprep.subr.bf16.mxu0 0
    %2041 = vmatpush1.bf16.msra.mxu0 0
    %2042 = vmatprep.subr.bf16.mxu0 0
    %2043 = vmatpush1.bf16.msra.mxu0 0
    %2044 = vmatprep.subr.bf16.mxu0 0
    %2045 = vmatpush1.bf16.msra.mxu0 0
    %2046 = vmatprep.subr.bf16.mxu0 0
    %2047 = vmatpush1.bf16.msra.mxu0 0
    %2048 = vmatprep.mubr.bf16.mxu0 0
    %2049 = vmatmul.mubr.bf16.gmra.mrb[0].mxu0 %v2015
    %v2050 = vpop.f32.mrb[0].mxu0
    %v2051 = vadd.f32 %v734, %v2050
    %v2052 = vpop.f32.mrb[0].mxu0
    %v2053 = vadd.f32 %v738, %v2052
    %v2054 = vpop.f32.mrb[0].mxu0
    %v2055 = vpop.f32.mrb[0].mxu0
    %2056 = vdwg.mxu0
    %2057 = vmatprep.subr.bf16.mxu0 %v869
    %2058 = vmatpush1.bf16.msra.mxu0 %v868
    %2059 = vmatprep.subr.bf16.mxu0 %v873
    %2060 = vmatpush1.bf16.msra.mxu0 %v872
    %2061 = vmatprep.subr.bf16.mxu0 %v877
    %2062 = vmatpush1.bf16.msra.mxu0 %v876
    %2063 = vmatprep.subr.bf16.mxu0 %v881
    %2064 = vmatpush1.bf16.msra.mxu0 %v880
    %2065 = vmatprep.subr.bf16.mxu0 %v885
    %2066 = vmatpush1.bf16.msra.mxu0 %v884
    %2067 = vmatprep.subr.bf16.mxu0 %v889
    %2068 = vmatpush1.bf16.msra.mxu0 %v888
    %2069 = vmatprep.subr.bf16.mxu0 %v893
    %2070 = vmatpush1.bf16.msra.mxu0 %v892
    %2071 = vmatprep.subr.bf16.mxu0 %v897
    %2072 = vmatpush1.bf16.msra.mxu0 %v896
    %2073 = vmatprep.subr.bf16.mxu0 0
    %2074 = vmatpush1.bf16.msra.mxu0 0
    %2075 = vmatprep.subr.bf16.mxu0 0
    %2076 = vmatpush1.bf16.msra.mxu0 0
    %2077 = vmatprep.subr.bf16.mxu0 0
    %2078 = vmatpush1.bf16.msra.mxu0 0
    %2079 = vmatprep.subr.bf16.mxu0 0
    %2080 = vmatpush1.bf16.msra.mxu0 0
    %2081 = vmatprep.subr.bf16.mxu0 0
    %2082 = vmatpush1.bf16.msra.mxu0 0
    %2083 = vmatprep.subr.bf16.mxu0 0
    %2084 = vmatpush1.bf16.msra.mxu0 0
    %2085 = vmatprep.subr.bf16.mxu0 0
    %2086 = vmatpush1.bf16.msra.mxu0 0
    %2087 = vmatprep.subr.bf16.mxu0 0
    %2088 = vmatpush1.bf16.msra.mxu0 0
    %2089 = vmatprep.mubr.bf16.mxu0 0
    %2090 = vmatmul.mubr.bf16.gmra.mrb[0].mxu0 %v2015
    %v2091 = vpop.f32.mrb[0].mxu0
    %v2092 = vadd.f32 %v742, %v2091
    %v2093 = vpop.f32.mrb[0].mxu0
    %v2094 = vadd.f32 %v746, %v2093
    %v2095 = vpop.f32.mrb[0].mxu0
    %v2096 = vpop.f32.mrb[0].mxu0
    %2097 = vdwg.mxu0
    %2098 = vmatprep.subr.bf16.mxu0 %v1087
    %2099 = vmatpush1.bf16.msra.mxu0 %v1086
    %2100 = vmatprep.subr.bf16.mxu0 %v1089
    %2101 = vmatpush1.bf16.msra.mxu0 %v1088
    %2102 = vmatprep.subr.bf16.mxu0 %v1091
    %2103 = vmatpush1.bf16.msra.mxu0 %v1090
    %2104 = vmatprep.subr.bf16.mxu0 %v1093
    %2105 = vmatpush1.bf16.msra.mxu0 %v1092
    %2106 = vmatprep.subr.bf16.mxu0 %v1095
    %2107 = vmatpush1.bf16.msra.mxu0 %v1094
    %2108 = vmatprep.subr.bf16.mxu0 %v1097
    %2109 = vmatpush1.bf16.msra.mxu0 %v1096
    %2110 = vmatprep.subr.bf16.mxu0 %v1099
    %2111 = vmatpush1.bf16.msra.mxu0 %v1098
    %2112 = vmatprep.subr.bf16.mxu0 %v1101
    %2113 = vmatpush1.bf16.msra.mxu0 %v1100
    %2114 = vmatprep.subr.bf16.mxu0 0
    %2115 = vmatpush1.bf16.msra.mxu0 0
    %2116 = vmatprep.subr.bf16.mxu0 0
    %2117 = vmatpush1.bf16.msra.mxu0 0
    %2118 = vmatprep.subr.bf16.mxu0 0
    %2119 = vmatpush1.bf16.msra.mxu0 0
    %2120 = vmatprep.subr.bf16.mxu0 0
    %2121 = vmatpush1.bf16.msra.mxu0 0
    %2122 = vmatprep.subr.bf16.mxu0 0
    %2123 = vmatpush1.bf16.msra.mxu0 0
    %2124 = vmatprep.subr.bf16.mxu0 0
    %2125 = vmatpush1.bf16.msra.mxu0 0
    %2126 = vmatprep.subr.bf16.mxu0 0
    %2127 = vmatpush1.bf16.msra.mxu0 0
    %2128 = vmatprep.subr.bf16.mxu0 0
    %2129 = vmatpush1.bf16.msra.mxu0 0
    %2130 = vmatprep.mubr.bf16.mxu0 0
    %2131 = vmatmul.mubr.bf16.gmra.mrb[0].mxu0 %v2015
    %v2132 = vpop.f32.mrb[0].mxu0
    %v2133 = vadd.f32 %v750, %v2132
    %v2134 = vpop.f32.mrb[0].mxu0
    %v2135 = vadd.f32 %v754, %v2134
    %v2136 = vpop.f32.mrb[0].mxu0
    %v2137 = vpop.f32.mrb[0].mxu0
    %2138 = vdwg.mxu0
    %v2139 = vpack.c.bf16 %v2012, %v2012
    %2140 = vmatprep.subr.bf16.mxu0 %v1323
    %2141 = vmatpush1.bf16.msra.mxu0 %v1322
    %2142 = vmatprep.subr.bf16.mxu0 %v1326
    %2143 = vmatpush1.bf16.msra.mxu0 %v1325
    %2144 = vmatprep.subr.bf16.mxu0 %v1329
    %2145 = vmatpush1.bf16.msra.mxu0 %v1328
    %2146 = vmatprep.subr.bf16.mxu0 %v1332
    %2147 = vmatpush1.bf16.msra.mxu0 %v1331
    %2148 = vmatprep.subr.bf16.mxu0 %v1335
    %2149 = vmatpush1.bf16.msra.mxu0 %v1334
    %2150 = vmatprep.subr.bf16.mxu0 %v1338
    %2151 = vmatpush1.bf16.msra.mxu0 %v1337
    %2152 = vmatprep.subr.bf16.mxu0 %v1341
    %2153 = vmatpush1.bf16.msra.mxu0 %v1340
    %2154 = vmatprep.subr.bf16.mxu0 %v1344
    %2155 = vmatpush1.bf16.msra.mxu0 %v1343
    %2156 = vmatprep.subr.bf16.mxu0 0
    %2157 = vmatpush1.bf16.msra.mxu0 0
    %2158 = vmatprep.subr.bf16.mxu0 0
    %2159 = vmatpush1.bf16.msra.mxu0 0
    %2160 = vmatprep.subr.bf16.mxu0 0
    %2161 = vmatpush1.bf16.msra.mxu0 0
    %2162 = vmatprep.subr.bf16.mxu0 0
    %2163 = vmatpush1.bf16.msra.mxu0 0
    %2164 = vmatprep.subr.bf16.mxu0 0
    %2165 = vmatpush1.bf16.msra.mxu0 0
    %2166 = vmatprep.subr.bf16.mxu0 0
    %2167 = vmatpush1.bf16.msra.mxu0 0
    %2168 = vmatprep.subr.bf16.mxu0 0
    %2169 = vmatpush1.bf16.msra.mxu0 0
    %2170 = vmatprep.subr.bf16.mxu0 0
    %2171 = vmatpush1.bf16.msra.mxu0 0
    %2172 = vmatprep.mubr.bf16.mxu0 0
    %2173 = vmatmul.mubr.bf16.gmra.mrb[0].mxu0 %v2139
    %v2174 = vpop.f32.mrb[0].mxu0
    %v2175 = vadd.f32 0.0, %v2174
    %v2176 = vpop.f32.mrb[0].mxu0
    %v2177 = vadd.f32 0.0, %v2176
    %v2178 = vpop.f32.mrb[0].mxu0
    %v2179 = vpop.f32.mrb[0].mxu0
    %2180 = vdwg.mxu0
    %2181 = vmatprep.subr.bf16.mxu0 0
    %2182 = vmatpush1.bf16.msra.mxu0 %v1324
    %2183 = vmatprep.subr.bf16.mxu0 0
    %2184 = vmatpush1.bf16.msra.mxu0 %v1327
    %2185 = vmatprep.subr.bf16.mxu0 0
    %2186 = vmatpush1.bf16.msra.mxu0 %v1330
    %2187 = vmatprep.subr.bf16.mxu0 0
    %2188 = vmatpush1.bf16.msra.mxu0 %v1333
    %2189 = vmatprep.subr.bf16.mxu0 0
    %2190 = vmatpush1.bf16.msra.mxu0 %v1336
    %2191 = vmatprep.subr.bf16.mxu0 0
    %2192 = vmatpush1.bf16.msra.mxu0 %v1339
    %2193 = vmatprep.subr.bf16.mxu0 0
    %2194 = vmatpush1.bf16.msra.mxu0 %v1342
    %2195 = vmatprep.subr.bf16.mxu0 0
    %2196 = vmatpush1.bf16.msra.mxu0 %v1345
    %2197 = vmatprep.subr.bf16.mxu0 0
    %2198 = vmatpush1.bf16.msra.mxu0 0
    %2199 = vmatprep.subr.bf16.mxu0 0
    %2200 = vmatpush1.bf16.msra.mxu0 0
    %2201 = vmatprep.subr.bf16.mxu0 0
    %2202 = vmatpush1.bf16.msra.mxu0 0
    %2203 = vmatprep.subr.bf16.mxu0 0
    %2204 = vmatpush1.bf16.msra.mxu0 0
    %2205 = vmatprep.subr.bf16.mxu0 0
    %2206 = vmatpush1.bf16.msra.mxu0 0
    %2207 = vmatprep.subr.bf16.mxu0 0
    %2208 = vmatpush1.bf16.msra.mxu0 0
    %2209 = vmatprep.subr.bf16.mxu0 0
    %2210 = vmatpush1.bf16.msra.mxu0 0
    %2211 = vmatprep.subr.bf16.mxu0 0
    %2212 = vmatpush1.bf16.msra.mxu0 0
    %2213 = vmatprep.mubr.bf16.mxu0 0
    %2214 = vmatmul.mubr.bf16.gmra.mrb[0].mxu0 %v2139
    %v2215 = vpop.f32.mrb[0].mxu0
    %v2216 = vadd.f32 0.0, %v2215
    %v2217 = vpop.f32.mrb[0].mxu0
    %v2218 = vpop.f32.mrb[0].mxu0
    %v2219 = vpop.f32.mrb[0].mxu0
    %2220 = vdwg.mxu0
    %s2221 = smul.u32 4, 3
    %s2222 = smul.addr %s2221, 8
    %s2223 = scalar_lea.vmem [#allocation2], %s2222
    %v2224 = vld [vmem:[%s2223] sm:$0xff]
    %v2225 = vld [vmem:[%s2223 + $0x8] sm:$0xff]
    %v2226 = vld [vmem:[%s2223 + $0x10] sm:$0xff]
    %v2227 = vadd.f32 %v2224, %v2051
    %v2228 = vxor.u32 %v2227, 2147483648
    %v2229 = vmul.f32 %v2228, 1.442695
    %v2230 = vpow.pop %v2229
    %v2231 = vadd.f32 %v2230, 1.0
    %v2232 = vrcp.pop %v2231
    %v2233 = vmul.f32 1.0, %v2232
    %v2234 = vadd.f32 %v2225, %v2053
    %v2235 = vxor.u32 %v2234, 2147483648
    %v2236 = vmul.f32 %v2235, 1.442695
    %v2237 = vpow.pop %v2236
    %v2238 = vadd.f32 %v2237, 1.0
    %v2239 = vrcp.pop %v2238
    %v2240 = vmul.f32 1.0, %v2239
    %v2241 = vmul.f32 %v2233, %v2092
    %v2242 = vadd.f32 %v2226, %v2241
    %v2243 = vtanh.pop %v2242
    %v2244 = vsub.f32 1.0, %v2240
    %v2245 = vmul.f32 %v2244, %v2243
    %v2246 = vmul.f32 %v2240, %v1990
    %v2247 = vadd.f32 %v2245, %v2246
    %v2248 = vadd.f32 %v2216, %v766
    %v2249 = vadd.f32 %v2094, %v2175
    %v2250 = vxor.u32 %v2249, 2147483648
    %v2251 = vmul.f32 %v2250, 1.442695
    %v2252 = vpow.pop %v2251
    %v2253 = vadd.f32 %v2252, 1.0
    %v2254 = vrcp.pop %v2253
    %v2255 = vmul.f32 1.0, %v2254
    %v2256 = vadd.f32 %v2133, %v2177
    %v2257 = vxor.u32 %v2256, 2147483648
    %v2258 = vmul.f32 %v2257, 1.442695
    %v2259 = vpow.pop %v2258
    %v2260 = vadd.f32 %v2259, 1.0
    %v2261 = vrcp.pop %v2260
    %v2262 = vmul.f32 1.0, %v2261
    %v2263 = vmul.f32 %v2255, %v2248
    %v2264 = vadd.f32 %v2135, %v2263
    %v2265 = vtanh.pop %v2264
    %v2266 = vsub.f32 1.0, %v2262
    %v2267 = vmul.f32 %v2266, %v2265
    %v2268 = vmul.f32 %v2262, %v2012
    %v2269 = vadd.f32 %v2267, %v2268
    %s2270 = scalar_lea.vmem [#allocation12], 24
    %2271 = vst [vmem:[%s2270] sm:$0xff] %v2269
    %v2272 = vpack.c.bf16 %v2247, %v2247
    %2273 = vmatprep.subr.bf16.mxu0 %v867
    %2274 = vmatpush1.bf16.msra.mxu0 %v866
    %2275 = vmatprep.subr.bf16.mxu0 %v871
    %2276 = vmatpush1.bf16.msra.mxu0 %v870
    %2277 = vmatprep.subr.bf16.mxu0 %v875
    %2278 = vmatpush1.bf16.msra.mxu0 %v874
    %2279 = vmatprep.subr.bf16.mxu0 %v879
    %2280 = vmatpush1.bf16.msra.mxu0 %v878
    %2281 = vmatprep.subr.bf16.mxu0 %v883
    %2282 = vmatpush1.bf16.msra.mxu0 %v882
    %2283 = vmatprep.subr.bf16.mxu0 %v887
    %2284 = vmatpush1.bf16.msra.mxu0 %v886
    %2285 = vmatprep.subr.bf16.mxu0 %v891
    %2286 = vmatpush1.bf16.msra.mxu0 %v890
    %2287 = vmatprep.subr.bf16.mxu0 %v895
    %2288 = vmatpush1.bf16.msra.mxu0 %v894
    %2289 = vmatprep.subr.bf16.mxu0 0
    %2290 = vmatpush1.bf16.msra.mxu0 0
    %2291 = vmatprep.subr.bf16.mxu0 0
    %2292 = vmatpush1.bf16.msra.mxu0 0
    %2293 = vmatprep.subr.bf16.mxu0 0
    %2294 = vmatpush1.bf16.msra.mxu0 0
    %2295 = vmatprep.subr.bf16.mxu0 0
    %2296 = vmatpush1.bf16.msra.mxu0 0
    %2297 = vmatprep.subr.bf16.mxu0 0
    %2298 = vmatpush1.bf16.msra.mxu0 0
    %2299 = vmatprep.subr.bf16.mxu0 0
    %2300 = vmatpush1.bf16.msra.mxu0 0
    %2301 = vmatprep.subr.bf16.mxu0 0
    %2302 = vmatpush1.bf16.msra.mxu0 0
    %2303 = vmatprep.subr.bf16.mxu0 0
    %2304 = vmatpush1.bf16.msra.mxu0 0
    %2305 = vmatprep.mubr.bf16.mxu0 0
    %2306 = vmatmul.mubr.bf16.gmra.mrb[0].mxu0 %v2272
    %v2307 = vpop.f32.mrb[0].mxu0
    %v2308 = vadd.f32 %v734, %v2307
    %v2309 = vpop.f32.mrb[0].mxu0
    %v2310 = vadd.f32 %v738, %v2309
    %v2311 = vpop.f32.mrb[0].mxu0
    %v2312 = vpop.f32.mrb[0].mxu0
    %2313 = vdwg.mxu0
    %2314 = vmatprep.subr.bf16.mxu0 %v869
    %2315 = vmatpush1.bf16.msra.mxu0 %v868
    %2316 = vmatprep.subr.bf16.mxu0 %v873
    %2317 = vmatpush1.bf16.msra.mxu0 %v872
    %2318 = vmatprep.subr.bf16.mxu0 %v877
    %2319 = vmatpush1.bf16.msra.mxu0 %v876
    %2320 = vmatprep.subr.bf16.mxu0 %v881
    %2321 = vmatpush1.bf16.msra.mxu0 %v880
    %2322 = vmatprep.subr.bf16.mxu0 %v885
    %2323 = vmatpush1.bf16.msra.mxu0 %v884
    %2324 = vmatprep.subr.bf16.mxu0 %v889
    %2325 = vmatpush1.bf16.msra.mxu0 %v888
    %2326 = vmatprep.subr.bf16.mxu0 %v893
    %2327 = vmatpush1.bf16.msra.mxu0 %v892
    %2328 = vmatprep.subr.bf16.mxu0 %v897
    %2329 = vmatpush1.bf16.msra.mxu0 %v896
    %2330 = vmatprep.subr.bf16.mxu0 0
    %2331 = vmatpush1.bf16.msra.mxu0 0
    %2332 = vmatprep.subr.bf16.mxu0 0
    %2333 = vmatpush1.bf16.msra.mxu0 0
    %2334 = vmatprep.subr.bf16.mxu0 0
    %2335 = vmatpush1.bf16.msra.mxu0 0
    %2336 = vmatprep.subr.bf16.mxu0 0
    %2337 = vmatpush1.bf16.msra.mxu0 0
    %2338 = vmatprep.subr.bf16.mxu0 0
    %2339 = vmatpush1.bf16.msra.mxu0 0
    %2340 = vmatprep.subr.bf16.mxu0 0
    %2341 = vmatpush1.bf16.msra.mxu0 0
    %2342 = vmatprep.subr.bf16.mxu0 0
    %2343 = vmatpush1.bf16.msra.mxu0 0
    %2344 = vmatprep.subr.bf16.mxu0 0
    %2345 = vmatpush1.bf16.msra.mxu0 0
    %2346 = vmatprep.mubr.bf16.mxu0 0
    %2347 = vmatmul.mubr.bf16.gmra.mrb[0].mxu0 %v2272
    %v2348 = vpop.f32.mrb[0].mxu0
    %v2349 = vadd.f32 %v742, %v2348
    %v2350 = vpop.f32.mrb[0].mxu0
    %v2351 = vadd.f32 %v746, %v2350
    %v2352 = vpop.f32.mrb[0].mxu0
    %v2353 = vpop.f32.mrb[0].mxu0
    %2354 = vdwg.mxu0
    %2355 = vmatprep.subr.bf16.mxu0 %v1087
    %2356 = vmatpush1.bf16.msra.mxu0 %v1086
    %2357 = vmatprep.subr.bf16.mxu0 %v1089
    %2358 = vmatpush1.bf16.msra.mxu0 %v1088
    %2359 = vmatprep.subr.bf16.mxu0 %v1091
    %2360 = vmatpush1.bf16.msra.mxu0 %v1090
    %2361 = vmatprep.subr.bf16.mxu0 %v1093
    %2362 = vmatpush1.bf16.msra.mxu0 %v1092
    %2363 = vmatprep.subr.bf16.mxu0 %v1095
    %2364 = vmatpush1.bf16.msra.mxu0 %v1094
    %2365 = vmatprep.subr.bf16.mxu0 %v1097
    %2366 = vmatpush1.bf16.msra.mxu0 %v1096
    %2367 = vmatprep.subr.bf16.mxu0 %v1099
    %2368 = vmatpush1.bf16.msra.mxu0 %v1098
    %2369 = vmatprep.subr.bf16.mxu0 %v1101
    %2370 = vmatpush1.bf16.msra.mxu0 %v1100
    %2371 = vmatprep.subr.bf16.mxu0 0
    %2372 = vmatpush1.bf16.msra.mxu0 0
    %2373 = vmatprep.subr.bf16.mxu0 0
    %2374 = vmatpush1.bf16.msra.mxu0 0
    %2375 = vmatprep.subr.bf16.mxu0 0
    %2376 = vmatpush1.bf16.msra.mxu0 0
    %2377 = vmatprep.subr.bf16.mxu0 0
    %2378 = vmatpush1.bf16.msra.mxu0 0
    %2379 = vmatprep.subr.bf16.mxu0 0
    %2380 = vmatpush1.bf16.msra.mxu0 0
    %2381 = vmatprep.subr.bf16.mxu0 0
    %2382 = vmatpush1.bf16.msra.mxu0 0
    %2383 = vmatprep.subr.bf16.mxu0 0
    %2384 = vmatpush1.bf16.msra.mxu0 0
    %2385 = vmatprep.subr.bf16.mxu0 0
    %2386 = vmatpush1.bf16.msra.mxu0 0
    %2387 = vmatprep.mubr.bf16.mxu0 0
    %2388 = vmatmul.mubr.bf16.gmra.mrb[0].mxu0 %v2272
    %v2389 = vpop.f32.mrb[0].mxu0
    %v2390 = vadd.f32 %v750, %v2389
    %v2391 = vpop.f32.mrb[0].mxu0
    %v2392 = vadd.f32 %v754, %v2391
    %v2393 = vpop.f32.mrb[0].mxu0
    %v2394 = vpop.f32.mrb[0].mxu0
    %2395 = vdwg.mxu0
    %v2396 = vpack.c.bf16 %v2269, %v2269
    %2397 = vmatprep.subr.bf16.mxu0 %v1323
    %2398 = vmatpush1.bf16.msra.mxu0 %v1322
    %2399 = vmatprep.subr.bf16.mxu0 %v1326
    %2400 = vmatpush1.bf16.msra.mxu0 %v1325
    %2401 = vmatprep.subr.bf16.mxu0 %v1329
    %2402 = vmatpush1.bf16.msra.mxu0 %v1328
    %2403 = vmatprep.subr.bf16.mxu0 %v1332
    %2404 = vmatpush1.bf16.msra.mxu0 %v1331
    %2405 = vmatprep.subr.bf16.mxu0 %v1335
    %2406 = vmatpush1.bf16.msra.mxu0 %v1334
    %2407 = vmatprep.subr.bf16.mxu0 %v1338
    %2408 = vmatpush1.bf16.msra.mxu0 %v1337
    %2409 = vmatprep.subr.bf16.mxu0 %v1341
    %2410 = vmatpush1.bf16.msra.mxu0 %v1340
    %2411 = vmatprep.subr.bf16.mxu0 %v1344
    %2412 = vmatpush1.bf16.msra.mxu0 %v1343
    %2413 = vmatprep.subr.bf16.mxu0 0
    %2414 = vmatpush1.bf16.msra.mxu0 0
    %2415 = vmatprep.subr.bf16.mxu0 0
    %2416 = vmatpush1.bf16.msra.mxu0 0
    %2417 = vmatprep.subr.bf16.mxu0 0
    %2418 = vmatpush1.bf16.msra.mxu0 0
    %2419 = vmatprep.subr.bf16.mxu0 0
    %2420 = vmatpush1.bf16.msra.mxu0 0
    %2421 = vmatprep.subr.bf16.mxu0 0
    %2422 = vmatpush1.bf16.msra.mxu0 0
    %2423 = vmatprep.subr.bf16.mxu0 0
    %2424 = vmatpush1.bf16.msra.mxu0 0
    %2425 = vmatprep.subr.bf16.mxu0 0
    %2426 = vmatpush1.bf16.msra.mxu0 0
    %2427 = vmatprep.subr.bf16.mxu0 0
    %2428 = vmatpush1.bf16.msra.mxu0 0
    %2429 = vmatprep.mubr.bf16.mxu0 0
    %2430 = vmatmul.mubr.bf16.gmra.mrb[0].mxu0 %v2396
    %v2431 = vpop.f32.mrb[0].mxu0
    %v2432 = vadd.f32 0.0, %v2431
    %v2433 = vpop.f32.mrb[0].mxu0
    %v2434 = vadd.f32 0.0, %v2433
    %v2435 = vpop.f32.mrb[0].mxu0
    %v2436 = vpop.f32.mrb[0].mxu0
    %2437 = vdwg.mxu0
    %2438 = vmatprep.subr.bf16.mxu0 0
    %2439 = vmatpush1.bf16.msra.mxu0 %v1324
    %2440 = vmatprep.subr.bf16.mxu0 0
    %2441 = vmatpush1.bf16.msra.mxu0 %v1327
    %2442 = vmatprep.subr.bf16.mxu0 0
    %2443 = vmatpush1.bf16.msra.mxu0 %v1330
    %2444 = vmatprep.subr.bf16.mxu0 0
    %2445 = vmatpush1.bf16.msra.mxu0 %v1333
    %2446 = vmatprep.subr.bf16.mxu0 0
    %2447 = vmatpush1.bf16.msra.mxu0 %v1336
    %2448 = vmatprep.subr.bf16.mxu0 0
    %2449 = vmatpush1.bf16.msra.mxu0 %v1339
    %2450 = vmatprep.subr.bf16.mxu0 0
    %2451 = vmatpush1.bf16.msra.mxu0 %v1342
    %2452 = vmatprep.subr.bf16.mxu0 0
    %2453 = vmatpush1.bf16.msra.mxu0 %v1345
    %2454 = vmatprep.subr.bf16.mxu0 0
    %2455 = vmatpush1.bf16.msra.mxu0 0
    %2456 = vmatprep.subr.bf16.mxu0 0
    %2457 = vmatpush1.bf16.msra.mxu0 0
    %2458 = vmatprep.subr.bf16.mxu0 0
    %2459 = vmatpush1.bf16.msra.mxu0 0
    %2460 = vmatprep.subr.bf16.mxu0 0
    %2461 = vmatpush1.bf16.msra.mxu0 0
    %2462 = vmatprep.subr.bf16.mxu0 0
    %2463 = vmatpush1.bf16.msra.mxu0 0
    %2464 = vmatprep.subr.bf16.mxu0 0
    %2465 = vmatpush1.bf16.msra.mxu0 0
    %2466 = vmatprep.subr.bf16.mxu0 0
    %2467 = vmatpush1.bf16.msra.mxu0 0
    %2468 = vmatprep.subr.bf16.mxu0 0
    %2469 = vmatpush1.bf16.msra.mxu0 0
    %2470 = vmatprep.mubr.bf16.mxu0 0
    %2471 = vmatmul.mubr.bf16.gmra.mrb[0].mxu0 %v2396
    %v2472 = vpop.f32.mrb[0].mxu0
    %v2473 = vadd.f32 0.0, %v2472
    %v2474 = vpop.f32.mrb[0].mxu0
    %v2475 = vpop.f32.mrb[0].mxu0
    %v2476 = vpop.f32.mrb[0].mxu0
    %2477 = vdwg.mxu0
    %s2478 = smul.u32 5, 3
    %s2479 = smul.addr %s2478, 8
    %s2480 = scalar_lea.vmem [#allocation2], %s2479
    %v2481 = vld [vmem:[%s2480] sm:$0xff]
    %v2482 = vld [vmem:[%s2480 + $0x8] sm:$0xff]
    %v2483 = vld [vmem:[%s2480 + $0x10] sm:$0xff]
    %v2484 = vadd.f32 %v2481, %v2308
    %v2485 = vxor.u32 %v2484, 2147483648
    %v2486 = vmul.f32 %v2485, 1.442695
    %v2487 = vpow.pop %v2486
    %v2488 = vadd.f32 %v2487, 1.0
    %v2489 = vrcp.pop %v2488
    %v2490 = vmul.f32 1.0, %v2489
    %v2491 = vadd.f32 %v2482, %v2310
    %v2492 = vxor.u32 %v2491, 2147483648
    %v2493 = vmul.f32 %v2492, 1.442695
    %v2494 = vpow.pop %v2493
    %v2495 = vadd.f32 %v2494, 1.0
    %v2496 = vrcp.pop %v2495
    %v2497 = vmul.f32 1.0, %v2496
    %v2498 = vmul.f32 %v2490, %v2349
    %v2499 = vadd.f32 %v2483, %v2498
    %v2500 = vtanh.pop %v2499
    %v2501 = vsub.f32 1.0, %v2497
    %v2502 = vmul.f32 %v2501, %v2500
    %v2503 = vmul.f32 %v2497, %v2247
    %v2504 = vadd.f32 %v2502, %v2503
    %v2505 = vadd.f32 %v2473, %v766
    %v2506 = vadd.f32 %v2351, %v2432
    %v2507 = vxor.u32 %v2506, 2147483648
    %v2508 = vmul.f32 %v2507, 1.442695
    %v2509 = vpow.pop %v2508
    %v2510 = vadd.f32 %v2509, 1.0
    %v2511 = vrcp.pop %v2510
    %v2512 = vmul.f32 1.0, %v2511
    %v2513 = vadd.f32 %v2390, %v2434
    %v2514 = vxor.u32 %v2513, 2147483648
    %v2515 = vmul.f32 %v2514, 1.442695
    %v2516 = vpow.pop %v2515
    %v2517 = vadd.f32 %v2516, 1.0
    %v2518 = vrcp.pop %v2517
    %v2519 = vmul.f32 1.0, %v2518
    %v2520 = vmul.f32 %v2512, %v2505
    %v2521 = vadd.f32 %v2392, %v2520
    %v2522 = vtanh.pop %v2521
    %v2523 = vsub.f32 1.0, %v2519
    %v2524 = vmul.f32 %v2523, %v2522
    %v2525 = vmul.f32 %v2519, %v2269
    %v2526 = vadd.f32 %v2524, %v2525
    %s2527 = scalar_lea.vmem [#allocation12], 32
    %2528 = vst [vmem:[%s2527] sm:$0xff] %v2526
    %v2529 = vpack.c.bf16 %v2504, %v2504
    %2530 = vmatprep.subr.bf16.mxu0 %v867
    %2531 = vmatpush1.bf16.msra.mxu0 %v866
    %2532 = vmatprep.subr.bf16.mxu0 %v871
    %2533 = vmatpush1.bf16.msra.mxu0 %v870
    %2534 = vmatprep.subr.bf16.mxu0 %v875
    %2535 = vmatpush1.bf16.msra.mxu0 %v874
    %2536 = vmatprep.subr.bf16.mxu0 %v879
    %2537 = vmatpush1.bf16.msra.mxu0 %v878
    %2538 = vmatprep.subr.bf16.mxu0 %v883
    %2539 = vmatpush1.bf16.msra.mxu0 %v882
    %2540 = vmatprep.subr.bf16.mxu0 %v887
    %2541 = vmatpush1.bf16.msra.mxu0 %v886
    %2542 = vmatprep.subr.bf16.mxu0 %v891
    %2543 = vmatpush1.bf16.msra.mxu0 %v890
    %2544 = vmatprep.subr.bf16.mxu0 %v895
    %2545 = vmatpush1.bf16.msra.mxu0 %v894
    %2546 = vmatprep.subr.bf16.mxu0 0
    %2547 = vmatpush1.bf16.msra.mxu0 0
    %2548 = vmatprep.subr.bf16.mxu0 0
    %2549 = vmatpush1.bf16.msra.mxu0 0
    %2550 = vmatprep.subr.bf16.mxu0 0
    %2551 = vmatpush1.bf16.msra.mxu0 0
    %2552 = vmatprep.subr.bf16.mxu0 0
    %2553 = vmatpush1.bf16.msra.mxu0 0
    %2554 = vmatprep.subr.bf16.mxu0 0
    %2555 = vmatpush1.bf16.msra.mxu0 0
    %2556 = vmatprep.subr.bf16.mxu0 0
    %2557 = vmatpush1.bf16.msra.mxu0 0
    %2558 = vmatprep.subr.bf16.mxu0 0
    %2559 = vmatpush1.bf16.msra.mxu0 0
    %2560 = vmatprep.subr.bf16.mxu0 0
    %2561 = vmatpush1.bf16.msra.mxu0 0
    %2562 = vmatprep.mubr.bf16.mxu0 0
    %2563 = vmatmul.mubr.bf16.gmra.mrb[0].mxu0 %v2529
    %v2564 = vpop.f32.mrb[0].mxu0
    %v2565 = vadd.f32 %v734, %v2564
    %v2566 = vpop.f32.mrb[0].mxu0
    %v2567 = vadd.f32 %v738, %v2566
    %v2568 = vpop.f32.mrb[0].mxu0
    %v2569 = vpop.f32.mrb[0].mxu0
    %2570 = vdwg.mxu0
    %2571 = vmatprep.subr.bf16.mxu0 %v869
    %2572 = vmatpush1.bf16.msra.mxu0 %v868
    %2573 = vmatprep.subr.bf16.mxu0 %v873
    %2574 = vmatpush1.bf16.msra.mxu0 %v872
    %2575 = vmatprep.subr.bf16.mxu0 %v877
    %2576 = vmatpush1.bf16.msra.mxu0 %v876
    %2577 = vmatprep.subr.bf16.mxu0 %v881
    %2578 = vmatpush1.bf16.msra.mxu0 %v880
    %2579 = vmatprep.subr.bf16.mxu0 %v885
    %2580 = vmatpush1.bf16.msra.mxu0 %v884
    %2581 = vmatprep.subr.bf16.mxu0 %v889
    %2582 = vmatpush1.bf16.msra.mxu0 %v888
    %2583 = vmatprep.subr.bf16.mxu0 %v893
    %2584 = vmatpush1.bf16.msra.mxu0 %v892
    %2585 = vmatprep.subr.bf16.mxu0 %v897
    %2586 = vmatpush1.bf16.msra.mxu0 %v896
    %2587 = vmatprep.subr.bf16.mxu0 0
    %2588 = vmatpush1.bf16.msra.mxu0 0
    %2589 = vmatprep.subr.bf16.mxu0 0
    %2590 = vmatpush1.bf16.msra.mxu0 0
    %2591 = vmatprep.subr.bf16.mxu0 0
    %2592 = vmatpush1.bf16.msra.mxu0 0
    %2593 = vmatprep.subr.bf16.mxu0 0
    %2594 = vmatpush1.bf16.msra.mxu0 0
    %2595 = vmatprep.subr.bf16.mxu0 0
    %2596 = vmatpush1.bf16.msra.mxu0 0
    %2597 = vmatprep.subr.bf16.mxu0 0
    %2598 = vmatpush1.bf16.msra.mxu0 0
    %2599 = vmatprep.subr.bf16.mxu0 0
    %2600 = vmatpush1.bf16.msra.mxu0 0
    %2601 = vmatprep.subr.bf16.mxu0 0
    %2602 = vmatpush1.bf16.msra.mxu0 0
    %2603 = vmatprep.mubr.bf16.mxu0 0
    %2604 = vmatmul.mubr.bf16.gmra.mrb[0].mxu0 %v2529
    %v2605 = vpop.f32.mrb[0].mxu0
    %v2606 = vadd.f32 %v742, %v2605
    %v2607 = vpop.f32.mrb[0].mxu0
    %v2608 = vadd.f32 %v746, %v2607
    %v2609 = vpop.f32.mrb[0].mxu0
    %v2610 = vpop.f32.mrb[0].mxu0
    %2611 = vdwg.mxu0
    %2612 = vmatprep.subr.bf16.mxu0 %v1087
    %2613 = vmatpush1.bf16.msra.mxu0 %v1086
    %2614 = vmatprep.subr.bf16.mxu0 %v1089
    %2615 = vmatpush1.bf16.msra.mxu0 %v1088
    %2616 = vmatprep.subr.bf16.mxu0 %v1091
    %2617 = vmatpush1.bf16.msra.mxu0 %v1090
    %2618 = vmatprep.subr.bf16.mxu0 %v1093
    %2619 = vmatpush1.bf16.msra.mxu0 %v1092
    %2620 = vmatprep.subr.bf16.mxu0 %v1095
    %2621 = vmatpush1.bf16.msra.mxu0 %v1094
    %2622 = vmatprep.subr.bf16.mxu0 %v1097
    %2623 = vmatpush1.bf16.msra.mxu0 %v1096
    %2624 = vmatprep.subr.bf16.mxu0 %v1099
    %2625 = vmatpush1.bf16.msra.mxu0 %v1098
    %2626 = vmatprep.subr.bf16.mxu0 %v1101
    %2627 = vmatpush1.bf16.msra.mxu0 %v1100
    %2628 = vmatprep.subr.bf16.mxu0 0
    %2629 = vmatpush1.bf16.msra.mxu0 0
    %2630 = vmatprep.subr.bf16.mxu0 0
    %2631 = vmatpush1.bf16.msra.mxu0 0
    %2632 = vmatprep.subr.bf16.mxu0 0
    %2633 = vmatpush1.bf16.msra.mxu0 0
    %2634 = vmatprep.subr.bf16.mxu0 0
    %2635 = vmatpush1.bf16.msra.mxu0 0
    %2636 = vmatprep.subr.bf16.mxu0 0
    %2637 = vmatpush1.bf16.msra.mxu0 0
    %2638 = vmatprep.subr.bf16.mxu0 0
    %2639 = vmatpush1.bf16.msra.mxu0 0
    %2640 = vmatprep.subr.bf16.mxu0 0
    %2641 = vmatpush1.bf16.msra.mxu0 0
    %2642 = vmatprep.subr.bf16.mxu0 0
    %2643 = vmatpush1.bf16.msra.mxu0 0
    %2644 = vmatprep.mubr.bf16.mxu0 0
    %2645 = vmatmul.mubr.bf16.gmra.mrb[0].mxu0 %v2529
    %v2646 = vpop.f32.mrb[0].mxu0
    %v2647 = vadd.f32 %v750, %v2646
    %v2648 = vpop.f32.mrb[0].mxu0
    %v2649 = vadd.f32 %v754, %v2648
    %v2650 = vpop.f32.mrb[0].mxu0
    %v2651 = vpop.f32.mrb[0].mxu0
    %2652 = vdwg.mxu0
    %v2653 = vpack.c.bf16 %v2526, %v2526
    %2654 = vmatprep.subr.bf16.mxu0 %v1323
    %2655 = vmatpush1.bf16.msra.mxu0 %v1322
    %2656 = vmatprep.subr.bf16.mxu0 %v1326
    %2657 = vmatpush1.bf16.msra.mxu0 %v1325
    %2658 = vmatprep.subr.bf16.mxu0 %v1329
    %2659 = vmatpush1.bf16.msra.mxu0 %v1328
    %2660 = vmatprep.subr.bf16.mxu0 %v1332
    %2661 = vmatpush1.bf16.msra.mxu0 %v1331
    %2662 = vmatprep.subr.bf16.mxu0 %v1335
    %2663 = vmatpush1.bf16.msra.mxu0 %v1334
    %2664 = vmatprep.subr.bf16.mxu0 %v1338
    %2665 = vmatpush1.bf16.msra.mxu0 %v1337
    %2666 = vmatprep.subr.bf16.mxu0 %v1341
    %2667 = vmatpush1.bf16.msra.mxu0 %v1340
    %2668 = vmatprep.subr.bf16.mxu0 %v1344
    %2669 = vmatpush1.bf16.msra.mxu0 %v1343
    %2670 = vmatprep.subr.bf16.mxu0 0
    %2671 = vmatpush1.bf16.msra.mxu0 0
    %2672 = vmatprep.subr.bf16.mxu0 0
    %2673 = vmatpush1.bf16.msra.mxu0 0
    %2674 = vmatprep.subr.bf16.mxu0 0
    %2675 = vmatpush1.bf16.msra.mxu0 0
    %2676 = vmatprep.subr.bf16.mxu0 0
    %2677 = vmatpush1.bf16.msra.mxu0 0
    %2678 = vmatprep.subr.bf16.mxu0 0
    %2679 = vmatpush1.bf16.msra.mxu0 0
    %2680 = vmatprep.subr.bf16.mxu0 0
    %2681 = vmatpush1.bf16.msra.mxu0 0
    %2682 = vmatprep.subr.bf16.mxu0 0
    %2683 = vmatpush1.bf16.msra.mxu0 0
    %2684 = vmatprep.subr.bf16.mxu0 0
    %2685 = vmatpush1.bf16.msra.mxu0 0
    %2686 = vmatprep.mubr.bf16.mxu0 0
    %2687 = vmatmul.mubr.bf16.gmra.mrb[0].mxu0 %v2653
    %v2688 = vpop.f32.mrb[0].mxu0
    %v2689 = vadd.f32 0.0, %v2688
    %v2690 = vpop.f32.mrb[0].mxu0
    %v2691 = vadd.f32 0.0, %v2690
    %v2692 = vpop.f32.mrb[0].mxu0
    %v2693 = vpop.f32.mrb[0].mxu0
    %2694 = vdwg.mxu0
    %2695 = vmatprep.subr.bf16.mxu0 0
    %2696 = vmatpush1.bf16.msra.mxu0 %v1324
    %2697 = vmatprep.subr.bf16.mxu0 0
    %2698 = vmatpush1.bf16.msra.mxu0 %v1327
    %2699 = vmatprep.subr.bf16.mxu0 0
    %2700 = vmatpush1.bf16.msra.mxu0 %v1330
    %2701 = vmatprep.subr.bf16.mxu0 0
    %2702 = vmatpush1.bf16.msra.mxu0 %v1333
    %2703 = vmatprep.subr.bf16.mxu0 0
    %2704 = vmatpush1.bf16.msra.mxu0 %v1336
    %2705 = vmatprep.subr.bf16.mxu0 0
    %2706 = vmatpush1.bf16.msra.mxu0 %v1339
    %2707 = vmatprep.subr.bf16.mxu0 0
    %2708 = vmatpush1.bf16.msra.mxu0 %v1342
    %2709 = vmatprep.subr.bf16.mxu0 0
    %2710 = vmatpush1.bf16.msra.mxu0 %v1345
    %2711 = vmatprep.subr.bf16.mxu0 0
    %2712 = vmatpush1.bf16.msra.mxu0 0
    %2713 = vmatprep.subr.bf16.mxu0 0
    %2714 = vmatpush1.bf16.msra.mxu0 0
    %2715 = vmatprep.subr.bf16.mxu0 0
    %2716 = vmatpush1.bf16.msra.mxu0 0
    %2717 = vmatprep.subr.bf16.mxu0 0
    %2718 = vmatpush1.bf16.msra.mxu0 0
    %2719 = vmatprep.subr.bf16.mxu0 0
    %2720 = vmatpush1.bf16.msra.mxu0 0
    %2721 = vmatprep.subr.bf16.mxu0 0
    %2722 = vmatpush1.bf16.msra.mxu0 0
    %2723 = vmatprep.subr.bf16.mxu0 0
    %2724 = vmatpush1.bf16.msra.mxu0 0
    %2725 = vmatprep.subr.bf16.mxu0 0
    %2726 = vmatpush1.bf16.msra.mxu0 0
    %2727 = vmatprep.mubr.bf16.mxu0 0
    %2728 = vmatmul.mubr.bf16.gmra.mrb[0].mxu0 %v2653
    %v2729 = vpop.f32.mrb[0].mxu0
    %v2730 = vadd.f32 0.0, %v2729
    %v2731 = vpop.f32.mrb[0].mxu0
    %v2732 = vpop.f32.mrb[0].mxu0
    %v2733 = vpop.f32.mrb[0].mxu0
    %2734 = vdwg.mxu0
    %s2735 = smul.u32 6, 3
    %s2736 = smul.addr %s2735, 8
    %s2737 = scalar_lea.vmem [#allocation2], %s2736
    %v2738 = vld [vmem:[%s2737] sm:$0xff]
    %v2739 = vld [vmem:[%s2737 + $0x8] sm:$0xff]
    %v2740 = vld [vmem:[%s2737 + $0x10] sm:$0xff]
    %v2741 = vadd.f32 %v2738, %v2565
    %v2742 = vxor.u32 %v2741, 2147483648
    %v2743 = vmul.f32 %v2742, 1.442695
    %v2744 = vpow.pop %v2743
    %v2745 = vadd.f32 %v2744, 1.0
    %v2746 = vrcp.pop %v2745
    %v2747 = vmul.f32 1.0, %v2746
    %v2748 = vadd.f32 %v2739, %v2567
    %v2749 = vxor.u32 %v2748, 2147483648
    %v2750 = vmul.f32 %v2749, 1.442695
    %v2751 = vpow.pop %v2750
    %v2752 = vadd.f32 %v2751, 1.0
    %v2753 = vrcp.pop %v2752
    %v2754 = vmul.f32 1.0, %v2753
    %v2755 = vmul.f32 %v2747, %v2606
    %v2756 = vadd.f32 %v2740, %v2755
    %v2757 = vtanh.pop %v2756
    %v2758 = vsub.f32 1.0, %v2754
    %v2759 = vmul.f32 %v2758, %v2757
    %v2760 = vmul.f32 %v2754, %v2504
    %v2761 = vadd.f32 %v2759, %v2760
    %v2762 = vadd.f32 %v2730, %v766
    %v2763 = vadd.f32 %v2608, %v2689
    %v2764 = vxor.u32 %v2763, 2147483648
    %v2765 = vmul.f32 %v2764, 1.442695
    %v2766 = vpow.pop %v2765
    %v2767 = vadd.f32 %v2766, 1.0
    %v2768 = vrcp.pop %v2767
    %v2769 = vmul.f32 1.0, %v2768
    %v2770 = vadd.f32 %v2647, %v2691
    %v2771 = vxor.u32 %v2770, 2147483648
    %v2772 = vmul.f32 %v2771, 1.442695
    %v2773 = vpow.pop %v2772
    %v2774 = vadd.f32 %v2773, 1.0
    %v2775 = vrcp.pop %v2774
    %v2776 = vmul.f32 1.0, %v2775
    %v2777 = vmul.f32 %v2769, %v2762
    %v2778 = vadd.f32 %v2649, %v2777
    %v2779 = vtanh.pop %v2778
    %v2780 = vsub.f32 1.0, %v2776
    %v2781 = vmul.f32 %v2780, %v2779
    %v2782 = vmul.f32 %v2776, %v2526
    %v2783 = vadd.f32 %v2781, %v2782
    %s2784 = scalar_lea.vmem [#allocation12], 40
    %2785 = vst [vmem:[%s2784] sm:$0xff] %v2783
    %v2786 = vpack.c.bf16 %v2761, %v2761
    %2787 = vmatprep.subr.bf16.mxu0 %v867
    %2788 = vmatpush1.bf16.msra.mxu0 %v866
    %2789 = vmatprep.subr.bf16.mxu0 %v871
    %2790 = vmatpush1.bf16.msra.mxu0 %v870
    %2791 = vmatprep.subr.bf16.mxu0 %v875
    %2792 = vmatpush1.bf16.msra.mxu0 %v874
    %2793 = vmatprep.subr.bf16.mxu0 %v879
    %2794 = vmatpush1.bf16.msra.mxu0 %v878
    %2795 = vmatprep.subr.bf16.mxu0 %v883
    %2796 = vmatpush1.bf16.msra.mxu0 %v882
    %2797 = vmatprep.subr.bf16.mxu0 %v887
    %2798 = vmatpush1.bf16.msra.mxu0 %v886
    %2799 = vmatprep.subr.bf16.mxu0 %v891
    %2800 = vmatpush1.bf16.msra.mxu0 %v890
    %2801 = vmatprep.subr.bf16.mxu0 %v895
    %2802 = vmatpush1.bf16.msra.mxu0 %v894
    %2803 = vmatprep.subr.bf16.mxu0 0
    %2804 = vmatpush1.bf16.msra.mxu0 0
    %2805 = vmatprep.subr.bf16.mxu0 0
    %2806 = vmatpush1.bf16.msra.mxu0 0
    %2807 = vmatprep.subr.bf16.mxu0 0
    %2808 = vmatpush1.bf16.msra.mxu0 0
    %2809 = vmatprep.subr.bf16.mxu0 0
    %2810 = vmatpush1.bf16.msra.mxu0 0
    %2811 = vmatprep.subr.bf16.mxu0 0
    %2812 = vmatpush1.bf16.msra.mxu0 0
    %2813 = vmatprep.subr.bf16.mxu0 0
    %2814 = vmatpush1.bf16.msra.mxu0 0
    %2815 = vmatprep.subr.bf16.mxu0 0
    %2816 = vmatpush1.bf16.msra.mxu0 0
    %2817 = vmatprep.subr.bf16.mxu0 0
    %2818 = vmatpush1.bf16.msra.mxu0 0
    %2819 = vmatprep.mubr.bf16.mxu0 0
    %2820 = vmatmul.mubr.bf16.gmra.mrb[0].mxu0 %v2786
    %v2821 = vpop.f32.mrb[0].mxu0
    %v2822 = vadd.f32 %v734, %v2821
    %v2823 = vpop.f32.mrb[0].mxu0
    %v2824 = vadd.f32 %v738, %v2823
    %v2825 = vpop.f32.mrb[0].mxu0
    %v2826 = vpop.f32.mrb[0].mxu0
    %2827 = vdwg.mxu0
    %2828 = vmatprep.subr.bf16.mxu0 %v869
    %2829 = vmatpush1.bf16.msra.mxu0 %v868
    %2830 = vmatprep.subr.bf16.mxu0 %v873
    %2831 = vmatpush1.bf16.msra.mxu0 %v872
    %2832 = vmatprep.subr.bf16.mxu0 %v877
    %2833 = vmatpush1.bf16.msra.mxu0 %v876
    %2834 = vmatprep.subr.bf16.mxu0 %v881
    %2835 = vmatpush1.bf16.msra.mxu0 %v880
    %2836 = vmatprep.subr.bf16.mxu0 %v885
    %2837 = vmatpush1.bf16.msra.mxu0 %v884
    %2838 = vmatprep.subr.bf16.mxu0 %v889
    %2839 = vmatpush1.bf16.msra.mxu0 %v888
    %2840 = vmatprep.subr.bf16.mxu0 %v893
    %2841 = vmatpush1.bf16.msra.mxu0 %v892
    %2842 = vmatprep.subr.bf16.mxu0 %v897
    %2843 = vmatpush1.bf16.msra.mxu0 %v896
    %2844 = vmatprep.subr.bf16.mxu0 0
    %2845 = vmatpush1.bf16.msra.mxu0 0
    %2846 = vmatprep.subr.bf16.mxu0 0
    %2847 = vmatpush1.bf16.msra.mxu0 0
    %2848 = vmatprep.subr.bf16.mxu0 0
    %2849 = vmatpush1.bf16.msra.mxu0 0
    %2850 = vmatprep.subr.bf16.mxu0 0
    %2851 = vmatpush1.bf16.msra.mxu0 0
    %2852 = vmatprep.subr.bf16.mxu0 0
    %2853 = vmatpush1.bf16.msra.mxu0 0
    %2854 = vmatprep.subr.bf16.mxu0 0
    %2855 = vmatpush1.bf16.msra.mxu0 0
    %2856 = vmatprep.subr.bf16.mxu0 0
    %2857 = vmatpush1.bf16.msra.mxu0 0
    %2858 = vmatprep.subr.bf16.mxu0 0
    %2859 = vmatpush1.bf16.msra.mxu0 0
    %2860 = vmatprep.mubr.bf16.mxu0 0
    %2861 = vmatmul.mubr.bf16.gmra.mrb[0].mxu0 %v2786
    %v2862 = vpop.f32.mrb[0].mxu0
    %v2863 = vadd.f32 %v742, %v2862
    %v2864 = vpop.f32.mrb[0].mxu0
    %v2865 = vadd.f32 %v746, %v2864
    %v2866 = vpop.f32.mrb[0].mxu0
    %v2867 = vpop.f32.mrb[0].mxu0
    %2868 = vdwg.mxu0
    %2869 = vmatprep.subr.bf16.mxu0 %v1087
    %2870 = vmatpush1.bf16.msra.mxu0 %v1086
    %2871 = vmatprep.subr.bf16.mxu0 %v1089
    %2872 = vmatpush1.bf16.msra.mxu0 %v1088
    %2873 = vmatprep.subr.bf16.mxu0 %v1091
    %2874 = vmatpush1.bf16.msra.mxu0 %v1090
    %2875 = vmatprep.subr.bf16.mxu0 %v1093
    %2876 = vmatpush1.bf16.msra.mxu0 %v1092
    %2877 = vmatprep.subr.bf16.mxu0 %v1095
    %2878 = vmatpush1.bf16.msra.mxu0 %v1094
    %2879 = vmatprep.subr.bf16.mxu0 %v1097
    %2880 = vmatpush1.bf16.msra.mxu0 %v1096
    %2881 = vmatprep.subr.bf16.mxu0 %v1099
    %2882 = vmatpush1.bf16.msra.mxu0 %v1098
    %2883 = vmatprep.subr.bf16.mxu0 %v1101
    %2884 = vmatpush1.bf16.msra.mxu0 %v1100
    %2885 = vmatprep.subr.bf16.mxu0 0
    %2886 = vmatpush1.bf16.msra.mxu0 0
    %2887 = vmatprep.subr.bf16.mxu0 0
    %2888 = vmatpush1.bf16.msra.mxu0 0
    %2889 = vmatprep.subr.bf16.mxu0 0
    %2890 = vmatpush1.bf16.msra.mxu0 0
    %2891 = vmatprep.subr.bf16.mxu0 0
    %2892 = vmatpush1.bf16.msra.mxu0 0
    %2893 = vmatprep.subr.bf16.mxu0 0
    %2894 = vmatpush1.bf16.msra.mxu0 0
    %2895 = vmatprep.subr.bf16.mxu0 0
    %2896 = vmatpush1.bf16.msra.mxu0 0
    %2897 = vmatprep.subr.bf16.mxu0 0
    %2898 = vmatpush1.bf16.msra.mxu0 0
    %2899 = vmatprep.subr.bf16.mxu0 0
    %2900 = vmatpush1.bf16.msra.mxu0 0
    %2901 = vmatprep.mubr.bf16.mxu0 0
    %2902 = vmatmul.mubr.bf16.gmra.mrb[0].mxu0 %v2786
    %v2903 = vpop.f32.mrb[0].mxu0
    %v2904 = vadd.f32 %v750, %v2903
    %v2905 = vpop.f32.mrb[0].mxu0
    %v2906 = vadd.f32 %v754, %v2905
    %v2907 = vpop.f32.mrb[0].mxu0
    %v2908 = vpop.f32.mrb[0].mxu0
    %2909 = vdwg.mxu0
    %v2910 = vpack.c.bf16 %v2783, %v2783
    %2911 = vmatprep.subr.bf16.mxu0 %v1323
    %2912 = vmatpush1.bf16.msra.mxu0 %v1322
    %2913 = vmatprep.subr.bf16.mxu0 %v1326
    %2914 = vmatpush1.bf16.msra.mxu0 %v1325
    %2915 = vmatprep.subr.bf16.mxu0 %v1329
    %2916 = vmatpush1.bf16.msra.mxu0 %v1328
    %2917 = vmatprep.subr.bf16.mxu0 %v1332
    %2918 = vmatpush1.bf16.msra.mxu0 %v1331
    %2919 = vmatprep.subr.bf16.mxu0 %v1335
    %2920 = vmatpush1.bf16.msra.mxu0 %v1334
    %2921 = vmatprep.subr.bf16.mxu0 %v1338
    %2922 = vmatpush1.bf16.msra.mxu0 %v1337
    %2923 = vmatprep.subr.bf16.mxu0 %v1341
    %2924 = vmatpush1.bf16.msra.mxu0 %v1340
    %2925 = vmatprep.subr.bf16.mxu0 %v1344
    %2926 = vmatpush1.bf16.msra.mxu0 %v1343
    %2927 = vmatprep.subr.bf16.mxu0 0
    %2928 = vmatpush1.bf16.msra.mxu0 0
    %2929 = vmatprep.subr.bf16.mxu0 0
    %2930 = vmatpush1.bf16.msra.mxu0 0
    %2931 = vmatprep.subr.bf16.mxu0 0
    %2932 = vmatpush1.bf16.msra.mxu0 0
    %2933 = vmatprep.subr.bf16.mxu0 0
    %2934 = vmatpush1.bf16.msra.mxu0 0
    %2935 = vmatprep.subr.bf16.mxu0 0
    %2936 = vmatpush1.bf16.msra.mxu0 0
    %2937 = vmatprep.subr.bf16.mxu0 0
    %2938 = vmatpush1.bf16.msra.mxu0 0
    %2939 = vmatprep.subr.bf16.mxu0 0
    %2940 = vmatpush1.bf16.msra.mxu0 0
    %2941 = vmatprep.subr.bf16.mxu0 0
    %2942 = vmatpush1.bf16.msra.mxu0 0
    %2943 = vmatprep.mubr.bf16.mxu0 0
    %2944 = vmatmul.mubr.bf16.gmra.mrb[0].mxu0 %v2910
    %v2945 = vpop.f32.mrb[0].mxu0
    %v2946 = vadd.f32 0.0, %v2945
    %v2947 = vpop.f32.mrb[0].mxu0
    %v2948 = vadd.f32 0.0, %v2947
    %v2949 = vpop.f32.mrb[0].mxu0
    %v2950 = vpop.f32.mrb[0].mxu0
    %2951 = vdwg.mxu0
    %2952 = vmatprep.subr.bf16.mxu0 0
    %2953 = vmatpush1.bf16.msra.mxu0 %v1324
    %2954 = vmatprep.subr.bf16.mxu0 0
    %2955 = vmatpush1.bf16.msra.mxu0 %v1327
    %2956 = vmatprep.subr.bf16.mxu0 0
    %2957 = vmatpush1.bf16.msra.mxu0 %v1330
    %2958 = vmatprep.subr.bf16.mxu0 0
    %2959 = vmatpush1.bf16.msra.mxu0 %v1333
    %2960 = vmatprep.subr.bf16.mxu0 0
    %2961 = vmatpush1.bf16.msra.mxu0 %v1336
    %2962 = vmatprep.subr.bf16.mxu0 0
    %2963 = vmatpush1.bf16.msra.mxu0 %v1339
    %2964 = vmatprep.subr.bf16.mxu0 0
    %2965 = vmatpush1.bf16.msra.mxu0 %v1342
    %2966 = vmatprep.subr.bf16.mxu0 0
    %2967 = vmatpush1.bf16.msra.mxu0 %v1345
    %2968 = vmatprep.subr.bf16.mxu0 0
    %2969 = vmatpush1.bf16.msra.mxu0 0
    %2970 = vmatprep.subr.bf16.mxu0 0
    %2971 = vmatpush1.bf16.msra.mxu0 0
    %2972 = vmatprep.subr.bf16.mxu0 0
    %2973 = vmatpush1.bf16.msra.mxu0 0
    %2974 = vmatprep.subr.bf16.mxu0 0
    %2975 = vmatpush1.bf16.msra.mxu0 0
    %2976 = vmatprep.subr.bf16.mxu0 0
    %2977 = vmatpush1.bf16.msra.mxu0 0
    %2978 = vmatprep.subr.bf16.mxu0 0
    %2979 = vmatpush1.bf16.msra.mxu0 0
    %2980 = vmatprep.subr.bf16.mxu0 0
    %2981 = vmatpush1.bf16.msra.mxu0 0
    %2982 = vmatprep.subr.bf16.mxu0 0
    %2983 = vmatpush1.bf16.msra.mxu0 0
    %2984 = vmatprep.mubr.bf16.mxu0 0
    %2985 = vmatmul.mubr.bf16.gmra.mrb[0].mxu0 %v2910
    %v2986 = vpop.f32.mrb[0].mxu0
    %v2987 = vadd.f32 0.0, %v2986
    %v2988 = vpop.f32.mrb[0].mxu0
    %v2989 = vpop.f32.mrb[0].mxu0
    %v2990 = vpop.f32.mrb[0].mxu0
    %2991 = vdwg.mxu0
    %s2992 = smul.u32 7, 3
    %s2993 = smul.addr %s2992, 8
    %s2994 = scalar_lea.vmem [#allocation2], %s2993
    %v2995 = vld [vmem:[%s2994] sm:$0xff]
    %v2996 = vld [vmem:[%s2994 + $0x8] sm:$0xff]
    %v2997 = vld [vmem:[%s2994 + $0x10] sm:$0xff]
    %v2998 = vadd.f32 %v2995, %v2822
    %v2999 = vxor.u32 %v2998, 2147483648
    %v3000 = vmul.f32 %v2999, 1.442695
    %v3001 = vpow.pop %v3000
    %v3002 = vadd.f32 %v3001, 1.0
    %v3003 = vrcp.pop %v3002
    %v3004 = vmul.f32 1.0, %v3003
    %v3005 = vadd.f32 %v2996, %v2824
    %v3006 = vxor.u32 %v3005, 2147483648
    %v3007 = vmul.f32 %v3006, 1.442695
    %v3008 = vpow.pop %v3007
    %v3009 = vadd.f32 %v3008, 1.0
    %v3010 = vrcp.pop %v3009
    %v3011 = vmul.f32 1.0, %v3010
    %v3012 = vmul.f32 %v3004, %v2863
    %v3013 = vadd.f32 %v2997, %v3012
    %v3014 = vtanh.pop %v3013
    %v3015 = vsub.f32 1.0, %v3011
    %v3016 = vmul.f32 %v3015, %v3014
    %v3017 = vmul.f32 %v3011, %v2761
    %v3018 = vadd.f32 %v3016, %v3017
    %v3019 = vadd.f32 %v2987, %v766
    %v3020 = vadd.f32 %v2865, %v2946
    %v3021 = vxor.u32 %v3020, 2147483648
    %v3022 = vmul.f32 %v3021, 1.442695
    %v3023 = vpow.pop %v3022
    %v3024 = vadd.f32 %v3023, 1.0
    %v3025 = vrcp.pop %v3024
    %v3026 = vmul.f32 1.0, %v3025
    %v3027 = vadd.f32 %v2904, %v2948
    %v3028 = vxor.u32 %v3027, 2147483648
    %v3029 = vmul.f32 %v3028, 1.442695
    %v3030 = vpow.pop %v3029
    %v3031 = vadd.f32 %v3030, 1.0
    %v3032 = vrcp.pop %v3031
    %v3033 = vmul.f32 1.0, %v3032
    %v3034 = vmul.f32 %v3026, %v3019
    %v3035 = vadd.f32 %v2906, %v3034
    %v3036 = vtanh.pop %v3035
    %v3037 = vsub.f32 1.0, %v3033
    %v3038 = vmul.f32 %v3037, %v3036
    %v3039 = vmul.f32 %v3033, %v2783
    %v3040 = vadd.f32 %v3038, %v3039
    %s3041 = scalar_lea.vmem [#allocation12], 48
    %3042 = vst [vmem:[%s3041] sm:$0xff] %v3040
    %v3043 = vpack.c.bf16 %v3018, %v3018
    %3044 = vmatprep.subr.bf16.mxu0 %v869
    %3045 = vmatpush1.bf16.msra.mxu0 %v868
    %3046 = vmatprep.subr.bf16.mxu0 %v873
    %3047 = vmatpush1.bf16.msra.mxu0 %v872
    %3048 = vmatprep.subr.bf16.mxu0 %v877
    %3049 = vmatpush1.bf16.msra.mxu0 %v876
    %3050 = vmatprep.subr.bf16.mxu0 %v881
    %3051 = vmatpush1.bf16.msra.mxu0 %v880
    %3052 = vmatprep.subr.bf16.mxu0 %v885
    %3053 = vmatpush1.bf16.msra.mxu0 %v884
    %3054 = vmatprep.subr.bf16.mxu0 %v889
    %3055 = vmatpush1.bf16.msra.mxu0 %v888
    %3056 = vmatprep.subr.bf16.mxu0 %v893
    %3057 = vmatpush1.bf16.msra.mxu0 %v892
    %3058 = vmatprep.subr.bf16.mxu0 %v897
    %3059 = vmatpush1.bf16.msra.mxu0 %v896
    %3060 = vmatprep.subr.bf16.mxu0 0
    %3061 = vmatpush1.bf16.msra.mxu0 0
    %3062 = vmatprep.subr.bf16.mxu0 0
    %3063 = vmatpush1.bf16.msra.mxu0 0
    %3064 = vmatprep.subr.bf16.mxu0 0
    %3065 = vmatpush1.bf16.msra.mxu0 0
    %3066 = vmatprep.subr.bf16.mxu0 0
    %3067 = vmatpush1.bf16.msra.mxu0 0
    %3068 = vmatprep.subr.bf16.mxu0 0
    %3069 = vmatpush1.bf16.msra.mxu0 0
    %3070 = vmatprep.subr.bf16.mxu0 0
    %3071 = vmatpush1.bf16.msra.mxu0 0
    %3072 = vmatprep.subr.bf16.mxu0 0
    %3073 = vmatpush1.bf16.msra.mxu0 0
    %3074 = vmatprep.subr.bf16.mxu0 0
    %3075 = vmatpush1.bf16.msra.mxu0 0
    %3076 = vmatprep.mubr.bf16.mxu0 0
    %3077 = vmatmul.mubr.bf16.gmra.mrb[0].mxu0 %v3043
    %v3078 = vpop.f32.mrb[0].mxu0
    %v3079 = vpop.f32.mrb[0].mxu0
    %v3080 = vadd.f32 %v746, %v3079
    %v3081 = vpop.f32.mrb[0].mxu0
    %v3082 = vpop.f32.mrb[0].mxu0
    %3083 = vdwg.mxu0
    %3084 = vmatprep.subr.bf16.mxu0 %v1087
    %3085 = vmatpush1.bf16.msra.mxu0 %v1086
    %3086 = vmatprep.subr.bf16.mxu0 %v1089
    %3087 = vmatpush1.bf16.msra.mxu0 %v1088
    %3088 = vmatprep.subr.bf16.mxu0 %v1091
    %3089 = vmatpush1.bf16.msra.mxu0 %v1090
    %3090 = vmatprep.subr.bf16.mxu0 %v1093
    %3091 = vmatpush1.bf16.msra.mxu0 %v1092
    %3092 = vmatprep.subr.bf16.mxu0 %v1095
    %3093 = vmatpush1.bf16.msra.mxu0 %v1094
    %3094 = vmatprep.subr.bf16.mxu0 %v1097
    %3095 = vmatpush1.bf16.msra.mxu0 %v1096
    %3096 = vmatprep.subr.bf16.mxu0 %v1099
    %3097 = vmatpush1.bf16.msra.mxu0 %v1098
    %3098 = vmatprep.subr.bf16.mxu0 %v1101
    %3099 = vmatpush1.bf16.msra.mxu0 %v1100
    %3100 = vmatprep.subr.bf16.mxu0 0
    %3101 = vmatpush1.bf16.msra.mxu0 0
    %3102 = vmatprep.subr.bf16.mxu0 0
    %3103 = vmatpush1.bf16.msra.mxu0 0
    %3104 = vmatprep.subr.bf16.mxu0 0
    %3105 = vmatpush1.bf16.msra.mxu0 0
    %3106 = vmatprep.subr.bf16.mxu0 0
    %3107 = vmatpush1.bf16.msra.mxu0 0
    %3108 = vmatprep.subr.bf16.mxu0 0
    %3109 = vmatpush1.bf16.msra.mxu0 0
    %3110 = vmatprep.subr.bf16.mxu0 0
    %3111 = vmatpush1.bf16.msra.mxu0 0
    %3112 = vmatprep.subr.bf16.mxu0 0
    %3113 = vmatpush1.bf16.msra.mxu0 0
    %3114 = vmatprep.subr.bf16.mxu0 0
    %3115 = vmatpush1.bf16.msra.mxu0 0
    %3116 = vmatprep.mubr.bf16.mxu0 0
    %3117 = vmatmul.mubr.bf16.gmra.mrb[0].mxu0 %v3043
    %v3118 = vpop.f32.mrb[0].mxu0
    %v3119 = vadd.f32 %v750, %v3118
    %v3120 = vpop.f32.mrb[0].mxu0
    %v3121 = vadd.f32 %v754, %v3120
    %v3122 = vpop.f32.mrb[0].mxu0
    %v3123 = vpop.f32.mrb[0].mxu0
    %3124 = vdwg.mxu0
    %v3125 = vpack.c.bf16 %v3040, %v3040
    %3126 = vmatprep.subr.bf16.mxu0 %v1323
    %3127 = vmatpush1.bf16.msra.mxu0 %v1322
    %3128 = vmatprep.subr.bf16.mxu0 %v1326
    %3129 = vmatpush1.bf16.msra.mxu0 %v1325
    %3130 = vmatprep.subr.bf16.mxu0 %v1329
    %3131 = vmatpush1.bf16.msra.mxu0 %v1328
    %3132 = vmatprep.subr.bf16.mxu0 %v1332
    %3133 = vmatpush1.bf16.msra.mxu0 %v1331
    %3134 = vmatprep.subr.bf16.mxu0 %v1335
    %3135 = vmatpush1.bf16.msra.mxu0 %v1334
    %3136 = vmatprep.subr.bf16.mxu0 %v1338
    %3137 = vmatpush1.bf16.msra.mxu0 %v1337
    %3138 = vmatprep.subr.bf16.mxu0 %v1341
    %3139 = vmatpush1.bf16.msra.mxu0 %v1340
    %3140 = vmatprep.subr.bf16.mxu0 %v1344
    %3141 = vmatpush1.bf16.msra.mxu0 %v1343
    %3142 = vmatprep.subr.bf16.mxu0 0
    %3143 = vmatpush1.bf16.msra.mxu0 0
    %3144 = vmatprep.subr.bf16.mxu0 0
    %3145 = vmatpush1.bf16.msra.mxu0 0
    %3146 = vmatprep.subr.bf16.mxu0 0
    %3147 = vmatpush1.bf16.msra.mxu0 0
    %3148 = vmatprep.subr.bf16.mxu0 0
    %3149 = vmatpush1.bf16.msra.mxu0 0
    %3150 = vmatprep.subr.bf16.mxu0 0
    %3151 = vmatpush1.bf16.msra.mxu0 0
    %3152 = vmatprep.subr.bf16.mxu0 0
    %3153 = vmatpush1.bf16.msra.mxu0 0
    %3154 = vmatprep.subr.bf16.mxu0 0
    %3155 = vmatpush1.bf16.msra.mxu0 0
    %3156 = vmatprep.subr.bf16.mxu0 0
    %3157 = vmatpush1.bf16.msra.mxu0 0
    %3158 = vmatprep.mubr.bf16.mxu0 0
    %3159 = vmatmul.mubr.bf16.gmra.mrb[0].mxu0 %v3125
    %v3160 = vpop.f32.mrb[0].mxu0
    %v3161 = vadd.f32 0.0, %v3160
    %v3162 = vpop.f32.mrb[0].mxu0
    %v3163 = vadd.f32 0.0, %v3162
    %v3164 = vpop.f32.mrb[0].mxu0
    %v3165 = vpop.f32.mrb[0].mxu0
    %3166 = vdwg.mxu0
    %3167 = vmatprep.subr.bf16.mxu0 0
    %3168 = vmatpush1.bf16.msra.mxu0 %v1324
    %3169 = vmatprep.subr.bf16.mxu0 0
    %3170 = vmatpush1.bf16.msra.mxu0 %v1327
    %3171 = vmatprep.subr.bf16.mxu0 0
    %3172 = vmatpush1.bf16.msra.mxu0 %v1330
    %3173 = vmatprep.subr.bf16.mxu0 0
    %3174 = vmatpush1.bf16.msra.mxu0 %v1333
    %3175 = vmatprep.subr.bf16.mxu0 0
    %3176 = vmatpush1.bf16.msra.mxu0 %v1336
    %3177 = vmatprep.subr.bf16.mxu0 0
    %3178 = vmatpush1.bf16.msra.mxu0 %v1339
    %3179 = vmatprep.subr.bf16.mxu0 0
    %3180 = vmatpush1.bf16.msra.mxu0 %v1342
    %3181 = vmatprep.subr.bf16.mxu0 0
    %3182 = vmatpush1.bf16.msra.mxu0 %v1345
    %3183 = vmatprep.subr.bf16.mxu0 0
    %3184 = vmatpush1.bf16.msra.mxu0 0
    %3185 = vmatprep.subr.bf16.mxu0 0
    %3186 = vmatpush1.bf16.msra.mxu0 0
    %3187 = vmatprep.subr.bf16.mxu0 0
    %3188 = vmatpush1.bf16.msra.mxu0 0
    %3189 = vmatprep.subr.bf16.mxu0 0
    %3190 = vmatpush1.bf16.msra.mxu0 0
    %3191 = vmatprep.subr.bf16.mxu0 0
    %3192 = vmatpush1.bf16.msra.mxu0 0
    %3193 = vmatprep.subr.bf16.mxu0 0
    %3194 = vmatpush1.bf16.msra.mxu0 0
    %3195 = vmatprep.subr.bf16.mxu0 0
    %3196 = vmatpush1.bf16.msra.mxu0 0
    %3197 = vmatprep.subr.bf16.mxu0 0
    %3198 = vmatpush1.bf16.msra.mxu0 0
    %3199 = vmatprep.mubr.bf16.mxu0 0
    %3200 = vmatmul.mubr.bf16.gmra.mrb[0].mxu0 %v3125
    %v3201 = vpop.f32.mrb[0].mxu0
    %v3202 = vadd.f32 0.0, %v3201
    %v3203 = vpop.f32.mrb[0].mxu0
    %v3204 = vpop.f32.mrb[0].mxu0
    %v3205 = vpop.f32.mrb[0].mxu0
    %3206 = vdwg.mxu0
    %v3207 = vadd.f32 %v3202, %v766
    %v3208 = vadd.f32 %v3080, %v3161
    %v3209 = vxor.u32 %v3208, 2147483648
    %v3210 = vmul.f32 %v3209, 1.442695
    %v3211 = vpow.pop %v3210
    %v3212 = vadd.f32 %v3211, 1.0
    %v3213 = vrcp.pop %v3212
    %v3214 = vmul.f32 1.0, %v3213
    %v3215 = vadd.f32 %v3119, %v3163
    %v3216 = vxor.u32 %v3215, 2147483648
    %v3217 = vmul.f32 %v3216, 1.442695
    %v3218 = vpow.pop %v3217
    %v3219 = vadd.f32 %v3218, 1.0
    %v3220 = vrcp.pop %v3219
    %v3221 = vmul.f32 1.0, %v3220
    %v3222 = vmul.f32 %v3214, %v3207
    %v3223 = vadd.f32 %v3121, %v3222
    %v3224 = vtanh.pop %v3223
    %v3225 = vsub.f32 1.0, %v3221
    %v3226 = vmul.f32 %v3225, %v3224
    %v3227 = vmul.f32 %v3221, %v3040
    %v3228 = vadd.f32 %v3226, %v3227
    %3229 = vst [vmem:[#allocation12 + $0x38] sm:$0xff] %v3228
    %3230 = vst [vmem:[#allocation13] sm:$0xff] %v3018
    %s3231 = scalar_lea.vmem [#allocation13], 8
    %3232 = vst [vmem:[%s3231] sm:$0xff] %v3228
    // Predicated region
    $region54: #{tpu_custom_call.1} parent=1 // pred_check
      _
    $region55: #{tpu_custom_call.1} parent=1 // pred_check_branch
      %3234 = sbr.rel (0) target = $region57
    $region56: #{tpu_custom_call.1} parent=1 // pred_region
      %s3236 = ssub.s32 1024, 1024
      %3237 = vsyncadd [#allocation5], %s3236
      %s3238 = sshll.u32 [#allocation12], 4
      %s3239 = int_to_ptr.vmem [resolvable:$true] %s3238
      %3244 = dma.vmem_to_hbm [thread:$0]  %s3239, 1024, %s8, [#allocation5], 128, 128, 8
    $region57: #{tpu_custom_call.1} parent=1 // pred_fallthru
      _
    // Predicated region
    $region58: #{tpu_custom_call.1} parent=1 // pred_check
      _
    $region59: #{tpu_custom_call.1} parent=1 // pred_check_branch
      %3246 = sbr.rel (0) target = $region61
    $region60: #{tpu_custom_call.1} parent=1 // pred_region
      %s3248 = ssub.s32 256, 256
      %3249 = vsyncadd [#allocation14], %s3248
      %s3250 = sshll.u32 [#allocation13], 4
      %s3251 = int_to_ptr.vmem [resolvable:$true] %s3250
      %3256 = dma.vmem_to_hbm [thread:$0]  %s3251, 256, %s9, [#allocation14], 128, 128, 8
    $region61: #{tpu_custom_call.1} parent=1 // pred_fallthru
      _
    // Predicated region
    $region62: #{tpu_custom_call.1} parent=1 // pred_check
      _
    $region63: #{tpu_custom_call.1} parent=1 // pred_check_branch
      %3258 = sbr.rel (0) target = $region65
    $region64: #{tpu_custom_call.1} parent=1 // pred_region
      %3259 = dma.done [#allocation5], 1024
    $region65: #{tpu_custom_call.1} parent=1 // pred_fallthru
      _
    // Predicated region
    $region66: #{tpu_custom_call.1} parent=1 // pred_check
      _
    $region67: #{tpu_custom_call.1} parent=1 // pred_check_branch
      %3261 = sbr.rel (0) target = $region69
    $region68: #{tpu_custom_call.1} parent=1 // pred_region
      %3262 = dma.done [#allocation14], 256
    $region69: #{tpu_custom_call.1} parent=1 // pred_fallthru
      _
    %3263 = vsyncpa [#allocation4], 1
    %3264 = vsyncpa [#allocation7], 1
    %3265 = vsyncpa [#allocation10], 1
    %3266 = vsyncpa [#allocation5], 1
    %3267 = vsyncpa [#allocation14], 1

</llo_original>
